<compile_context>
chip_gen: v6e
topology: v6e:2x2x1
jax: 0.10.0
libtpu: 0.0.40
codegen_flags: <defaults>
</compile_context>

<pallas_src>
import functools
import math

import jax
import jax.numpy as jnp
from jax.experimental import pallas as pl
from jax.experimental.pallas import tpu as pltpu


# ------------------------------- kernel -------------------------------------

def _bottleneck_kernel(x_ref, w1_ref, w2_ref, w3_ref,
                       b1_ref, b2_ref, b3_ref,
                       o_ref, y1p_ref, patch_ref, *, H, W):
    """Fused 1x1 -> 3x3 -> 1x1 bottleneck for one image (one grid step).

    x_ref    : (1, H*W, Cin)        compute dtype (also the identity residual)
    w2_ref   : (9*cfg, cfg)         rows ordered k = dy*3 + dx, then cin
    y1p_ref  : (H+2, W+2, cfg) f32  VMEM halo scratch for the 3x3 conv
    patch_ref: (H*W, 9*cfg)         compute-dtype im2col patch scratch
    BN scales are pre-folded into w1/w2/w3; only biases are added here.
    """
    cfg = w1_ref.shape[1]
    cdt = patch_ref.dtype                               # compute dtype (bf16/f32)

    x2d = x_ref[0]                                      # (H*W, Cin)

    # ---- stage 1: 1x1 conv (scale folded) + bias + relu (f32 accumulate) ----
    a1 = jnp.dot(x2d, w1_ref[...], preferred_element_type=jnp.float32)
    y1 = jnp.maximum(a1 + b1_ref[...], 0.0)             # (H*W, cfg) f32

    # ---- stage 2: 3x3 conv (pad=1) via in-kernel im2col, ONE deep matmul ----
    # Zero only the 1-element border strips (interior is fully overwritten
    # each step); border zeros implement the conv's zero-padding.
    zrow = jnp.zeros((1, W + 2, cfg), jnp.float32)
    zcol = jnp.zeros((H, 1, cfg), jnp.float32)
    y1p_ref[0:1, :, :] = zrow
    y1p_ref[H + 1:H + 2, :, :] = zrow
    y1p_ref[1:H + 1, 0:1, :] = zcol
    y1p_ref[1:H + 1, W + 1:W + 2, :] = zcol
    y1p_ref[1:H + 1, 1:W + 1, :] = y1.reshape(H, W, cfg)

    # Build the (H*W, 9*cfg) patch: tap k = dy*3 + dx occupies channel block k.
    for k in range(9):                                   # unrolled taps
        dy, dx = k // 3, k % 3
        patch_ref[:, k * cfg:(k + 1) * cfg] = (
            y1p_ref[dy:dy + H, dx:dx + W, :].reshape(H * W, cfg).astype(cdt))

    a2 = jnp.dot(patch_ref[...], w2_ref[...], preferred_element_type=jnp.float32)
    y2 = jnp.maximum(a2 + b2_ref[...], 0.0).astype(cdt)  # (H*W, cfg)

    # ---- stage 3: 1x1 conv + bias + identity residual + relu ----
    a3 = jnp.dot(y2, w3_ref[...], preferred_element_type=jnp.float32)
    out = jnp.maximum(a3 + b3_ref[...] + x2d.astype(jnp.float32), 0.0)
    o_ref[...] = out[None].astype(o_ref.dtype)


# ------------------------------ wrappers -------------------------------------

def _bn_fold(gamma, beta, mean, var, eps):
    scale = gamma / jnp.sqrt(var + eps)
    return scale, beta - mean * scale


def prepare_params(p, eps=1e-5, compute_dtype=jnp.bfloat16):
    """Hoisted per-model work: BN folding INTO weights, re-layout, dtype cast."""
    cfg = p['w2_oihw'].shape[0]

    s1, b1 = _bn_fold(p['bn1_gamma'], p['bn1_beta'], p['bn1_mean'], p['bn1_var'], eps)
    s2, b2 = _bn_fold(p['bn2_gamma'], p['bn2_beta'], p['bn2_mean'], p['bn2_var'], eps)
    s3, b3 = _bn_fold(p['bn3_gamma'], p['bn3_beta'], p['bn3_mean'], p['bn3_var'], eps)

    # Fold BN scale into conv output channels in f32, THEN cast to compute dtype.
    w1 = (p['w1_oihw'][:, :, 0, 0].T * s1[None, :]).astype(compute_dtype)   # (cin, cfg)
    w2_hwio = jnp.transpose(p['w2_oihw'], (2, 3, 1, 0))                     # (3,3,cin,cout)
    w2 = (w2_hwio * s2[None, None, None, :]).reshape(9 * cfg, cfg)          # k-major rows
    w2 = w2.astype(compute_dtype)
    w3 = (p['w3_oihw'][:, :, 0, 0].T * s3[None, :]).astype(compute_dtype)   # (cfg, cout)

    return dict(
        w1=w1, w2=w2, w3=w3,
        b1=b1.reshape(1, -1).astype(jnp.float32),
        b2=b2.reshape(1, -1).astype(jnp.float32),
        b3=b3.reshape(1, -1).astype(jnp.float32),
        compute_dtype=compute_dtype)


def _vmem_capacity_bytes(default=64 * 1024 * 1024):
    try:
        info = pltpu.get_tpu_info()
        return int(getattr(info, "vmem_capacity_bytes", default))
    except Exception:
        return default


def bottleneck_forward(x_nchw, prepped, stride=1):
    """Fused Pallas forward pass (downsample=None -> identity residual)."""
    assert stride == 1, "TODO(synk): stride>1 requires the downsample branch"
    cdt = prepped['compute_dtype']
    w1, w2, w3 = prepped['w1'], prepped['w2'], prepped['w3']
    cin, cfg = w1.shape
    cout = w3.shape[1]
    assert cin == cout, "identity residual needs inplanes == planes*4"

    # NCHW -> NHWC once at entry; hoist this (stay NHWC) when chaining blocks.
    x = jnp.transpose(x_nchw, (0, 2, 3, 1))
    n, h, w, cin_x = x.shape
    assert cin_x == cin
    hw = h * w
    x_flat = x.reshape(n, hw, cin).astype(cdt)

    # Generation-aware scoped-VMEM budget.
    itemsize = jnp.dtype(cdt).itemsize
    est = (2 * hw * cin * itemsize                                    # x (dbl buf)
           + 2 * hw * cout * itemsize                                 # out (dbl buf, cdt)
           + 2 * (cin * cfg + 9 * cfg * cfg + cfg * cout) * itemsize  # weights
           + (h + 2) * (w + 2) * cfg * 4                              # halo scratch
           + hw * 9 * cfg * itemsize                                  # patch scratch
           + 4 * hw * max(cfg, cout) * 4)                             # f32 temporaries
    vmem_cap = _vmem_capacity_bytes()
    vmem_limit = int(min(int(0.75 * vmem_cap),
                         max(2 * est, 32 * 1024 * 1024)))

    kernel = functools.partial(_bottleneck_kernel, H=h, W=w)
    out = pl.pallas_call(
        kernel,
        out_shape=jax.ShapeDtypeStruct((n, hw, cout), cdt),
        grid_spec=pltpu.PrefetchScalarGridSpec(
            num_scalar_prefetch=0,
            grid=(n,),
            in_specs=[
                pl.BlockSpec((1, hw, cin), lambda i: (i, 0, 0)),      # x / residual
                pl.BlockSpec((cin, cfg), lambda i: (0, 0)),           # w1 (bn1 folded)
                pl.BlockSpec((9 * cfg, cfg), lambda i: (0, 0)),       # w2 (bn2 folded)
                pl.BlockSpec((cfg, cout), lambda i: (0, 0)),          # w3 (bn3 folded)
                pl.BlockSpec((1, cfg), lambda i: (0, 0)),             # bn1 bias
                pl.BlockSpec((1, cfg), lambda i: (0, 0)),             # bn2 bias
                pl.BlockSpec((1, cout), lambda i: (0, 0)),            # bn3 bias
            ],
            out_specs=pl.BlockSpec((1, hw, cout), lambda i: (i, 0, 0)),
            scratch_shapes=[pltpu.VMEM((h + 2, w + 2, cfg), jnp.float32),
                            pltpu.VMEM((hw, 9 * cfg), cdt)]),
        compiler_params=pltpu.CompilerParams(
            dimension_semantics=("parallel",),   # batch blocks shard over v7x's 2 TCs
            vmem_limit_bytes=vmem_limit),
    )(x_flat, w1, w2, w3, prepped['b1'], prepped['b2'], prepped['b3'])

    out = out.reshape(n, h, w, cout)
    return jnp.transpose(out, (0, 3, 1, 2))              # NHWC -> NCHW (compute dtype)


# -------------------------- params & reference -------------------------------

def init_params(key, inplanes, planes, cfg):
    expansion = 4
    ks = jax.random.split(key, 16)

    def conv_w(k, cout, cin, kh, kw):
        fan_in = cin * kh * kw
        return jax.random.normal(k, (cout, cin, kh, kw), jnp.float32) / math.sqrt(fan_in)

    def bn_p(k, c):
        k1, k2, k3, k4 = jax.random.split(k, 4)
        return dict(
            gamma=jax.random.uniform(k1, (c,), jnp.float32, 0.5, 1.5),
            beta=0.1 * jax.random.normal(k2, (c,), jnp.float32),
            mean=0.1 * jax.random.normal(k3, (c,), jnp.float32),
            var=jax.random.uniform(k4, (c,), jnp.float32, 0.5, 1.5),
        )

    p = {
        'w1_oihw': conv_w(ks[0], cfg, inplanes, 1, 1),
        'w2_oihw': conv_w(ks[1], cfg, cfg, 3, 3),
        'w3_oihw': conv_w(ks[2], planes * expansion, cfg, 1, 1),
    }
    for i, (name, c) in enumerate([('bn1', cfg), ('bn2', cfg),
                                   ('bn3', planes * expansion)]):
        bp = bn_p(ks[3 + i], c)
        for kk, vv in bp.items():
            p[f'{name}_{kk}'] = vv
    return p


def reference_forward(x_nchw, p, stride=1, eps=1e-5):
    """Pure-JAX reference (lax.conv) with identical inference-BN semantics."""
    x = jnp.transpose(x_nchw, (0, 2, 3, 1))

    def conv(h, w_oihw, s, pad):
        w_hwio = jnp.transpose(w_oihw, (2, 3, 1, 0))
        return jax.lax.conv_general_dilated(
            h, w_hwio, window_strides=(s, s), padding=pad,
            dimension_numbers=('NHWC', 'HWIO', 'NHWC'))

    def bn(h, name):
        g, b = p[f'{name}_gamma'], p[f'{name}_beta']
        m, v = p[f'{name}_mean'], p[f'{name}_var']
        return (h - m) / jnp.sqrt(v + eps) * g + b

    h = jax.nn.relu(bn(conv(x, p['w1_oihw'], 1, 'VALID'), 'bn1'))
    h = jax.nn.relu(bn(conv(h, p['w2_oihw'], stride, [(1, 1), (1, 1)]), 'bn2'))
    h = bn(conv(h, p['w3_oihw'], 1, 'VALID'), 'bn3')
    out = jax.nn.relu(h + x)
    return jnp.transpose(out, (0, 3, 1, 2))


# --------------------------------- main ---------------------------------------

if __name__ == "__main__":
    key = jax.random.PRNGKey(0)
    kx, kp = jax.random.split(key)

    # downsample=None requires inplanes == planes * expansion and stride == 1
    N, H, W = 2, 16, 16
    planes, cfg, stride = 16, 32, 1
    inplanes = planes * 4            # 64

    x = jax.random.normal(kx, (N, inplanes, H, W), jnp.float32)
    params = init_params(kp, inplanes, planes, cfg)
    ref = reference_forward(x, params, stride=stride)

    # f32 compute path: validates the fused algorithm (halo, im2col layout,
    # BN-into-weight folding, residual) at tight tolerance.
    out32 = jax.block_until_ready(
        bottleneck_forward(x, prepare_params(params, compute_dtype=jnp.float32),
                           stride=stride))
    assert out32.shape == (N, planes * 4, H, W), out32.shape
    err32 = float(jnp.max(jnp.abs(out32 - ref)))
    assert jnp.allclose(out32, ref, rtol=1e-2, atol=1e-2), f"f32 max_err={err32}"

    # bf16 compute path (default fast path): bf16 operands/output, f32 accumulation.
    out16 = jax.block_until_ready(
        bottleneck_forward(x, prepare_params(params), stride=stride))
    assert out16.shape == (N, planes * 4, H, W), out16.shape
    assert out16.dtype == jnp.bfloat16, out16.dtype
    err16 = float(jnp.max(jnp.abs(out16.astype(jnp.float32) - ref)))
    scale = float(jnp.max(jnp.abs(ref)))
    assert err16 <= 0.05 * scale + 0.1, f"bf16 max_err={err16} (scale={scale})"

    print("KERNEL_OK")
</pallas_src>

<mosaic_0001>
module attributes {stable_mosaic.version = 11 : i64} {
  func.func @_bottleneck_kernel(%arg0: i32, %arg1: memref<1x256x64xf32, #tpu.memory_space<vmem>>, %arg2: memref<64x32xf32, #tpu.memory_space<vmem>>, %arg3: memref<288x32xf32, #tpu.memory_space<vmem>>, %arg4: memref<32x64xf32, #tpu.memory_space<vmem>>, %arg5: memref<1x32xf32, #tpu.memory_space<vmem>>, %arg6: memref<1x32xf32, #tpu.memory_space<vmem>>, %arg7: memref<1x64xf32, #tpu.memory_space<vmem>>, %arg8: memref<1x256x64xf32, #tpu.memory_space<vmem>>, %arg9: memref<18x18x32xf32, #tpu.memory_space<vmem>>, %arg10: memref<256x288xf32, #tpu.memory_space<vmem>>) attributes {dimension_semantics = [#tpu.dimension_semantics<parallel>], iteration_bounds = array<i64: 2>, scalar_prefetch = 0 : i64, scratch_operands = 2 : i64, tpu.core_type = #tpu.core_type<tc>, window_params = [{transform_indices = @transform_0, window_bounds = array<i64: 1, 256, 64>}, {pipeline_mode = #tpu.pipeline_mode<synchronous>, transform_indices = @transform_1, window_bounds = array<i64: 64, 32>}, {pipeline_mode = #tpu.pipeline_mode<synchronous>, transform_indices = @transform_2, window_bounds = array<i64: 288, 32>}, {pipeline_mode = #tpu.pipeline_mode<synchronous>, transform_indices = @transform_3, window_bounds = array<i64: 32, 64>}, {pipeline_mode = #tpu.pipeline_mode<synchronous>, transform_indices = @transform_4, window_bounds = array<i64: 1, 32>}, {pipeline_mode = #tpu.pipeline_mode<synchronous>, transform_indices = @transform_5, window_bounds = array<i64: 1, 32>}, {pipeline_mode = #tpu.pipeline_mode<synchronous>, transform_indices = @transform_6, window_bounds = array<i64: 1, 64>}, {transform_indices = @transform_7, window_bounds = array<i64: 1, 256, 64>}]} {
    %c0 = arith.constant 0 : index
    %c0_0 = arith.constant 0 : index
    %c0_1 = arith.constant 0 : index
    %0 = vector.load %arg1[%c0, %c0_0, %c0_1] : memref<1x256x64xf32, #tpu.memory_space<vmem>>, vector<1x256x64xf32>
    %1 = vector.shape_cast %0 : vector<1x256x64xf32> to vector<256x64xf32>
    %c0_2 = arith.constant 0 : index
    %c0_3 = arith.constant 0 : index
    %2 = vector.load %arg2[%c0_2, %c0_3] : memref<64x32xf32, #tpu.memory_space<vmem>>, vector<64x32xf32>
    %cst = arith.constant dense<0.000000e+00> : vector<256x32xf32>
    %3 = tpu.matmul %1, %2, %cst {dimension_numbers = #tpu.dot_dimension_numbers<[1], [0], [0], [1], [0, 0, 1, 1], [], []>} : vector<256x64xf32>, vector<64x32xf32>, vector<256x32xf32> -> vector<256x32xf32>
    %c0_4 = arith.constant 0 : index
    %c0_5 = arith.constant 0 : index
    %4 = vector.load %arg5[%c0_4, %c0_5] : memref<1x32xf32, #tpu.memory_space<vmem>>, vector<1x32xf32>
    %5 = vector.broadcast %4 : vector<1x32xf32> to vector<256x32xf32>
    %6 = arith.addf %3, %5 : vector<256x32xf32>
    %cst_6 = arith.constant 0.000000e+00 : f32
    %7 = vector.broadcast %cst_6 : f32 to vector<256x32xf32>
    %8 = arith.maximumf %6, %7 : vector<256x32xf32>
    %cst_7 = arith.constant 0.000000e+00 : f32
    %9 = vector.broadcast %cst_7 : f32 to vector<1x18x32xf32>
    %cst_8 = arith.constant 0.000000e+00 : f32
    %10 = vector.broadcast %cst_8 : f32 to vector<16x1x32xf32>
    %c0_9 = arith.constant 0 : index
    %c0_10 = arith.constant 0 : index
    %c0_11 = arith.constant 0 : index
    %11 = vector.load %arg9[%c0_9, %c0_10, %c0_11] : memref<18x18x32xf32, #tpu.memory_space<vmem>>, vector<1x18x32xf32>
    tpu.vector_store %arg9[%c0_9, %c0_10, %c0_11], %9 {strides = array<i32>} : memref<18x18x32xf32, #tpu.memory_space<vmem>>, vector<1x18x32xf32>,
    %c17 = arith.constant 17 : index
    %c0_12 = arith.constant 0 : index
    %c0_13 = arith.constant 0 : index
    %12 = vector.load %arg9[%c17, %c0_12, %c0_13] : memref<18x18x32xf32, #tpu.memory_space<vmem>>, vector<1x18x32xf32>
    tpu.vector_store %arg9[%c17, %c0_12, %c0_13], %9 {strides = array<i32>} : memref<18x18x32xf32, #tpu.memory_space<vmem>>, vector<1x18x32xf32>,
    %c1 = arith.constant 1 : index
    %c0_14 = arith.constant 0 : index
    %c0_15 = arith.constant 0 : index
    %13 = vector.load %arg9[%c1, %c0_14, %c0_15] : memref<18x18x32xf32, #tpu.memory_space<vmem>>, vector<16x1x32xf32>
    tpu.vector_store %arg9[%c1, %c0_14, %c0_15], %10 {strides = array<i32>} : memref<18x18x32xf32, #tpu.memory_space<vmem>>, vector<16x1x32xf32>,
    %c1_16 = arith.constant 1 : index
    %c17_17 = arith.constant 17 : index
    %c0_18 = arith.constant 0 : index
    %14 = vector.load %arg9[%c1_16, %c17_17, %c0_18] : memref<18x18x32xf32, #tpu.memory_space<vmem>>, vector<16x1x32xf32>
    tpu.vector_store %arg9[%c1_16, %c17_17, %c0_18], %10 {strides = array<i32>} : memref<18x18x32xf32, #tpu.memory_space<vmem>>, vector<16x1x32xf32>,
    %15 = vector.shape_cast %8 : vector<256x32xf32> to vector<16x16x32xf32>
    %c1_19 = arith.constant 1 : index
    %c1_20 = arith.constant 1 : index
    %c0_21 = arith.constant 0 : index
    %16 = vector.load %arg9[%c1_19, %c1_20, %c0_21] : memref<18x18x32xf32, #tpu.memory_space<vmem>>, vector<16x16x32xf32>
    tpu.vector_store %arg9[%c1_19, %c1_20, %c0_21], %15 {strides = array<i32>} : memref<18x18x32xf32, #tpu.memory_space<vmem>>, vector<16x16x32xf32>,
    %c0_22 = arith.constant 0 : index
    %c0_23 = arith.constant 0 : index
    %c0_24 = arith.constant 0 : index
    %17 = vector.load %arg9[%c0_22, %c0_23, %c0_24] : memref<18x18x32xf32, #tpu.memory_space<vmem>>, vector<16x16x32xf32>
    %18 = vector.shape_cast %17 : vector<16x16x32xf32> to vector<256x32xf32>
    %c0_25 = arith.constant 0 : index
    %c0_26 = arith.constant 0 : index
    %19 = vector.load %arg10[%c0_25, %c0_26] : memref<256x288xf32, #tpu.memory_space<vmem>>, vector<256x32xf32>
    tpu.vector_store %arg10[%c0_25, %c0_26], %18 {strides = array<i32>} : memref<256x288xf32, #tpu.memory_space<vmem>>, vector<256x32xf32>,
    %c0_27 = arith.constant 0 : index
    %c1_28 = arith.constant 1 : index
    %c0_29 = arith.constant 0 : index
    %20 = vector.load %arg9[%c0_27, %c1_28, %c0_29] : memref<18x18x32xf32, #tpu.memory_space<vmem>>, vector<16x16x32xf32>
    %21 = vector.shape_cast %20 : vector<16x16x32xf32> to vector<256x32xf32>
    %c0_30 = arith.constant 0 : index
    %c32 = arith.constant 32 : index
    %22 = vector.load %arg10[%c0_30, %c32] : memref<256x288xf32, #tpu.memory_space<vmem>>, vector<256x32xf32>
    tpu.vector_store %arg10[%c0_30, %c32], %21 {strides = array<i32>} : memref<256x288xf32, #tpu.memory_space<vmem>>, vector<256x32xf32>,
    %c0_31 = arith.constant 0 : index
    %c2 = arith.constant 2 : index
    %c0_32 = arith.constant 0 : index
    %23 = vector.load %arg9[%c0_31, %c2, %c0_32] : memref<18x18x32xf32, #tpu.memory_space<vmem>>, vector<16x16x32xf32>
    %24 = vector.shape_cast %23 : vector<16x16x32xf32> to vector<256x32xf32>
    %c0_33 = arith.constant 0 : index
    %c64 = arith.constant 64 : index
    %25 = vector.load %arg10[%c0_33, %c64] : memref<256x288xf32, #tpu.memory_space<vmem>>, vector<256x32xf32>
    tpu.vector_store %arg10[%c0_33, %c64], %24 {strides = array<i32>} : memref<256x288xf32, #tpu.memory_space<vmem>>, vector<256x32xf32>,
    %c1_34 = arith.constant 1 : index
    %c0_35 = arith.constant 0 : index
    %c0_36 = arith.constant 0 : index
    %26 = vector.load %arg9[%c1_34, %c0_35, %c0_36] : memref<18x18x32xf32, #tpu.memory_space<vmem>>, vector<16x16x32xf32>
    %27 = vector.shape_cast %26 : vector<16x16x32xf32> to vector<256x32xf32>
    %c0_37 = arith.constant 0 : index
    %c96 = arith.constant 96 : index
    %28 = vector.load %arg10[%c0_37, %c96] : memref<256x288xf32, #tpu.memory_space<vmem>>, vector<256x32xf32>
    tpu.vector_store %arg10[%c0_37, %c96], %27 {strides = array<i32>} : memref<256x288xf32, #tpu.memory_space<vmem>>, vector<256x32xf32>,
    %c1_38 = arith.constant 1 : index
    %c1_39 = arith.constant 1 : index
    %c0_40 = arith.constant 0 : index
    %29 = vector.load %arg9[%c1_38, %c1_39, %c0_40] : memref<18x18x32xf32, #tpu.memory_space<vmem>>, vector<16x16x32xf32>
    %30 = vector.shape_cast %29 : vector<16x16x32xf32> to vector<256x32xf32>
    %c0_41 = arith.constant 0 : index
    %c128 = arith.constant 128 : index
    %31 = vector.load %arg10[%c0_41, %c128] : memref<256x288xf32, #tpu.memory_space<vmem>>, vector<256x32xf32>
    tpu.vector_store %arg10[%c0_41, %c128], %30 {strides = array<i32>} : memref<256x288xf32, #tpu.memory_space<vmem>>, vector<256x32xf32>,
    %c1_42 = arith.constant 1 : index
    %c2_43 = arith.constant 2 : index
    %c0_44 = arith.constant 0 : index
    %32 = vector.load %arg9[%c1_42, %c2_43, %c0_44] : memref<18x18x32xf32, #tpu.memory_space<vmem>>, vector<16x16x32xf32>
    %33 = vector.shape_cast %32 : vector<16x16x32xf32> to vector<256x32xf32>
    %c0_45 = arith.constant 0 : index
    %c160 = arith.constant 160 : index
    %34 = vector.load %arg10[%c0_45, %c160] : memref<256x288xf32, #tpu.memory_space<vmem>>, vector<256x32xf32>
    tpu.vector_store %arg10[%c0_45, %c160], %33 {strides = array<i32>} : memref<256x288xf32, #tpu.memory_space<vmem>>, vector<256x32xf32>,
    %c2_46 = arith.constant 2 : index
    %c0_47 = arith.constant 0 : index
    %c0_48 = arith.constant 0 : index
    %35 = vector.load %arg9[%c2_46, %c0_47, %c0_48] : memref<18x18x32xf32, #tpu.memory_space<vmem>>, vector<16x16x32xf32>
    %36 = vector.shape_cast %35 : vector<16x16x32xf32> to vector<256x32xf32>
    %c0_49 = arith.constant 0 : index
    %c192 = arith.constant 192 : index
    %37 = vector.load %arg10[%c0_49, %c192] : memref<256x288xf32, #tpu.memory_space<vmem>>, vector<256x32xf32>
    tpu.vector_store %arg10[%c0_49, %c192], %36 {strides = array<i32>} : memref<256x288xf32, #tpu.memory_space<vmem>>, vector<256x32xf32>,
    %c2_50 = arith.constant 2 : index
    %c1_51 = arith.constant 1 : index
    %c0_52 = arith.constant 0 : index
    %38 = vector.load %arg9[%c2_50, %c1_51, %c0_52] : memref<18x18x32xf32, #tpu.memory_space<vmem>>, vector<16x16x32xf32>
    %39 = vector.shape_cast %38 : vector<16x16x32xf32> to vector<256x32xf32>
    %c0_53 = arith.constant 0 : index
    %c224 = arith.constant 224 : index
    %40 = vector.load %arg10[%c0_53, %c224] : memref<256x288xf32, #tpu.memory_space<vmem>>, vector<256x32xf32>
    tpu.vector_store %arg10[%c0_53, %c224], %39 {strides = array<i32>} : memref<256x288xf32, #tpu.memory_space<vmem>>, vector<256x32xf32>,
    %c2_54 = arith.constant 2 : index
    %c2_55 = arith.constant 2 : index
    %c0_56 = arith.constant 0 : index
    %41 = vector.load %arg9[%c2_54, %c2_55, %c0_56] : memref<18x18x32xf32, #tpu.memory_space<vmem>>, vector<16x16x32xf32>
    %42 = vector.shape_cast %41 : vector<16x16x32xf32> to vector<256x32xf32>
    %c0_57 = arith.constant 0 : index
    %c256 = arith.constant 256 : index
    %43 = vector.load %arg10[%c0_57, %c256] : memref<256x288xf32, #tpu.memory_space<vmem>>, vector<256x32xf32>
    tpu.vector_store %arg10[%c0_57, %c256], %42 {strides = array<i32>} : memref<256x288xf32, #tpu.memory_space<vmem>>, vector<256x32xf32>,
    %c0_58 = arith.constant 0 : index
    %c0_59 = arith.constant 0 : index
    %44 = vector.load %arg10[%c0_58, %c0_59] : memref<256x288xf32, #tpu.memory_space<vmem>>, vector<256x288xf32>
    %c0_60 = arith.constant 0 : index
    %c0_61 = arith.constant 0 : index
    %45 = vector.load %arg3[%c0_60, %c0_61] : memref<288x32xf32, #tpu.memory_space<vmem>>, vector<288x32xf32>
    %cst_62 = arith.constant dense<0.000000e+00> : vector<256x32xf32>
    %46 = tpu.matmul %44, %45, %cst_62 {dimension_numbers = #tpu.dot_dimension_numbers<[1], [0], [0], [1], [0, 0, 1, 1], [], []>} : vector<256x288xf32>, vector<288x32xf32>, vector<256x32xf32> -> vector<256x32xf32>
    %c0_63 = arith.constant 0 : index
    %c0_64 = arith.constant 0 : index
    %47 = vector.load %arg6[%c0_63, %c0_64] : memref<1x32xf32, #tpu.memory_space<vmem>>, vector<1x32xf32>
    %48 = vector.broadcast %47 : vector<1x32xf32> to vector<256x32xf32>
    %49 = arith.addf %46, %48 : vector<256x32xf32>
    %cst_65 = arith.constant 0.000000e+00 : f32
    %50 = vector.broadcast %cst_65 : f32 to vector<256x32xf32>
    %51 = arith.maximumf %49, %50 : vector<256x32xf32>
    %c0_66 = arith.constant 0 : index
    %c0_67 = arith.constant 0 : index
    %52 = vector.load %arg4[%c0_66, %c0_67] : memref<32x64xf32, #tpu.memory_space<vmem>>, vector<32x64xf32>
    %cst_68 = arith.constant dense<0.000000e+00> : vector<256x64xf32>
    %53 = tpu.matmul %51, %52, %cst_68 {dimension_numbers = #tpu.dot_dimension_numbers<[1], [0], [0], [1], [0, 0, 1, 1], [], []>} : vector<256x32xf32>, vector<32x64xf32>, vector<256x64xf32> -> vector<256x64xf32>
    %c0_69 = arith.constant 0 : index
    %c0_70 = arith.constant 0 : index
    %54 = vector.load %arg7[%c0_69, %c0_70] : memref<1x64xf32, #tpu.memory_space<vmem>>, vector<1x64xf32>
    %55 = vector.broadcast %54 : vector<1x64xf32> to vector<256x64xf32>
    %56 = arith.addf %53, %55 : vector<256x64xf32>
    %57 = arith.addf %56, %1 : vector<256x64xf32>
    %cst_71 = arith.constant 0.000000e+00 : f32
    %58 = vector.broadcast %cst_71 : f32 to vector<256x64xf32>
    %59 = arith.maximumf %57, %58 : vector<256x64xf32>
    %60 = vector.shape_cast %59 : vector<256x64xf32> to vector<1x256x64xf32>
    %c0_72 = arith.constant 0 : index
    %c0_73 = arith.constant 0 : index
    %c0_74 = arith.constant 0 : index
    %61 = vector.load %arg8[%c0_72, %c0_73, %c0_74] : memref<1x256x64xf32, #tpu.memory_space<vmem>>, vector<1x256x64xf32>
    tpu.vector_store %arg8[%c0_72, %c0_73, %c0_74], %60 {strides = array<i32>} : memref<1x256x64xf32, #tpu.memory_space<vmem>>, vector<1x256x64xf32>,
    return
  }
  func.func @transform_0(%arg0: i32) -> (i32, i32, i32) {
    %c0_i32 = arith.constant 0 : i32
    %c0_i32_0 = arith.constant 0 : i32
    %c0_i32_1 = arith.constant 0 : i32
    return %arg0, %c0_i32, %c0_i32_0 : i32, i32, i32
  }
  func.func @transform_1(%arg0: i32) -> (i32, i32) {
    %c0_i32 = arith.constant 0 : i32
    %c0_i32_0 = arith.constant 0 : i32
    %c0_i32_1 = arith.constant 0 : i32
    return %c0_i32, %c0_i32_0 : i32, i32
  }
  func.func @transform_2(%arg0: i32) -> (i32, i32) {
    %c0_i32 = arith.constant 0 : i32
    %c0_i32_0 = arith.constant 0 : i32
    %c0_i32_1 = arith.constant 0 : i32
    return %c0_i32, %c0_i32_0 : i32, i32
  }
  func.func @transform_3(%arg0: i32) -> (i32, i32) {
    %c0_i32 = arith.constant 0 : i32
    %c0_i32_0 = arith.constant 0 : i32
    %c0_i32_1 = arith.constant 0 : i32
    return %c0_i32, %c0_i32_0 : i32, i32
  }
  func.func @transform_4(%arg0: i32) -> (i32, i32) {
    %c0_i32 = arith.constant 0 : i32
    %c0_i32_0 = arith.constant 0 : i32
    %c0_i32_1 = arith.constant 0 : i32
    return %c0_i32, %c0_i32_0 : i32, i32
  }
  func.func @transform_5(%arg0: i32) -> (i32, i32) {
    %c0_i32 = arith.constant 0 : i32
    %c0_i32_0 = arith.constant 0 : i32
    %c0_i32_1 = arith.constant 0 : i32
    return %c0_i32, %c0_i32_0 : i32, i32
  }
  func.func @transform_6(%arg0: i32) -> (i32, i32) {
    %c0_i32 = arith.constant 0 : i32
    %c0_i32_0 = arith.constant 0 : i32
    %c0_i32_1 = arith.constant 0 : i32
    return %c0_i32, %c0_i32_0 : i32, i32
  }
  func.func @transform_7(%arg0: i32) -> (i32, i32, i32) {
    %c0_i32 = arith.constant 0 : i32
    %c0_i32_0 = arith.constant 0 : i32
    %c0_i32_1 = arith.constant 0 : i32
    return %arg0, %c0_i32, %c0_i32_0 : i32, i32, i32
  }
}

</mosaic_0001>

<llo_original>
// kernel: tpu_custom_call.1
$region0: #{tpu_custom_call.1}
  #allocation0 [shape = 'u32[]', space=smem, size = 0x4, offset = 0x4, fixed_abs, tag = 'smem constant byte address 0x4 - core index']
  #allocation1 [shape = 'u32[144,128]{1,0:T(1,128)}', space=vmem, size = 0x12000, scoped, tag = 'internal scratch']
  #allocation2 [shape = 'f32[18,18,32]{2,1,0:T(8,128)}', space=vmem, size = 0x36000, scoped, tag = 'scratch operand']
  #allocation3 [shape = 'f32[256,288]{1,0:T(8,128)}', space=vmem, size = 0x60000, scoped, tag = 'scratch operand']
  %s0 = inlined_call_operand.vmem [shape: f32[2,256,64], index: 0, kind: input, shape index: {}]
  %s1 = inlined_call_operand.vmem [shape: f32[64,32], index: 1, kind: input, shape index: {}]
  %s2 = inlined_call_operand.vmem [shape: f32[288,32], index: 2, kind: input, shape index: {}]
  %s3 = inlined_call_operand.vmem [shape: f32[32,64], index: 3, kind: input, shape index: {}]
  %s4 = inlined_call_operand.vmem [shape: f32[1,32], index: 4, kind: input, shape index: {}]
  %s5 = inlined_call_operand.vmem [shape: f32[1,32], index: 5, kind: input, shape index: {}]
  %s6 = inlined_call_operand.vmem [shape: f32[1,64], index: 6, kind: input, shape index: {}]
  %s7 = inlined_call_operand.vmem [shape: f32[2,256,64], index: 7, kind: output, shape index: {}]
  %s8 = sld [smem:[#allocation0]]
  $region61: #{tpu_custom_call.1} parent=0
    _
  %s10 = ssub.s32 1, %s8
  %s11 = scalar_select 0, %s10, %s8
  loop: start=0, step=1, limit=4
  $region2: #{tpu_custom_call.1} parent=0 // loop_pre_header
    _
  $region3: #{tpu_custom_call.1} parent=0 // loop_header
    %s13 = sphi 0, %s17
    %p14 = scmp.ge.s32.totalorder %s13, 4
    %s23 = sphi 0, %s25
    %s26 = sphi 0, %s23
    %s27 = sphi 0, %s26
    %s43 = sphi 0, %s27
    %s47 = sphi 0, %s47
    %s49 = sphi 0, %s47
    %s50 = sphi 0, %s49
    %s64 = sphi 0, %s50
    %s68 = sphi 0, %s68
    %s70 = sphi 0, %s68
    %s71 = sphi 0, %s70
    %s85 = sphi 0, %s71
    %s89 = sphi 0, %s89
    %s91 = sphi 0, %s89
    %s92 = sphi 0, %s91
    %s106 = sphi 0, %s92
    %s110 = sphi 0, %s110
    %s112 = sphi 0, %s110
    %s113 = sphi 0, %s112
    %s127 = sphi 0, %s113
    %s131 = sphi 0, %s131
    %s133 = sphi 0, %s131
    %s134 = sphi 0, %s133
    %s148 = sphi 0, %s134
    %s152 = sphi 0, %s152
    %s154 = sphi 0, %s152
    %s155 = sphi 0, %s154
    %s169 = sphi 0, %s155
    %s175 = sphi 0, %s177
    %s178 = sphi 0, %s175
    %s179 = sphi 0, %s178
    %s195 = sphi 0, %s179
  $region4: #{tpu_custom_call.1} parent=0 // loop_header_branch
    %16 = sbr.rel (%p14) target = $region8
  $region5: #{tpu_custom_call.1} parent=0 // loop_body
    %s18 = ssub.s32 %s13, 1
    %s19 = ssub.s32 %s13, 2
    %s20 = sadd.s32 %s13, 1
    %s21 = ssub.s32 %s13, %s20
    %p22 = scmp.eq.s32.totalorder %s21, 0
    %s24 = sadd.s32 %s23, 1
    %s25 = scalar_select %p22, %s23, %s24
    %p28 = pneg %p22
    %p29 = scmp.eq.s32.totalorder %s13, 1
    %p30 = por %p28, %p29
    %p31 = scmp.ne.s32.totalorder %s23, %s26
    %p32 = scmp.eq.s32.totalorder %s13, 0
    %p33 = por %p31, %p32
    %p34 = scmp.ne.s32.totalorder %s23, %s26
    %p35 = scmp.eq.s32.totalorder %s18, 1
    %p36 = por %p34, %p35
    %p37 = scmp.ne.s32.totalorder %s26, %s27
    %p38 = scmp.eq.s32.totalorder %s18, 0
    %p39 = por %p37, %p38
    %p40 = scmp.ne.s32.totalorder %s26, %s27
    %p41 = scmp.eq.s32.totalorder %s19, 1
    %p42 = por %p40, %p41
    %p44 = scmp.ne.s32.totalorder %s27, %s43
    %p45 = scmp.eq.s32.totalorder %s19, 0
    %p46 = por %p44, %p45
    %s48 = sadd.s32 %s47, 1
    %p51 = scmp.eq.s32.totalorder %s13, 1
    %p52 = scmp.ne.s32.totalorder %s47, %s49
    %p53 = scmp.eq.s32.totalorder %s13, 0
    %p54 = por %p52, %p53
    %p55 = scmp.ne.s32.totalorder %s47, %s49
    %p56 = scmp.eq.s32.totalorder %s18, 1
    %p57 = por %p55, %p56
    %p58 = scmp.ne.s32.totalorder %s49, %s50
    %p59 = scmp.eq.s32.totalorder %s18, 0
    %p60 = por %p58, %p59
    %p61 = scmp.ne.s32.totalorder %s49, %s50
    %p62 = scmp.eq.s32.totalorder %s19, 1
    %p63 = por %p61, %p62
    %p65 = scmp.ne.s32.totalorder %s50, %s64
    %p66 = scmp.eq.s32.totalorder %s19, 0
    %p67 = por %p65, %p66
    %s69 = sadd.s32 %s68, 1
    %p72 = scmp.eq.s32.totalorder %s13, 1
    %p73 = scmp.ne.s32.totalorder %s68, %s70
    %p74 = scmp.eq.s32.totalorder %s13, 0
    %p75 = por %p73, %p74
    %p76 = scmp.ne.s32.totalorder %s68, %s70
    %p77 = scmp.eq.s32.totalorder %s18, 1
    %p78 = por %p76, %p77
    %p79 = scmp.ne.s32.totalorder %s70, %s71
    %p80 = scmp.eq.s32.totalorder %s18, 0
    %p81 = por %p79, %p80
    %p82 = scmp.ne.s32.totalorder %s70, %s71
    %p83 = scmp.eq.s32.totalorder %s19, 1
    %p84 = por %p82, %p83
    %p86 = scmp.ne.s32.totalorder %s71, %s85
    %p87 = scmp.eq.s32.totalorder %s19, 0
    %p88 = por %p86, %p87
    %s90 = sadd.s32 %s89, 1
    %p93 = scmp.eq.s32.totalorder %s13, 1
    %p94 = scmp.ne.s32.totalorder %s89, %s91
    %p95 = scmp.eq.s32.totalorder %s13, 0
    %p96 = por %p94, %p95
    %p97 = scmp.ne.s32.totalorder %s89, %s91
    %p98 = scmp.eq.s32.totalorder %s18, 1
    %p99 = por %p97, %p98
    %p100 = scmp.ne.s32.totalorder %s91, %s92
    %p101 = scmp.eq.s32.totalorder %s18, 0
    %p102 = por %p100, %p101
    %p103 = scmp.ne.s32.totalorder %s91, %s92
    %p104 = scmp.eq.s32.totalorder %s19, 1
    %p105 = por %p103, %p104
    %p107 = scmp.ne.s32.totalorder %s92, %s106
    %p108 = scmp.eq.s32.totalorder %s19, 0
    %p109 = por %p107, %p108
    %s111 = sadd.s32 %s110, 1
    %p114 = scmp.eq.s32.totalorder %s13, 1
    %p115 = scmp.ne.s32.totalorder %s110, %s112
    %p116 = scmp.eq.s32.totalorder %s13, 0
    %p117 = por %p115, %p116
    %p118 = scmp.ne.s32.totalorder %s110, %s112
    %p119 = scmp.eq.s32.totalorder %s18, 1
    %p120 = por %p118, %p119
    %p121 = scmp.ne.s32.totalorder %s112, %s113
    %p122 = scmp.eq.s32.totalorder %s18, 0
    %p123 = por %p121, %p122
    %p124 = scmp.ne.s32.totalorder %s112, %s113
    %p125 = scmp.eq.s32.totalorder %s19, 1
    %p126 = por %p124, %p125
    %p128 = scmp.ne.s32.totalorder %s113, %s127
    %p129 = scmp.eq.s32.totalorder %s19, 0
    %p130 = por %p128, %p129
    %s132 = sadd.s32 %s131, 1
    %p135 = scmp.eq.s32.totalorder %s13, 1
    %p136 = scmp.ne.s32.totalorder %s131, %s133
    %p137 = scmp.eq.s32.totalorder %s13, 0
    %p138 = por %p136, %p137
    %p139 = scmp.ne.s32.totalorder %s131, %s133
    %p140 = scmp.eq.s32.totalorder %s18, 1
    %p141 = por %p139, %p140
    %p142 = scmp.ne.s32.totalorder %s133, %s134
    %p143 = scmp.eq.s32.totalorder %s18, 0
    %p144 = por %p142, %p143
    %p145 = scmp.ne.s32.totalorder %s133, %s134
    %p146 = scmp.eq.s32.totalorder %s19, 1
    %p147 = por %p145, %p146
    %p149 = scmp.ne.s32.totalorder %s134, %s148
    %p150 = scmp.eq.s32.totalorder %s19, 0
    %p151 = por %p149, %p150
    %s153 = sadd.s32 %s152, 1
    %p156 = scmp.eq.s32.totalorder %s13, 1
    %p157 = scmp.ne.s32.totalorder %s152, %s154
    %p158 = scmp.eq.s32.totalorder %s13, 0
    %p159 = por %p157, %p158
    %p160 = scmp.ne.s32.totalorder %s152, %s154
    %p161 = scmp.eq.s32.totalorder %s18, 1
    %p162 = por %p160, %p161
    %p163 = scmp.ne.s32.totalorder %s154, %s155
    %p164 = scmp.eq.s32.totalorder %s18, 0
    %p165 = por %p163, %p164
    %p166 = scmp.ne.s32.totalorder %s154, %s155
    %p167 = scmp.eq.s32.totalorder %s19, 1
    %p168 = por %p166, %p167
    %p170 = scmp.ne.s32.totalorder %s155, %s169
    %p171 = scmp.eq.s32.totalorder %s19, 0
    %p172 = por %p170, %p171
    %s173 = ssub.s32 %s13, %s20
    %p174 = scmp.eq.s32.totalorder %s173, 0
    %s176 = sadd.s32 %s175, 1
    %s177 = scalar_select %p174, %s175, %s176
    %p180 = pneg %p174
    %p181 = scmp.eq.s32.totalorder %s13, 1
    %p182 = por %p180, %p181
    %p183 = scmp.ne.s32.totalorder %s175, %s178
    %p184 = scmp.eq.s32.totalorder %s13, 0
    %p185 = por %p183, %p184
    %p186 = scmp.ne.s32.totalorder %s175, %s178
    %p187 = scmp.eq.s32.totalorder %s18, 1
    %p188 = por %p186, %p187
    %p189 = scmp.ne.s32.totalorder %s178, %s179
    %p190 = scmp.eq.s32.totalorder %s18, 0
    %p191 = por %p189, %p190
    %p192 = scmp.ne.s32.totalorder %s178, %s179
    %p193 = scmp.eq.s32.totalorder %s19, 1
    %p194 = por %p192, %p193
    %p196 = scmp.ne.s32.totalorder %s179, %s195
    %p197 = scmp.eq.s32.totalorder %s19, 0
    %p198 = por %p196, %p197
    %p199 = scmp.le.s32.totalorder 1, %s13
    %p200 = scmp.lt.s32.totalorder %s13, 3
    %p201 = pnand %p199, %p200
    %p202 = pneg %p201
    // Predicated region
    $region9: #{tpu_custom_call.1} parent=5 // pred_check
      _
    $region10: #{tpu_custom_call.1} parent=5 // pred_check_branch
      %204 = sbr.rel (%p201) target = $region12
    $region11: #{tpu_custom_call.1} parent=5 // pred_region
      %s205 = ssub.s32 %s13, 1
      // Predicated region
      $region13: #{tpu_custom_call.1} parent=11 // pred_check
        %p206 = pneg %p60
      $region14: #{tpu_custom_call.1} parent=11 // pred_check_branch
        %208 = sbr.rel (%p206) target = $region16
      $region15: #{tpu_custom_call.1} parent=11 // pred_region
        _
      $region16: #{tpu_custom_call.1} parent=11 // pred_fallthru
        _
      // Predicated region
      $region17: #{tpu_custom_call.1} parent=11 // pred_check
        %p209 = pneg %p81
      $region18: #{tpu_custom_call.1} parent=11 // pred_check_branch
        %211 = sbr.rel (%p209) target = $region20
      $region19: #{tpu_custom_call.1} parent=11 // pred_region
        _
      $region20: #{tpu_custom_call.1} parent=11 // pred_fallthru
        _
      // Predicated region
      $region21: #{tpu_custom_call.1} parent=11 // pred_check
        %p212 = pneg %p102
      $region22: #{tpu_custom_call.1} parent=11 // pred_check_branch
        %214 = sbr.rel (%p212) target = $region24
      $region23: #{tpu_custom_call.1} parent=11 // pred_region
        _
      $region24: #{tpu_custom_call.1} parent=11 // pred_fallthru
        _
      // Predicated region
      $region25: #{tpu_custom_call.1} parent=11 // pred_check
        %p215 = pneg %p123
      $region26: #{tpu_custom_call.1} parent=11 // pred_check_branch
        %217 = sbr.rel (%p215) target = $region28
      $region27: #{tpu_custom_call.1} parent=11 // pred_region
        _
      $region28: #{tpu_custom_call.1} parent=11 // pred_fallthru
        _
      // Predicated region
      $region29: #{tpu_custom_call.1} parent=11 // pred_check
        %p218 = pneg %p144
      $region30: #{tpu_custom_call.1} parent=11 // pred_check_branch
        %220 = sbr.rel (%p218) target = $region32
      $region31: #{tpu_custom_call.1} parent=11 // pred_region
        _
      $region32: #{tpu_custom_call.1} parent=11 // pred_fallthru
        _
      // Predicated region
      $region33: #{tpu_custom_call.1} parent=11 // pred_check
        %p221 = pneg %p165
      $region34: #{tpu_custom_call.1} parent=11 // pred_check_branch
        %223 = sbr.rel (%p221) target = $region36
      $region35: #{tpu_custom_call.1} parent=11 // pred_region
        _
      $region36: #{tpu_custom_call.1} parent=11 // pred_fallthru
        _
    $region12: #{tpu_custom_call.1} parent=5 // pred_fallthru
      _
    %p224 = scmp.lt.s32.totalorder %s13, 2
    // Predicated region
    $region37: #{tpu_custom_call.1} parent=5 // pred_check
      %p225 = pneg %p224
    $region38: #{tpu_custom_call.1} parent=5 // pred_check_branch
      %227 = sbr.rel (%p225) target = $region40
    $region39: #{tpu_custom_call.1} parent=5 // pred_region
      // Predicated region
      $region41: #{tpu_custom_call.1} parent=39 // pred_check
        %p228 = pneg %p33
      $region42: #{tpu_custom_call.1} parent=39 // pred_check_branch
        %230 = sbr.rel (%p228) target = $region44
      $region43: #{tpu_custom_call.1} parent=39 // pred_region
        %p231 = scmp.lt.s32.totalorder %s13, 1
        %s232 = scalar_select %p231, %s13, 1
        %s233 = smul.addr %s232, 32
        %s234 = smul.addr %s233, 8
        %s235 = scalar_lea.vmem %s0, %s234
      $region44: #{tpu_custom_call.1} parent=39 // pred_fallthru
        _
    $region40: #{tpu_custom_call.1} parent=5 // pred_fallthru
      _
    %p236 = scmp.le.s32.totalorder 1, %s13
    %p237 = scmp.lt.s32.totalorder %s13, 3
    %p238 = pnand %p236, %p237
    %p239 = pneg %p238
    // Predicated region
    $region45: #{tpu_custom_call.1} parent=5 // pred_check
      _
    $region46: #{tpu_custom_call.1} parent=5 // pred_check_branch
      %241 = sbr.rel (%p238) target = $region48
    $region47: #{tpu_custom_call.1} parent=5 // pred_region
      %s242 = ssub.s32 %s13, 1
      %p243 = scmp.lt.s32.totalorder %s18, 1
      %s244 = scalar_select %p243, %s18, 1
      %s245 = smul.addr %s244, 32
      %s246 = smul.addr %s245, 8
      %s247 = scalar_lea.vmem %s0, %s246
      %p248 = pneg %p39
      %p249 = pneg %p36
      %p250 = pneg %p60
      %p251 = pneg %p57
      %p252 = pneg %p81
      %p253 = pneg %p78
      %p254 = pneg %p102
      %p255 = pneg %p99
      %p256 = pneg %p123
      %p257 = pneg %p120
      %p258 = pneg %p144
      %p259 = pneg %p141
      %p260 = pneg %p165
      %p261 = pneg %p162
      %p262 = pneg %p191
      %p263 = pneg %p188
      %p264 = scmp.lt.s32.totalorder %s18, 1
      %s265 = scalar_select %p264, %s18, 1
      %s266 = smul.addr %s265, 32
      %s267 = smul.addr %s266, 8
      %s268 = scalar_lea.vmem %s7, %s267
      %p269 = scmp.lt.s32.totalorder %s18, 1
      %s270 = scalar_select %p269, %s18, 1
      %s271 = smul.addr %s270, 32
      %s272 = smul.addr %s271, 8
      %s273 = scalar_lea.vmem %s0, %s272
      %p274 = scmp.lt.s32.totalorder %s18, 1
      %s275 = scalar_select %p274, %s18, 1
      %s276 = smul.addr %s275, 32
      %s277 = smul.addr %s276, 8
      %s278 = scalar_lea.vmem %s7, %s277
      %v279 = vld [vmem:[%s273] sm:$0xff]
      %v280 = vld [vmem:[%s273 + $0x8] sm:$0xff]
      %v281 = vld [vmem:[%s273 + $0x10] sm:$0xff]
      %v282 = vld [vmem:[%s273 + $0x18] sm:$0xff]
      %v283 = vld [vmem:[%s273 + $0x20] sm:$0xff]
      %v284 = vld [vmem:[%s273 + $0x28] sm:$0xff]
      %v285 = vld [vmem:[%s273 + $0x30] sm:$0xff]
      %v286 = vld [vmem:[%s273 + $0x38] sm:$0xff]
      %v287 = vld [vmem:[%s273 + $0x40] sm:$0xff]
      %v288 = vld [vmem:[%s273 + $0x48] sm:$0xff]
      %v289 = vld [vmem:[%s273 + $0x50] sm:$0xff]
      %v290 = vld [vmem:[%s273 + $0x58] sm:$0xff]
      %v291 = vld [vmem:[%s273 + $0x60] sm:$0xff]
      %v292 = vld [vmem:[%s273 + $0x68] sm:$0xff]
      %v293 = vld [vmem:[%s273 + $0x70] sm:$0xff]
      %v294 = vld [vmem:[%s273 + $0x78] sm:$0xff]
      %v295 = vld [vmem:[%s273 + $0x80] sm:$0xff]
      %v296 = vld [vmem:[%s273 + $0x88] sm:$0xff]
      %v297 = vld [vmem:[%s273 + $0x90] sm:$0xff]
      %v298 = vld [vmem:[%s273 + $0x98] sm:$0xff]
      %v299 = vld [vmem:[%s273 + $0xa0] sm:$0xff]
      %v300 = vld [vmem:[%s273 + $0xa8] sm:$0xff]
      %v301 = vld [vmem:[%s273 + $0xb0] sm:$0xff]
      %v302 = vld [vmem:[%s273 + $0xb8] sm:$0xff]
      %v303 = vld [vmem:[%s273 + $0xc0] sm:$0xff]
      %v304 = vld [vmem:[%s273 + $0xc8] sm:$0xff]
      %v305 = vld [vmem:[%s273 + $0xd0] sm:$0xff]
      %v306 = vld [vmem:[%s273 + $0xd8] sm:$0xff]
      %v307 = vld [vmem:[%s273 + $0xe0] sm:$0xff]
      %v308 = vld [vmem:[%s273 + $0xe8] sm:$0xff]
      %v309 = vld [vmem:[%s273 + $0xf0] sm:$0xff]
      %v310 = vld [vmem:[%s273 + $0xf8] sm:$0xff]
      %v311 = vld [vmem:[%s1] sm:$0xff]
      %v312 = vld [vmem:[%s1 + $0x8] sm:$0xff]
      %v313 = vld [vmem:[%s1 + $0x10] sm:$0xff]
      %v314 = vld [vmem:[%s1 + $0x18] sm:$0xff]
      %v315 = vld [vmem:[%s1 + $0x20] sm:$0xff]
      %v316 = vld [vmem:[%s1 + $0x28] sm:$0xff]
      %v317 = vld [vmem:[%s1 + $0x30] sm:$0xff]
      %v318 = vld [vmem:[%s1 + $0x38] sm:$0xff]
      %v319 = vld [vmem:[%s4] sm:$0x1]
      %v321 = vlaneseq
      %v322 = vshrl.u32 %v321, 7
      %v323 = vsub.s32 0, %v322
      %v324 = vrot.slane %v319, %v323
      %vm326 = vcmask 523264
      %v328 = vsel %vm326, %v279, 0
      %v331 = vsel %vm326, %v280, 0
      %v334 = vsel %vm326, %v281, 0
      %v337 = vsel %vm326, %v282, 0
      %v340 = vsel %vm326, %v283, 0
      %v343 = vsel %vm326, %v284, 0
      %v346 = vsel %vm326, %v285, 0
      %v349 = vsel %vm326, %v286, 0
      %v352 = vsel %vm326, %v287, 0
      %v355 = vsel %vm326, %v288, 0
      %v358 = vsel %vm326, %v289, 0
      %v361 = vsel %vm326, %v290, 0
      %v364 = vsel %vm326, %v291, 0
      %v367 = vsel %vm326, %v292, 0
      %v370 = vsel %vm326, %v293, 0
      %v373 = vsel %vm326, %v294, 0
      %v376 = vsel %vm326, %v295, 0
      %v379 = vsel %vm326, %v296, 0
      %v382 = vsel %vm326, %v297, 0
      %v385 = vsel %vm326, %v298, 0
      %v388 = vsel %vm326, %v299, 0
      %v391 = vsel %vm326, %v300, 0
      %v394 = vsel %vm326, %v301, 0
      %v397 = vsel %vm326, %v302, 0
      %v400 = vsel %vm326, %v303, 0
      %v403 = vsel %vm326, %v304, 0
      %v406 = vsel %vm326, %v305, 0
      %v409 = vsel %vm326, %v306, 0
      %v412 = vsel %vm326, %v307, 0
      %v415 = vsel %vm326, %v308, 0
      %v418 = vsel %vm326, %v309, 0
      %v421 = vsel %vm326, %v310, 0
      %423 = vmatprep.subr.mxu0 0.0
      %424 = vmatpush1.msra.mxu0 0.0
      %425 = vmatprep.subr.mxu0 0.0
      %426 = vmatpush1.msra.mxu0 0.0
      %427 = vmatprep.subr.mxu0 0.0
      %428 = vmatpush1.msra.mxu0 0.0
      %429 = vmatprep.subr.mxu0 0.0
      %430 = vmatpush1.msra.mxu0 0.0
      %431 = vmatprep.subr.mxu0 0.0
      %432 = vmatpush1.msra.mxu0 0.0
      %433 = vmatprep.subr.mxu0 0.0
      %434 = vmatpush1.msra.mxu0 0.0
      %435 = vmatprep.subr.mxu0 0.0
      %436 = vmatpush1.msra.mxu0 0.0
      %437 = vmatprep.subr.mxu0 0.0
      %438 = vmatpush1.msra.mxu0 0.0
      %439 = vmatprep.subr.mxu0 0.0
      %440 = vmatpush1.msra.mxu0 %v318
      %441 = vmatprep.subr.mxu0 0.0
      %442 = vmatpush1.msra.mxu0 %v317
      %443 = vmatprep.subr.mxu0 0.0
      %444 = vmatpush1.msra.mxu0 %v316
      %445 = vmatprep.subr.mxu0 0.0
      %446 = vmatpush1.msra.mxu0 %v315
      %447 = vmatprep.subr.mxu0 0.0
      %448 = vmatpush1.msra.mxu0 %v314
      %449 = vmatprep.subr.mxu0 0.0
      %450 = vmatpush1.msra.mxu0 %v313
      %451 = vmatprep.subr.mxu0 0.0
      %452 = vmatpush1.msra.mxu0 %v312
      %453 = vmatprep.subr.mxu0 0.0
      %454 = vmatpush1.msra.mxu0 %v311
      %455 = vmatprep.subr.mxu0 0.0
      %456 = vmatpush2.msra.mxu0 0.0
      %457 = vmatprep.subr.mxu0 0.0
      %458 = vmatpush2.msra.mxu0 0.0
      %459 = vmatprep.subr.mxu0 0.0
      %460 = vmatpush2.msra.mxu0 0.0
      %461 = vmatprep.subr.mxu0 0.0
      %462 = vmatpush2.msra.mxu0 0.0
      %463 = vmatprep.subr.mxu0 0.0
      %464 = vmatpush2.msra.mxu0 0.0
      %465 = vmatprep.subr.mxu0 0.0
      %466 = vmatpush2.msra.mxu0 0.0
      %467 = vmatprep.subr.mxu0 0.0
      %468 = vmatpush2.msra.mxu0 0.0
      %469 = vmatprep.subr.mxu0 0.0
      %470 = vmatpush2.msra.mxu0 0.0
      %471 = vmatprep.subr.mxu0 0.0
      %472 = vmatpush2.msra.mxu0 0.0
      %473 = vmatprep.subr.mxu0 0.0
      %474 = vmatpush2.msra.mxu0 0.0
      %475 = vmatprep.subr.mxu0 0.0
      %476 = vmatpush2.msra.mxu0 0.0
      %477 = vmatprep.subr.mxu0 0.0
      %478 = vmatpush2.msra.mxu0 0.0
      %479 = vmatprep.subr.mxu0 0.0
      %480 = vmatpush2.msra.mxu0 0.0
      %481 = vmatprep.subr.mxu0 0.0
      %482 = vmatpush2.msra.mxu0 0.0
      %483 = vmatprep.subr.mxu0 0.0
      %484 = vmatpush2.msra.mxu0 0.0
      %485 = vmatprep.subr.mxu0 0.0
      %486 = vmatpush2.msra.mxu0 0.0
      %487 = vmatprep.mubr.f32.mxu0 0.0
      %488 = vmatmul.mubr.f32.gmra.mxu0 %v328
      %v489 = vpop.f32.mrf.mxu0
      %v490 = vadd.f32 %v324, %v489
      %v491 = vpop.f32.mrf.mxu0
      %492 = vmatprep.mubr.f32.mxu0 0.0
      %493 = vmatmul.mubr.f32.gmra.mxu0 %v331
      %v494 = vpop.f32.mrf.mxu0
      %v495 = vadd.f32 %v324, %v494
      %v496 = vpop.f32.mrf.mxu0
      %497 = vmatprep.mubr.f32.mxu0 0.0
      %498 = vmatmul.mubr.f32.gmra.mxu0 %v334
      %v499 = vpop.f32.mrf.mxu0
      %v500 = vadd.f32 %v324, %v499
      %v501 = vpop.f32.mrf.mxu0
      %502 = vmatprep.mubr.f32.mxu0 0.0
      %503 = vmatmul.mubr.f32.gmra.mxu0 %v337
      %v504 = vpop.f32.mrf.mxu0
      %v505 = vadd.f32 %v324, %v504
      %v506 = vpop.f32.mrf.mxu0
      %507 = vmatprep.mubr.f32.mxu0 0.0
      %508 = vmatmul.mubr.f32.gmra.mxu0 %v340
      %v509 = vpop.f32.mrf.mxu0
      %v510 = vadd.f32 %v324, %v509
      %v511 = vpop.f32.mrf.mxu0
      %512 = vmatprep.mubr.f32.mxu0 0.0
      %513 = vmatmul.mubr.f32.gmra.mxu0 %v343
      %v514 = vpop.f32.mrf.mxu0
      %v515 = vadd.f32 %v324, %v514
      %v516 = vpop.f32.mrf.mxu0
      %517 = vmatprep.mubr.f32.mxu0 0.0
      %518 = vmatmul.mubr.f32.gmra.mxu0 %v346
      %v519 = vpop.f32.mrf.mxu0
      %v520 = vadd.f32 %v324, %v519
      %v521 = vpop.f32.mrf.mxu0
      %522 = vmatprep.mubr.f32.mxu0 0.0
      %523 = vmatmul.mubr.f32.gmra.mxu0 %v349
      %v524 = vpop.f32.mrf.mxu0
      %v525 = vadd.f32 %v324, %v524
      %v526 = vpop.f32.mrf.mxu0
      %527 = vmatprep.mubr.f32.mxu0 0.0
      %528 = vmatmul.mubr.f32.gmra.mxu0 %v352
      %v529 = vpop.f32.mrf.mxu0
      %v530 = vadd.f32 %v324, %v529
      %v531 = vpop.f32.mrf.mxu0
      %532 = vmatprep.mubr.f32.mxu0 0.0
      %533 = vmatmul.mubr.f32.gmra.mxu0 %v355
      %v534 = vpop.f32.mrf.mxu0
      %v535 = vadd.f32 %v324, %v534
      %v536 = vpop.f32.mrf.mxu0
      %537 = vmatprep.mubr.f32.mxu0 0.0
      %538 = vmatmul.mubr.f32.gmra.mxu0 %v358
      %v539 = vpop.f32.mrf.mxu0
      %v540 = vadd.f32 %v324, %v539
      %v541 = vpop.f32.mrf.mxu0
      %542 = vmatprep.mubr.f32.mxu0 0.0
      %543 = vmatmul.mubr.f32.gmra.mxu0 %v361
      %v544 = vpop.f32.mrf.mxu0
      %v545 = vadd.f32 %v324, %v544
      %v546 = vpop.f32.mrf.mxu0
      %547 = vmatprep.mubr.f32.mxu0 0.0
      %548 = vmatmul.mubr.f32.gmra.mxu0 %v364
      %v549 = vpop.f32.mrf.mxu0
      %v550 = vadd.f32 %v324, %v549
      %v551 = vpop.f32.mrf.mxu0
      %552 = vmatprep.mubr.f32.mxu0 0.0
      %553 = vmatmul.mubr.f32.gmra.mxu0 %v367
      %v554 = vpop.f32.mrf.mxu0
      %v555 = vadd.f32 %v324, %v554
      %v556 = vpop.f32.mrf.mxu0
      %557 = vmatprep.mubr.f32.mxu0 0.0
      %558 = vmatmul.mubr.f32.gmra.mxu0 %v370
      %v559 = vpop.f32.mrf.mxu0
      %v560 = vadd.f32 %v324, %v559
      %v561 = vpop.f32.mrf.mxu0
      %562 = vmatprep.mubr.f32.mxu0 0.0
      %563 = vmatmul.mubr.f32.gmra.mxu0 %v373
      %v564 = vpop.f32.mrf.mxu0
      %v565 = vadd.f32 %v324, %v564
      %v566 = vpop.f32.mrf.mxu0
      %567 = vmatprep.mubr.f32.mxu0 0.0
      %568 = vmatmul.mubr.f32.gmra.mxu0 %v376
      %v569 = vpop.f32.mrf.mxu0
      %v570 = vadd.f32 %v324, %v569
      %v571 = vpop.f32.mrf.mxu0
      %572 = vmatprep.mubr.f32.mxu0 0.0
      %573 = vmatmul.mubr.f32.gmra.mxu0 %v379
      %v574 = vpop.f32.mrf.mxu0
      %v575 = vadd.f32 %v324, %v574
      %v576 = vpop.f32.mrf.mxu0
      %577 = vmatprep.mubr.f32.mxu0 0.0
      %578 = vmatmul.mubr.f32.gmra.mxu0 %v382
      %v579 = vpop.f32.mrf.mxu0
      %v580 = vadd.f32 %v324, %v579
      %v581 = vpop.f32.mrf.mxu0
      %582 = vmatprep.mubr.f32.mxu0 0.0
      %583 = vmatmul.mubr.f32.gmra.mxu0 %v385
      %v584 = vpop.f32.mrf.mxu0
      %v585 = vadd.f32 %v324, %v584
      %v586 = vpop.f32.mrf.mxu0
      %587 = vmatprep.mubr.f32.mxu0 0.0
      %588 = vmatmul.mubr.f32.gmra.mxu0 %v388
      %v589 = vpop.f32.mrf.mxu0
      %v590 = vadd.f32 %v324, %v589
      %v591 = vpop.f32.mrf.mxu0
      %592 = vmatprep.mubr.f32.mxu0 0.0
      %593 = vmatmul.mubr.f32.gmra.mxu0 %v391
      %v594 = vpop.f32.mrf.mxu0
      %v595 = vadd.f32 %v324, %v594
      %v596 = vpop.f32.mrf.mxu0
      %597 = vmatprep.mubr.f32.mxu0 0.0
      %598 = vmatmul.mubr.f32.gmra.mxu0 %v394
      %v599 = vpop.f32.mrf.mxu0
      %v600 = vadd.f32 %v324, %v599
      %v601 = vpop.f32.mrf.mxu0
      %602 = vmatprep.mubr.f32.mxu0 0.0
      %603 = vmatmul.mubr.f32.gmra.mxu0 %v397
      %v604 = vpop.f32.mrf.mxu0
      %v605 = vadd.f32 %v324, %v604
      %v606 = vpop.f32.mrf.mxu0
      %607 = vmatprep.mubr.f32.mxu0 0.0
      %608 = vmatmul.mubr.f32.gmra.mxu0 %v400
      %v609 = vpop.f32.mrf.mxu0
      %v610 = vadd.f32 %v324, %v609
      %v611 = vpop.f32.mrf.mxu0
      %612 = vmatprep.mubr.f32.mxu0 0.0
      %613 = vmatmul.mubr.f32.gmra.mxu0 %v403
      %v614 = vpop.f32.mrf.mxu0
      %v615 = vadd.f32 %v324, %v614
      %v616 = vpop.f32.mrf.mxu0
      %617 = vmatprep.mubr.f32.mxu0 0.0
      %618 = vmatmul.mubr.f32.gmra.mxu0 %v406
      %v619 = vpop.f32.mrf.mxu0
      %v620 = vadd.f32 %v324, %v619
      %v621 = vpop.f32.mrf.mxu0
      %622 = vmatprep.mubr.f32.mxu0 0.0
      %623 = vmatmul.mubr.f32.gmra.mxu0 %v409
      %v624 = vpop.f32.mrf.mxu0
      %v625 = vadd.f32 %v324, %v624
      %v626 = vpop.f32.mrf.mxu0
      %627 = vmatprep.mubr.f32.mxu0 0.0
      %628 = vmatmul.mubr.f32.gmra.mxu0 %v412
      %v629 = vpop.f32.mrf.mxu0
      %v630 = vadd.f32 %v324, %v629
      %v631 = vpop.f32.mrf.mxu0
      %632 = vmatprep.mubr.f32.mxu0 0.0
      %633 = vmatmul.mubr.f32.gmra.mxu0 %v415
      %v634 = vpop.f32.mrf.mxu0
      %v635 = vadd.f32 %v324, %v634
      %v636 = vpop.f32.mrf.mxu0
      %637 = vmatprep.mubr.f32.mxu0 0.0
      %638 = vmatmul.mubr.f32.gmra.mxu0 %v418
      %v639 = vpop.f32.mrf.mxu0
      %v640 = vadd.f32 %v324, %v639
      %v641 = vpop.f32.mrf.mxu0
      %642 = vmatprep.mubr.f32.mxu0 0.0
      %643 = vmatmul.mubr.f32.gmra.mxu0 %v421
      %v644 = vpop.f32.mrf.mxu0
      %v645 = vadd.f32 %v324, %v644
      %v646 = vpop.f32.mrf.mxu0
      %647 = vdwg.mxu0
      %v648 = vmax.f32 %v490, 0.0
      %v649 = vmax.f32 %v495, 0.0
      %v650 = vmax.f32 %v500, 0.0
      %v651 = vmax.f32 %v505, 0.0
      %v652 = vmax.f32 %v510, 0.0
      %v653 = vmax.f32 %v515, 0.0
      %v654 = vmax.f32 %v520, 0.0
      %v655 = vmax.f32 %v525, 0.0
      %v656 = vmax.f32 %v530, 0.0
      %v657 = vmax.f32 %v535, 0.0
      %v658 = vmax.f32 %v540, 0.0
      %v659 = vmax.f32 %v545, 0.0
      %v660 = vmax.f32 %v550, 0.0
      %v661 = vmax.f32 %v555, 0.0
      %v662 = vmax.f32 %v560, 0.0
      %v663 = vmax.f32 %v565, 0.0
      %v664 = vmax.f32 %v570, 0.0
      %v665 = vmax.f32 %v575, 0.0
      %v666 = vmax.f32 %v580, 0.0
      %v667 = vmax.f32 %v585, 0.0
      %v668 = vmax.f32 %v590, 0.0
      %v669 = vmax.f32 %v595, 0.0
      %v670 = vmax.f32 %v600, 0.0
      %v671 = vmax.f32 %v605, 0.0
      %v672 = vmax.f32 %v610, 0.0
      %v673 = vmax.f32 %v615, 0.0
      %v674 = vmax.f32 %v620, 0.0
      %v675 = vmax.f32 %v625, 0.0
      %v676 = vmax.f32 %v630, 0.0
      %v677 = vmax.f32 %v635, 0.0
      %v678 = vmax.f32 %v640, 0.0
      %v679 = vmax.f32 %v645, 0.0
      %vm680 = vcmask 261120
      %681 = vst.msk [vmem:[#allocation2] sm:$0xff] %vm680, 0.0
      %682 = vst.msk [vmem:[#allocation2 + $0x8] sm:$0xff] %vm680, 0.0
      %vm683 = vcmask 254976
      %684 = vst.msk [vmem:[#allocation2 + $0x10] sm:$0x3] %vm683, 0.0
      %s685 = scalar_lea.vmem [#allocation2], 408
      %686 = vst.msk [vmem:[%s685] sm:$0xff] %vm680, 0.0
      %687 = vst.msk [vmem:[%s685 + $0x8] sm:$0xff] %vm680, 0.0
      %688 = vst.msk [vmem:[%s685 + $0x10] sm:$0x3] %vm683, 0.0
      %s689 = scalar_lea.vmem [#allocation2], 24
      %vm690 = vcmask 253952
      %691 = vst.msk [vmem:[%s689] sm:$0x1] %vm690, 0.0
      %692 = vst.msk [vmem:[%s689 + $0x18] sm:$0x1] %vm690, 0.0
      %693 = vst.msk [vmem:[%s689 + $0x30] sm:$0x1] %vm690, 0.0
      %694 = vst.msk [vmem:[%s689 + $0x48] sm:$0x1] %vm690, 0.0
      %695 = vst.msk [vmem:[%s689 + $0x60] sm:$0x1] %vm690, 0.0
      %696 = vst.msk [vmem:[%s689 + $0x78] sm:$0x1] %vm690, 0.0
      %697 = vst.msk [vmem:[%s689 + $0x90] sm:$0x1] %vm690, 0.0
      %698 = vst.msk [vmem:[%s689 + $0xa8] sm:$0x1] %vm690, 0.0
      %699 = vst.msk [vmem:[%s689 + $0xc0] sm:$0x1] %vm690, 0.0
      %700 = vst.msk [vmem:[%s689 + $0xd8] sm:$0x1] %vm690, 0.0
      %701 = vst.msk [vmem:[%s689 + $0xf0] sm:$0x1] %vm690, 0.0
      %702 = vst.msk [vmem:[%s689 + $0x108] sm:$0x1] %vm690, 0.0
      %703 = vst.msk [vmem:[%s689 + $0x120] sm:$0x1] %vm690, 0.0
      %704 = vst.msk [vmem:[%s689 + $0x138] sm:$0x1] %vm690, 0.0
      %705 = vst.msk [vmem:[%s689 + $0x150] sm:$0x1] %vm690, 0.0
      %706 = vst.msk [vmem:[%s689 + $0x168] sm:$0x1] %vm690, 0.0
      %707 = vst.msk [vmem:[%s689 + $0x11] sm:$0x1] %vm690, 0.0
      %708 = vst.msk [vmem:[%s689 + $0x29] sm:$0x1] %vm690, 0.0
      %709 = vst.msk [vmem:[%s689 + $0x41] sm:$0x1] %vm690, 0.0
      %710 = vst.msk [vmem:[%s689 + $0x59] sm:$0x1] %vm690, 0.0
      %711 = vst.msk [vmem:[%s689 + $0x71] sm:$0x1] %vm690, 0.0
      %712 = vst.msk [vmem:[%s689 + $0x89] sm:$0x1] %vm690, 0.0
      %713 = vst.msk [vmem:[%s689 + $0xa1] sm:$0x1] %vm690, 0.0
      %714 = vst.msk [vmem:[%s689 + $0xb9] sm:$0x1] %vm690, 0.0
      %715 = vst.msk [vmem:[%s689 + $0xd1] sm:$0x1] %vm690, 0.0
      %716 = vst.msk [vmem:[%s689 + $0xe9] sm:$0x1] %vm690, 0.0
      %717 = vst.msk [vmem:[%s689 + $0x101] sm:$0x1] %vm690, 0.0
      %718 = vst.msk [vmem:[%s689 + $0x119] sm:$0x1] %vm690, 0.0
      %719 = vst.msk [vmem:[%s689 + $0x131] sm:$0x1] %vm690, 0.0
      %720 = vst.msk [vmem:[%s689 + $0x149] sm:$0x1] %vm690, 0.0
      %721 = vst.msk [vmem:[%s689 + $0x161] sm:$0x1] %vm690, 0.0
      %722 = vst.msk [vmem:[%s689 + $0x179] sm:$0x1] %vm690, 0.0
      %723 = vst.msk [vmem:[%s689 + $0x1] sm:$0xff] %vm680, %v648
      %724 = vst.msk [vmem:[%s689 + $0x9] sm:$0xff] %vm680, %v649
      %725 = vst.msk [vmem:[%s689 + $0x19] sm:$0xff] %vm680, %v650
      %726 = vst.msk [vmem:[%s689 + $0x21] sm:$0xff] %vm680, %v651
      %727 = vst.msk [vmem:[%s689 + $0x31] sm:$0xff] %vm680, %v652
      %728 = vst.msk [vmem:[%s689 + $0x39] sm:$0xff] %vm680, %v653
      %729 = vst.msk [vmem:[%s689 + $0x49] sm:$0xff] %vm680, %v654
      %730 = vst.msk [vmem:[%s689 + $0x51] sm:$0xff] %vm680, %v655
      %731 = vst.msk [vmem:[%s689 + $0x61] sm:$0xff] %vm680, %v656
      %732 = vst.msk [vmem:[%s689 + $0x69] sm:$0xff] %vm680, %v657
      %733 = vst.msk [vmem:[%s689 + $0x79] sm:$0xff] %vm680, %v658
      %734 = vst.msk [vmem:[%s689 + $0x81] sm:$0xff] %vm680, %v659
      %735 = vst.msk [vmem:[%s689 + $0x91] sm:$0xff] %vm680, %v660
      %736 = vst.msk [vmem:[%s689 + $0x99] sm:$0xff] %vm680, %v661
      %737 = vst.msk [vmem:[%s689 + $0xa9] sm:$0xff] %vm680, %v662
      %738 = vst.msk [vmem:[%s689 + $0xb1] sm:$0xff] %vm680, %v663
      %739 = vst.msk [vmem:[%s689 + $0xc1] sm:$0xff] %vm680, %v664
      %740 = vst.msk [vmem:[%s689 + $0xc9] sm:$0xff] %vm680, %v665
      %741 = vst.msk [vmem:[%s689 + $0xd9] sm:$0xff] %vm680, %v666
      %742 = vst.msk [vmem:[%s689 + $0xe1] sm:$0xff] %vm680, %v667
      %743 = vst.msk [vmem:[%s689 + $0xf1] sm:$0xff] %vm680, %v668
      %744 = vst.msk [vmem:[%s689 + $0xf9] sm:$0xff] %vm680, %v669
      %745 = vst.msk [vmem:[%s689 + $0x109] sm:$0xff] %vm680, %v670
      %746 = vst.msk [vmem:[%s689 + $0x111] sm:$0xff] %vm680, %v671
      %747 = vst.msk [vmem:[%s689 + $0x121] sm:$0xff] %vm680, %v672
      %748 = vst.msk [vmem:[%s689 + $0x129] sm:$0xff] %vm680, %v673
      %749 = vst.msk [vmem:[%s689 + $0x139] sm:$0xff] %vm680, %v674
      %750 = vst.msk [vmem:[%s689 + $0x141] sm:$0xff] %vm680, %v675
      %751 = vst.msk [vmem:[%s689 + $0x151] sm:$0xff] %vm680, %v676
      %752 = vst.msk [vmem:[%s689 + $0x159] sm:$0xff] %vm680, %v677
      %753 = vst.msk [vmem:[%s689 + $0x169] sm:$0xff] %vm680, %v678
      %754 = vst.msk [vmem:[%s689 + $0x171] sm:$0xff] %vm680, %v679
      %v755 = vld [vmem:[#allocation2] sm:$0xff]
      %v756 = vld [vmem:[#allocation2 + $0x8] sm:$0xff]
      %v757 = vld [vmem:[#allocation2 + $0x18] sm:$0xff]
      %v758 = vld [vmem:[#allocation2 + $0x20] sm:$0xff]
      %v759 = vld [vmem:[#allocation2 + $0x30] sm:$0xff]
      %v760 = vld [vmem:[#allocation2 + $0x38] sm:$0xff]
      %v761 = vld [vmem:[#allocation2 + $0x48] sm:$0xff]
      %v762 = vld [vmem:[#allocation2 + $0x50] sm:$0xff]
      %v763 = vld [vmem:[#allocation2 + $0x60] sm:$0xff]
      %v764 = vld [vmem:[#allocation2 + $0x68] sm:$0xff]
      %v765 = vld [vmem:[#allocation2 + $0x78] sm:$0xff]
      %v766 = vld [vmem:[#allocation2 + $0x80] sm:$0xff]
      %v767 = vld [vmem:[#allocation2 + $0x90] sm:$0xff]
      %v768 = vld [vmem:[#allocation2 + $0x98] sm:$0xff]
      %v769 = vld [vmem:[#allocation2 + $0xa8] sm:$0xff]
      %v770 = vld [vmem:[#allocation2 + $0xb0] sm:$0xff]
      %v771 = vld [vmem:[#allocation2 + $0xc0] sm:$0xff]
      %v772 = vld [vmem:[#allocation2 + $0xc8] sm:$0xff]
      %v773 = vld [vmem:[#allocation2 + $0xd8] sm:$0xff]
      %v774 = vld [vmem:[#allocation2 + $0xe0] sm:$0xff]
      %v775 = vld [vmem:[#allocation2 + $0xf0] sm:$0xff]
      %v776 = vld [vmem:[#allocation2 + $0xf8] sm:$0xff]
      %v777 = vld [vmem:[#allocation2 + $0x108] sm:$0xff]
      %v778 = vld [vmem:[#allocation2 + $0x110] sm:$0xff]
      %v779 = vld [vmem:[#allocation2 + $0x120] sm:$0xff]
      %v780 = vld [vmem:[#allocation2 + $0x128] sm:$0xff]
      %v781 = vld [vmem:[#allocation2 + $0x138] sm:$0xff]
      %v782 = vld [vmem:[#allocation2 + $0x140] sm:$0xff]
      %v783 = vld [vmem:[#allocation2 + $0x150] sm:$0xff]
      %v784 = vld [vmem:[#allocation2 + $0x158] sm:$0xff]
      %v785 = vld [vmem:[#allocation2 + $0x168] sm:$0xff]
      %v786 = vld [vmem:[#allocation2 + $0x170] sm:$0xff]
      %787 = vst.msk [vmem:[#allocation3] sm:$0xff] %vm680, %v755
      %788 = vst.msk [vmem:[#allocation3 + $0x18] sm:$0xff] %vm680, %v756
      %789 = vst.msk [vmem:[#allocation3 + $0x30] sm:$0xff] %vm680, %v757
      %790 = vst.msk [vmem:[#allocation3 + $0x48] sm:$0xff] %vm680, %v758
      %791 = vst.msk [vmem:[#allocation3 + $0x60] sm:$0xff] %vm680, %v759
      %792 = vst.msk [vmem:[#allocation3 + $0x78] sm:$0xff] %vm680, %v760
      %793 = vst.msk [vmem:[#allocation3 + $0x90] sm:$0xff] %vm680, %v761
      %794 = vst.msk [vmem:[#allocation3 + $0xa8] sm:$0xff] %vm680, %v762
      %795 = vst.msk [vmem:[#allocation3 + $0xc0] sm:$0xff] %vm680, %v763
      %796 = vst.msk [vmem:[#allocation3 + $0xd8] sm:$0xff] %vm680, %v764
      %797 = vst.msk [vmem:[#allocation3 + $0xf0] sm:$0xff] %vm680, %v765
      %798 = vst.msk [vmem:[#allocation3 + $0x108] sm:$0xff] %vm680, %v766
      %799 = vst.msk [vmem:[#allocation3 + $0x120] sm:$0xff] %vm680, %v767
      %800 = vst.msk [vmem:[#allocation3 + $0x138] sm:$0xff] %vm680, %v768
      %801 = vst.msk [vmem:[#allocation3 + $0x150] sm:$0xff] %vm680, %v769
      %802 = vst.msk [vmem:[#allocation3 + $0x168] sm:$0xff] %vm680, %v770
      %803 = vst.msk [vmem:[#allocation3 + $0x180] sm:$0xff] %vm680, %v771
      %804 = vst.msk [vmem:[#allocation3 + $0x198] sm:$0xff] %vm680, %v772
      %805 = vst.msk [vmem:[#allocation3 + $0x1b0] sm:$0xff] %vm680, %v773
      %806 = vst.msk [vmem:[#allocation3 + $0x1c8] sm:$0xff] %vm680, %v774
      %807 = vst.msk [vmem:[#allocation3 + $0x1e0] sm:$0xff] %vm680, %v775
      %808 = vst.msk [vmem:[#allocation3 + $0x1f8] sm:$0xff] %vm680, %v776
      %809 = vst.msk [vmem:[#allocation3 + $0x210] sm:$0xff] %vm680, %v777
      %810 = vst.msk [vmem:[#allocation3 + $0x228] sm:$0xff] %vm680, %v778
      %811 = vst.msk [vmem:[#allocation3 + $0x240] sm:$0xff] %vm680, %v779
      %812 = vst.msk [vmem:[#allocation3 + $0x258] sm:$0xff] %vm680, %v780
      %813 = vst.msk [vmem:[#allocation3 + $0x270] sm:$0xff] %vm680, %v781
      %814 = vst.msk [vmem:[#allocation3 + $0x288] sm:$0xff] %vm680, %v782
      %815 = vst.msk [vmem:[#allocation3 + $0x2a0] sm:$0xff] %vm680, %v783
      %816 = vst.msk [vmem:[#allocation3 + $0x2b8] sm:$0xff] %vm680, %v784
      %817 = vst.msk [vmem:[#allocation3 + $0x2d0] sm:$0xff] %vm680, %v785
      %818 = vst.msk [vmem:[#allocation3 + $0x2e8] sm:$0xff] %vm680, %v786
      %v819 = vld [vmem:[#allocation2 + $0x1] sm:$0xff]
      %v820 = vld [vmem:[#allocation2 + $0x9] sm:$0xff]
      %v821 = vld [vmem:[#allocation2 + $0x19] sm:$0xff]
      %v822 = vld [vmem:[#allocation2 + $0x21] sm:$0xff]
      %v823 = vld [vmem:[#allocation2 + $0x31] sm:$0xff]
      %v824 = vld [vmem:[#allocation2 + $0x39] sm:$0xff]
      %v825 = vld [vmem:[#allocation2 + $0x49] sm:$0xff]
      %v826 = vld [vmem:[#allocation2 + $0x51] sm:$0xff]
      %v827 = vld [vmem:[#allocation2 + $0x61] sm:$0xff]
      %v828 = vld [vmem:[#allocation2 + $0x69] sm:$0xff]
      %v829 = vld [vmem:[#allocation2 + $0x79] sm:$0xff]
      %v830 = vld [vmem:[#allocation2 + $0x81] sm:$0xff]
      %v831 = vld [vmem:[#allocation2 + $0x91] sm:$0xff]
      %v832 = vld [vmem:[#allocation2 + $0x99] sm:$0xff]
      %v833 = vld [vmem:[#allocation2 + $0xa9] sm:$0xff]
      %v834 = vld [vmem:[#allocation2 + $0xb1] sm:$0xff]
      %v835 = vld [vmem:[#allocation2 + $0xc1] sm:$0xff]
      %v836 = vld [vmem:[#allocation2 + $0xc9] sm:$0xff]
      %v837 = vld [vmem:[#allocation2 + $0xd9] sm:$0xff]
      %v838 = vld [vmem:[#allocation2 + $0xe1] sm:$0xff]
      %v839 = vld [vmem:[#allocation2 + $0xf1] sm:$0xff]
      %v840 = vld [vmem:[#allocation2 + $0xf9] sm:$0xff]
      %v841 = vld [vmem:[#allocation2 + $0x109] sm:$0xff]
      %v842 = vld [vmem:[#allocation2 + $0x111] sm:$0xff]
      %v843 = vld [vmem:[#allocation2 + $0x121] sm:$0xff]
      %v844 = vld [vmem:[#allocation2 + $0x129] sm:$0xff]
      %v845 = vld [vmem:[#allocation2 + $0x139] sm:$0xff]
      %v846 = vld [vmem:[#allocation2 + $0x141] sm:$0xff]
      %v847 = vld [vmem:[#allocation2 + $0x151] sm:$0xff]
      %v848 = vld [vmem:[#allocation2 + $0x159] sm:$0xff]
      %v849 = vld [vmem:[#allocation2 + $0x169] sm:$0xff]
      %v850 = vld [vmem:[#allocation2 + $0x171] sm:$0xff]
      %883 = vrot.lane.b32.xlu0 %v819, 32
      %v884 = vpop.permute.xlu0 %883
      %885 = vrot.lane.b32.xlu0 %v820, 32
      %v886 = vpop.permute.xlu0 %885
      %887 = vrot.lane.b32.xlu0 %v821, 32
      %v888 = vpop.permute.xlu0 %887
      %889 = vrot.lane.b32.xlu0 %v822, 32
      %v890 = vpop.permute.xlu0 %889
      %891 = vrot.lane.b32.xlu0 %v823, 32
      %v892 = vpop.permute.xlu0 %891
      %893 = vrot.lane.b32.xlu0 %v824, 32
      %v894 = vpop.permute.xlu0 %893
      %895 = vrot.lane.b32.xlu0 %v825, 32
      %v896 = vpop.permute.xlu0 %895
      %897 = vrot.lane.b32.xlu0 %v826, 32
      %v898 = vpop.permute.xlu0 %897
      %899 = vrot.lane.b32.xlu0 %v827, 32
      %v900 = vpop.permute.xlu0 %899
      %901 = vrot.lane.b32.xlu0 %v828, 32
      %v902 = vpop.permute.xlu0 %901
      %903 = vrot.lane.b32.xlu0 %v829, 32
      %v904 = vpop.permute.xlu0 %903
      %905 = vrot.lane.b32.xlu0 %v830, 32
      %v906 = vpop.permute.xlu0 %905
      %907 = vrot.lane.b32.xlu0 %v831, 32
      %v908 = vpop.permute.xlu0 %907
      %909 = vrot.lane.b32.xlu0 %v832, 32
      %v910 = vpop.permute.xlu0 %909
      %911 = vrot.lane.b32.xlu0 %v833, 32
      %v912 = vpop.permute.xlu0 %911
      %913 = vrot.lane.b32.xlu0 %v834, 32
      %v914 = vpop.permute.xlu0 %913
      %915 = vrot.lane.b32.xlu0 %v835, 32
      %v916 = vpop.permute.xlu0 %915
      %917 = vrot.lane.b32.xlu0 %v836, 32
      %v918 = vpop.permute.xlu0 %917
      %919 = vrot.lane.b32.xlu0 %v837, 32
      %v920 = vpop.permute.xlu0 %919
      %921 = vrot.lane.b32.xlu0 %v838, 32
      %v922 = vpop.permute.xlu0 %921
      %923 = vrot.lane.b32.xlu0 %v839, 32
      %v924 = vpop.permute.xlu0 %923
      %925 = vrot.lane.b32.xlu0 %v840, 32
      %v926 = vpop.permute.xlu0 %925
      %927 = vrot.lane.b32.xlu0 %v841, 32
      %v928 = vpop.permute.xlu0 %927
      %929 = vrot.lane.b32.xlu0 %v842, 32
      %v930 = vpop.permute.xlu0 %929
      %931 = vrot.lane.b32.xlu0 %v843, 32
      %v932 = vpop.permute.xlu0 %931
      %933 = vrot.lane.b32.xlu0 %v844, 32
      %v934 = vpop.permute.xlu0 %933
      %935 = vrot.lane.b32.xlu0 %v845, 32
      %v936 = vpop.permute.xlu0 %935
      %937 = vrot.lane.b32.xlu0 %v846, 32
      %v938 = vpop.permute.xlu0 %937
      %939 = vrot.lane.b32.xlu0 %v847, 32
      %v940 = vpop.permute.xlu0 %939
      %941 = vrot.lane.b32.xlu0 %v848, 32
      %v942 = vpop.permute.xlu0 %941
      %943 = vrot.lane.b32.xlu0 %v849, 32
      %v944 = vpop.permute.xlu0 %943
      %945 = vrot.lane.b32.xlu0 %v850, 32
      %v946 = vpop.permute.xlu0 %945
      %vm979 = vcmask 523520
      %980 = vst.msk [vmem:[#allocation3] sm:$0xff] %vm979, %v884
      %981 = vst.msk [vmem:[#allocation3 + $0x18] sm:$0xff] %vm979, %v886
      %982 = vst.msk [vmem:[#allocation3 + $0x30] sm:$0xff] %vm979, %v888
      %983 = vst.msk [vmem:[#allocation3 + $0x48] sm:$0xff] %vm979, %v890
      %984 = vst.msk [vmem:[#allocation3 + $0x60] sm:$0xff] %vm979, %v892
      %985 = vst.msk [vmem:[#allocation3 + $0x78] sm:$0xff] %vm979, %v894
      %986 = vst.msk [vmem:[#allocation3 + $0x90] sm:$0xff] %vm979, %v896
      %987 = vst.msk [vmem:[#allocation3 + $0xa8] sm:$0xff] %vm979, %v898
      %988 = vst.msk [vmem:[#allocation3 + $0xc0] sm:$0xff] %vm979, %v900
      %989 = vst.msk [vmem:[#allocation3 + $0xd8] sm:$0xff] %vm979, %v902
      %990 = vst.msk [vmem:[#allocation3 + $0xf0] sm:$0xff] %vm979, %v904
      %991 = vst.msk [vmem:[#allocation3 + $0x108] sm:$0xff] %vm979, %v906
      %992 = vst.msk [vmem:[#allocation3 + $0x120] sm:$0xff] %vm979, %v908
      %993 = vst.msk [vmem:[#allocation3 + $0x138] sm:$0xff] %vm979, %v910
      %994 = vst.msk [vmem:[#allocation3 + $0x150] sm:$0xff] %vm979, %v912
      %995 = vst.msk [vmem:[#allocation3 + $0x168] sm:$0xff] %vm979, %v914
      %996 = vst.msk [vmem:[#allocation3 + $0x180] sm:$0xff] %vm979, %v916
      %997 = vst.msk [vmem:[#allocation3 + $0x198] sm:$0xff] %vm979, %v918
      %998 = vst.msk [vmem:[#allocation3 + $0x1b0] sm:$0xff] %vm979, %v920
      %999 = vst.msk [vmem:[#allocation3 + $0x1c8] sm:$0xff] %vm979, %v922
      %1000 = vst.msk [vmem:[#allocation3 + $0x1e0] sm:$0xff] %vm979, %v924
      %1001 = vst.msk [vmem:[#allocation3 + $0x1f8] sm:$0xff] %vm979, %v926
      %1002 = vst.msk [vmem:[#allocation3 + $0x210] sm:$0xff] %vm979, %v928
      %1003 = vst.msk [vmem:[#allocation3 + $0x228] sm:$0xff] %vm979, %v930
      %1004 = vst.msk [vmem:[#allocation3 + $0x240] sm:$0xff] %vm979, %v932
      %1005 = vst.msk [vmem:[#allocation3 + $0x258] sm:$0xff] %vm979, %v934
      %1006 = vst.msk [vmem:[#allocation3 + $0x270] sm:$0xff] %vm979, %v936
      %1007 = vst.msk [vmem:[#allocation3 + $0x288] sm:$0xff] %vm979, %v938
      %1008 = vst.msk [vmem:[#allocation3 + $0x2a0] sm:$0xff] %vm979, %v940
      %1009 = vst.msk [vmem:[#allocation3 + $0x2b8] sm:$0xff] %vm979, %v942
      %1010 = vst.msk [vmem:[#allocation3 + $0x2d0] sm:$0xff] %vm979, %v944
      %1011 = vst.msk [vmem:[#allocation3 + $0x2e8] sm:$0xff] %vm979, %v946
      %v1012 = vld [vmem:[#allocation2 + $0x2] sm:$0xff]
      %v1013 = vld [vmem:[#allocation2 + $0xa] sm:$0xff]
      %v1014 = vld [vmem:[#allocation2 + $0x1a] sm:$0xff]
      %v1015 = vld [vmem:[#allocation2 + $0x22] sm:$0xff]
      %v1016 = vld [vmem:[#allocation2 + $0x32] sm:$0xff]
      %v1017 = vld [vmem:[#allocation2 + $0x3a] sm:$0xff]
      %v1018 = vld [vmem:[#allocation2 + $0x4a] sm:$0xff]
      %v1019 = vld [vmem:[#allocation2 + $0x52] sm:$0xff]
      %v1020 = vld [vmem:[#allocation2 + $0x62] sm:$0xff]
      %v1021 = vld [vmem:[#allocation2 + $0x6a] sm:$0xff]
      %v1022 = vld [vmem:[#allocation2 + $0x7a] sm:$0xff]
      %v1023 = vld [vmem:[#allocation2 + $0x82] sm:$0xff]
      %v1024 = vld [vmem:[#allocation2 + $0x92] sm:$0xff]
      %v1025 = vld [vmem:[#allocation2 + $0x9a] sm:$0xff]
      %v1026 = vld [vmem:[#allocation2 + $0xaa] sm:$0xff]
      %v1027 = vld [vmem:[#allocation2 + $0xb2] sm:$0xff]
      %v1028 = vld [vmem:[#allocation2 + $0xc2] sm:$0xff]
      %v1029 = vld [vmem:[#allocation2 + $0xca] sm:$0xff]
      %v1030 = vld [vmem:[#allocation2 + $0xda] sm:$0xff]
      %v1031 = vld [vmem:[#allocation2 + $0xe2] sm:$0xff]
      %v1032 = vld [vmem:[#allocation2 + $0xf2] sm:$0xff]
      %v1033 = vld [vmem:[#allocation2 + $0xfa] sm:$0xff]
      %v1034 = vld [vmem:[#allocation2 + $0x10a] sm:$0xff]
      %v1035 = vld [vmem:[#allocation2 + $0x112] sm:$0xff]
      %v1036 = vld [vmem:[#allocation2 + $0x122] sm:$0xff]
      %v1037 = vld [vmem:[#allocation2 + $0x12a] sm:$0xff]
      %v1038 = vld [vmem:[#allocation2 + $0x13a] sm:$0xff]
      %v1039 = vld [vmem:[#allocation2 + $0x142] sm:$0xff]
      %v1040 = vld [vmem:[#allocation2 + $0x152] sm:$0xff]
      %v1041 = vld [vmem:[#allocation2 + $0x15a] sm:$0xff]
      %v1042 = vld [vmem:[#allocation2 + $0x16a] sm:$0xff]
      %v1043 = vld [vmem:[#allocation2 + $0x172] sm:$0xff]
      %1076 = vrot.lane.b32.xlu0 %v1012, 64
      %v1077 = vpop.permute.xlu0 %1076
      %1078 = vrot.lane.b32.xlu0 %v1013, 64
      %v1079 = vpop.permute.xlu0 %1078
      %1080 = vrot.lane.b32.xlu0 %v1014, 64
      %v1081 = vpop.permute.xlu0 %1080
      %1082 = vrot.lane.b32.xlu0 %v1015, 64
      %v1083 = vpop.permute.xlu0 %1082
      %1084 = vrot.lane.b32.xlu0 %v1016, 64
      %v1085 = vpop.permute.xlu0 %1084
      %1086 = vrot.lane.b32.xlu0 %v1017, 64
      %v1087 = vpop.permute.xlu0 %1086
      %1088 = vrot.lane.b32.xlu0 %v1018, 64
      %v1089 = vpop.permute.xlu0 %1088
      %1090 = vrot.lane.b32.xlu0 %v1019, 64
      %v1091 = vpop.permute.xlu0 %1090
      %1092 = vrot.lane.b32.xlu0 %v1020, 64
      %v1093 = vpop.permute.xlu0 %1092
      %1094 = vrot.lane.b32.xlu0 %v1021, 64
      %v1095 = vpop.permute.xlu0 %1094
      %1096 = vrot.lane.b32.xlu0 %v1022, 64
      %v1097 = vpop.permute.xlu0 %1096
      %1098 = vrot.lane.b32.xlu0 %v1023, 64
      %v1099 = vpop.permute.xlu0 %1098
      %1100 = vrot.lane.b32.xlu0 %v1024, 64
      %v1101 = vpop.permute.xlu0 %1100
      %1102 = vrot.lane.b32.xlu0 %v1025, 64
      %v1103 = vpop.permute.xlu0 %1102
      %1104 = vrot.lane.b32.xlu0 %v1026, 64
      %v1105 = vpop.permute.xlu0 %1104
      %1106 = vrot.lane.b32.xlu0 %v1027, 64
      %v1107 = vpop.permute.xlu0 %1106
      %1108 = vrot.lane.b32.xlu0 %v1028, 64
      %v1109 = vpop.permute.xlu0 %1108
      %1110 = vrot.lane.b32.xlu0 %v1029, 64
      %v1111 = vpop.permute.xlu0 %1110
      %1112 = vrot.lane.b32.xlu0 %v1030, 64
      %v1113 = vpop.permute.xlu0 %1112
      %1114 = vrot.lane.b32.xlu0 %v1031, 64
      %v1115 = vpop.permute.xlu0 %1114
      %1116 = vrot.lane.b32.xlu0 %v1032, 64
      %v1117 = vpop.permute.xlu0 %1116
      %1118 = vrot.lane.b32.xlu0 %v1033, 64
      %v1119 = vpop.permute.xlu0 %1118
      %1120 = vrot.lane.b32.xlu0 %v1034, 64
      %v1121 = vpop.permute.xlu0 %1120
      %1122 = vrot.lane.b32.xlu0 %v1035, 64
      %v1123 = vpop.permute.xlu0 %1122
      %1124 = vrot.lane.b32.xlu0 %v1036, 64
      %v1125 = vpop.permute.xlu0 %1124
      %1126 = vrot.lane.b32.xlu0 %v1037, 64
      %v1127 = vpop.permute.xlu0 %1126
      %1128 = vrot.lane.b32.xlu0 %v1038, 64
      %v1129 = vpop.permute.xlu0 %1128
      %1130 = vrot.lane.b32.xlu0 %v1039, 64
      %v1131 = vpop.permute.xlu0 %1130
      %1132 = vrot.lane.b32.xlu0 %v1040, 64
      %v1133 = vpop.permute.xlu0 %1132
      %1134 = vrot.lane.b32.xlu0 %v1041, 64
      %v1135 = vpop.permute.xlu0 %1134
      %1136 = vrot.lane.b32.xlu0 %v1042, 64
      %v1137 = vpop.permute.xlu0 %1136
      %1138 = vrot.lane.b32.xlu0 %v1043, 64
      %v1139 = vpop.permute.xlu0 %1138
      %vm1172 = vcmask 785920
      %1173 = vst.msk [vmem:[#allocation3] sm:$0xff] %vm1172, %v1077
      %1174 = vst.msk [vmem:[#allocation3 + $0x18] sm:$0xff] %vm1172, %v1079
      %1175 = vst.msk [vmem:[#allocation3 + $0x30] sm:$0xff] %vm1172, %v1081
      %1176 = vst.msk [vmem:[#allocation3 + $0x48] sm:$0xff] %vm1172, %v1083
      %1177 = vst.msk [vmem:[#allocation3 + $0x60] sm:$0xff] %vm1172, %v1085
      %1178 = vst.msk [vmem:[#allocation3 + $0x78] sm:$0xff] %vm1172, %v1087
      %1179 = vst.msk [vmem:[#allocation3 + $0x90] sm:$0xff] %vm1172, %v1089
      %1180 = vst.msk [vmem:[#allocation3 + $0xa8] sm:$0xff] %vm1172, %v1091
      %1181 = vst.msk [vmem:[#allocation3 + $0xc0] sm:$0xff] %vm1172, %v1093
      %1182 = vst.msk [vmem:[#allocation3 + $0xd8] sm:$0xff] %vm1172, %v1095
      %1183 = vst.msk [vmem:[#allocation3 + $0xf0] sm:$0xff] %vm1172, %v1097
      %1184 = vst.msk [vmem:[#allocation3 + $0x108] sm:$0xff] %vm1172, %v1099
      %1185 = vst.msk [vmem:[#allocation3 + $0x120] sm:$0xff] %vm1172, %v1101
      %1186 = vst.msk [vmem:[#allocation3 + $0x138] sm:$0xff] %vm1172, %v1103
      %1187 = vst.msk [vmem:[#allocation3 + $0x150] sm:$0xff] %vm1172, %v1105
      %1188 = vst.msk [vmem:[#allocation3 + $0x168] sm:$0xff] %vm1172, %v1107
      %1189 = vst.msk [vmem:[#allocation3 + $0x180] sm:$0xff] %vm1172, %v1109
      %1190 = vst.msk [vmem:[#allocation3 + $0x198] sm:$0xff] %vm1172, %v1111
      %1191 = vst.msk [vmem:[#allocation3 + $0x1b0] sm:$0xff] %vm1172, %v1113
      %1192 = vst.msk [vmem:[#allocation3 + $0x1c8] sm:$0xff] %vm1172, %v1115
      %1193 = vst.msk [vmem:[#allocation3 + $0x1e0] sm:$0xff] %vm1172, %v1117
      %1194 = vst.msk [vmem:[#allocation3 + $0x1f8] sm:$0xff] %vm1172, %v1119
      %1195 = vst.msk [vmem:[#allocation3 + $0x210] sm:$0xff] %vm1172, %v1121
      %1196 = vst.msk [vmem:[#allocation3 + $0x228] sm:$0xff] %vm1172, %v1123
      %1197 = vst.msk [vmem:[#allocation3 + $0x240] sm:$0xff] %vm1172, %v1125
      %1198 = vst.msk [vmem:[#allocation3 + $0x258] sm:$0xff] %vm1172, %v1127
      %1199 = vst.msk [vmem:[#allocation3 + $0x270] sm:$0xff] %vm1172, %v1129
      %1200 = vst.msk [vmem:[#allocation3 + $0x288] sm:$0xff] %vm1172, %v1131
      %1201 = vst.msk [vmem:[#allocation3 + $0x2a0] sm:$0xff] %vm1172, %v1133
      %1202 = vst.msk [vmem:[#allocation3 + $0x2b8] sm:$0xff] %vm1172, %v1135
      %1203 = vst.msk [vmem:[#allocation3 + $0x2d0] sm:$0xff] %vm1172, %v1137
      %1204 = vst.msk [vmem:[#allocation3 + $0x2e8] sm:$0xff] %vm1172, %v1139
      %v1205 = vld [vmem:[%s689] sm:$0xff]
      %v1206 = vld [vmem:[%s689 + $0x8] sm:$0xff]
      %v1207 = vld [vmem:[%s689 + $0x18] sm:$0xff]
      %v1208 = vld [vmem:[%s689 + $0x20] sm:$0xff]
      %v1209 = vld [vmem:[%s689 + $0x30] sm:$0xff]
      %v1210 = vld [vmem:[%s689 + $0x38] sm:$0xff]
      %v1211 = vld [vmem:[%s689 + $0x48] sm:$0xff]
      %v1212 = vld [vmem:[%s689 + $0x50] sm:$0xff]
      %v1213 = vld [vmem:[%s689 + $0x60] sm:$0xff]
      %v1214 = vld [vmem:[%s689 + $0x68] sm:$0xff]
      %v1215 = vld [vmem:[%s689 + $0x78] sm:$0xff]
      %v1216 = vld [vmem:[%s689 + $0x80] sm:$0xff]
      %v1217 = vld [vmem:[%s689 + $0x90] sm:$0xff]
      %v1218 = vld [vmem:[%s689 + $0x98] sm:$0xff]
      %v1219 = vld [vmem:[%s689 + $0xa8] sm:$0xff]
      %v1220 = vld [vmem:[%s689 + $0xb0] sm:$0xff]
      %v1221 = vld [vmem:[%s689 + $0xc0] sm:$0xff]
      %v1222 = vld [vmem:[%s689 + $0xc8] sm:$0xff]
      %v1223 = vld [vmem:[%s689 + $0xd8] sm:$0xff]
      %v1224 = vld [vmem:[%s689 + $0xe0] sm:$0xff]
      %v1225 = vld [vmem:[%s689 + $0xf0] sm:$0xff]
      %v1226 = vld [vmem:[%s689 + $0xf8] sm:$0xff]
      %v1227 = vld [vmem:[%s689 + $0x108] sm:$0xff]
      %v1228 = vld [vmem:[%s689 + $0x110] sm:$0xff]
      %v1229 = vld [vmem:[%s689 + $0x120] sm:$0xff]
      %v1230 = vld [vmem:[%s689 + $0x128] sm:$0xff]
      %v1231 = vld [vmem:[%s689 + $0x138] sm:$0xff]
      %v1232 = vld [vmem:[%s689 + $0x140] sm:$0xff]
      %v1233 = vld [vmem:[%s689 + $0x150] sm:$0xff]
      %v1234 = vld [vmem:[%s689 + $0x158] sm:$0xff]
      %v1235 = vld [vmem:[%s689 + $0x168] sm:$0xff]
      %v1236 = vld [vmem:[%s689 + $0x170] sm:$0xff]
      %1269 = vrot.lane.b32.xlu0 %v1205, 96
      %v1270 = vpop.permute.xlu0 %1269
      %1271 = vrot.lane.b32.xlu0 %v1206, 96
      %v1272 = vpop.permute.xlu0 %1271
      %1273 = vrot.lane.b32.xlu0 %v1207, 96
      %v1274 = vpop.permute.xlu0 %1273
      %1275 = vrot.lane.b32.xlu0 %v1208, 96
      %v1276 = vpop.permute.xlu0 %1275
      %1277 = vrot.lane.b32.xlu0 %v1209, 96
      %v1278 = vpop.permute.xlu0 %1277
      %1279 = vrot.lane.b32.xlu0 %v1210, 96
      %v1280 = vpop.permute.xlu0 %1279
      %1281 = vrot.lane.b32.xlu0 %v1211, 96
      %v1282 = vpop.permute.xlu0 %1281
      %1283 = vrot.lane.b32.xlu0 %v1212, 96
      %v1284 = vpop.permute.xlu0 %1283
      %1285 = vrot.lane.b32.xlu0 %v1213, 96
      %v1286 = vpop.permute.xlu0 %1285
      %1287 = vrot.lane.b32.xlu0 %v1214, 96
      %v1288 = vpop.permute.xlu0 %1287
      %1289 = vrot.lane.b32.xlu0 %v1215, 96
      %v1290 = vpop.permute.xlu0 %1289
      %1291 = vrot.lane.b32.xlu0 %v1216, 96
      %v1292 = vpop.permute.xlu0 %1291
      %1293 = vrot.lane.b32.xlu0 %v1217, 96
      %v1294 = vpop.permute.xlu0 %1293
      %1295 = vrot.lane.b32.xlu0 %v1218, 96
      %v1296 = vpop.permute.xlu0 %1295
      %1297 = vrot.lane.b32.xlu0 %v1219, 96
      %v1298 = vpop.permute.xlu0 %1297
      %1299 = vrot.lane.b32.xlu0 %v1220, 96
      %v1300 = vpop.permute.xlu0 %1299
      %1301 = vrot.lane.b32.xlu0 %v1221, 96
      %v1302 = vpop.permute.xlu0 %1301
      %1303 = vrot.lane.b32.xlu0 %v1222, 96
      %v1304 = vpop.permute.xlu0 %1303
      %1305 = vrot.lane.b32.xlu0 %v1223, 96
      %v1306 = vpop.permute.xlu0 %1305
      %1307 = vrot.lane.b32.xlu0 %v1224, 96
      %v1308 = vpop.permute.xlu0 %1307
      %1309 = vrot.lane.b32.xlu0 %v1225, 96
      %v1310 = vpop.permute.xlu0 %1309
      %1311 = vrot.lane.b32.xlu0 %v1226, 96
      %v1312 = vpop.permute.xlu0 %1311
      %1313 = vrot.lane.b32.xlu0 %v1227, 96
      %v1314 = vpop.permute.xlu0 %1313
      %1315 = vrot.lane.b32.xlu0 %v1228, 96
      %v1316 = vpop.permute.xlu0 %1315
      %1317 = vrot.lane.b32.xlu0 %v1229, 96
      %v1318 = vpop.permute.xlu0 %1317
      %1319 = vrot.lane.b32.xlu0 %v1230, 96
      %v1320 = vpop.permute.xlu0 %1319
      %1321 = vrot.lane.b32.xlu0 %v1231, 96
      %v1322 = vpop.permute.xlu0 %1321
      %1323 = vrot.lane.b32.xlu0 %v1232, 96
      %v1324 = vpop.permute.xlu0 %1323
      %1325 = vrot.lane.b32.xlu0 %v1233, 96
      %v1326 = vpop.permute.xlu0 %1325
      %1327 = vrot.lane.b32.xlu0 %v1234, 96
      %v1328 = vpop.permute.xlu0 %1327
      %1329 = vrot.lane.b32.xlu0 %v1235, 96
      %v1330 = vpop.permute.xlu0 %1329
      %1331 = vrot.lane.b32.xlu0 %v1236, 96
      %v1332 = vpop.permute.xlu0 %1331
      %vm1365 = vcmask 1048320
      %1366 = vst.msk [vmem:[#allocation3] sm:$0xff] %vm1365, %v1270
      %1367 = vst.msk [vmem:[#allocation3 + $0x18] sm:$0xff] %vm1365, %v1272
      %1368 = vst.msk [vmem:[#allocation3 + $0x30] sm:$0xff] %vm1365, %v1274
      %1369 = vst.msk [vmem:[#allocation3 + $0x48] sm:$0xff] %vm1365, %v1276
      %1370 = vst.msk [vmem:[#allocation3 + $0x60] sm:$0xff] %vm1365, %v1278
      %1371 = vst.msk [vmem:[#allocation3 + $0x78] sm:$0xff] %vm1365, %v1280
      %1372 = vst.msk [vmem:[#allocation3 + $0x90] sm:$0xff] %vm1365, %v1282
      %1373 = vst.msk [vmem:[#allocation3 + $0xa8] sm:$0xff] %vm1365, %v1284
      %1374 = vst.msk [vmem:[#allocation3 + $0xc0] sm:$0xff] %vm1365, %v1286
      %1375 = vst.msk [vmem:[#allocation3 + $0xd8] sm:$0xff] %vm1365, %v1288
      %1376 = vst.msk [vmem:[#allocation3 + $0xf0] sm:$0xff] %vm1365, %v1290
      %1377 = vst.msk [vmem:[#allocation3 + $0x108] sm:$0xff] %vm1365, %v1292
      %1378 = vst.msk [vmem:[#allocation3 + $0x120] sm:$0xff] %vm1365, %v1294
      %1379 = vst.msk [vmem:[#allocation3 + $0x138] sm:$0xff] %vm1365, %v1296
      %1380 = vst.msk [vmem:[#allocation3 + $0x150] sm:$0xff] %vm1365, %v1298
      %1381 = vst.msk [vmem:[#allocation3 + $0x168] sm:$0xff] %vm1365, %v1300
      %1382 = vst.msk [vmem:[#allocation3 + $0x180] sm:$0xff] %vm1365, %v1302
      %1383 = vst.msk [vmem:[#allocation3 + $0x198] sm:$0xff] %vm1365, %v1304
      %1384 = vst.msk [vmem:[#allocation3 + $0x1b0] sm:$0xff] %vm1365, %v1306
      %1385 = vst.msk [vmem:[#allocation3 + $0x1c8] sm:$0xff] %vm1365, %v1308
      %1386 = vst.msk [vmem:[#allocation3 + $0x1e0] sm:$0xff] %vm1365, %v1310
      %1387 = vst.msk [vmem:[#allocation3 + $0x1f8] sm:$0xff] %vm1365, %v1312
      %1388 = vst.msk [vmem:[#allocation3 + $0x210] sm:$0xff] %vm1365, %v1314
      %1389 = vst.msk [vmem:[#allocation3 + $0x228] sm:$0xff] %vm1365, %v1316
      %1390 = vst.msk [vmem:[#allocation3 + $0x240] sm:$0xff] %vm1365, %v1318
      %1391 = vst.msk [vmem:[#allocation3 + $0x258] sm:$0xff] %vm1365, %v1320
      %1392 = vst.msk [vmem:[#allocation3 + $0x270] sm:$0xff] %vm1365, %v1322
      %1393 = vst.msk [vmem:[#allocation3 + $0x288] sm:$0xff] %vm1365, %v1324
      %1394 = vst.msk [vmem:[#allocation3 + $0x2a0] sm:$0xff] %vm1365, %v1326
      %1395 = vst.msk [vmem:[#allocation3 + $0x2b8] sm:$0xff] %vm1365, %v1328
      %1396 = vst.msk [vmem:[#allocation3 + $0x2d0] sm:$0xff] %vm1365, %v1330
      %1397 = vst.msk [vmem:[#allocation3 + $0x2e8] sm:$0xff] %vm1365, %v1332
      %v1398 = vld [vmem:[%s689 + $0x1] sm:$0xff]
      %v1399 = vld [vmem:[%s689 + $0x9] sm:$0xff]
      %v1400 = vld [vmem:[%s689 + $0x19] sm:$0xff]
      %v1401 = vld [vmem:[%s689 + $0x21] sm:$0xff]
      %v1402 = vld [vmem:[%s689 + $0x31] sm:$0xff]
      %v1403 = vld [vmem:[%s689 + $0x39] sm:$0xff]
      %v1404 = vld [vmem:[%s689 + $0x49] sm:$0xff]
      %v1405 = vld [vmem:[%s689 + $0x51] sm:$0xff]
      %v1406 = vld [vmem:[%s689 + $0x61] sm:$0xff]
      %v1407 = vld [vmem:[%s689 + $0x69] sm:$0xff]
      %v1408 = vld [vmem:[%s689 + $0x79] sm:$0xff]
      %v1409 = vld [vmem:[%s689 + $0x81] sm:$0xff]
      %v1410 = vld [vmem:[%s689 + $0x91] sm:$0xff]
      %v1411 = vld [vmem:[%s689 + $0x99] sm:$0xff]
      %v1412 = vld [vmem:[%s689 + $0xa9] sm:$0xff]
      %v1413 = vld [vmem:[%s689 + $0xb1] sm:$0xff]
      %v1414 = vld [vmem:[%s689 + $0xc1] sm:$0xff]
      %v1415 = vld [vmem:[%s689 + $0xc9] sm:$0xff]
      %v1416 = vld [vmem:[%s689 + $0xd9] sm:$0xff]
      %v1417 = vld [vmem:[%s689 + $0xe1] sm:$0xff]
      %v1418 = vld [vmem:[%s689 + $0xf1] sm:$0xff]
      %v1419 = vld [vmem:[%s689 + $0xf9] sm:$0xff]
      %v1420 = vld [vmem:[%s689 + $0x109] sm:$0xff]
      %v1421 = vld [vmem:[%s689 + $0x111] sm:$0xff]
      %v1422 = vld [vmem:[%s689 + $0x121] sm:$0xff]
      %v1423 = vld [vmem:[%s689 + $0x129] sm:$0xff]
      %v1424 = vld [vmem:[%s689 + $0x139] sm:$0xff]
      %v1425 = vld [vmem:[%s689 + $0x141] sm:$0xff]
      %v1426 = vld [vmem:[%s689 + $0x151] sm:$0xff]
      %v1427 = vld [vmem:[%s689 + $0x159] sm:$0xff]
      %v1428 = vld [vmem:[%s689 + $0x169] sm:$0xff]
      %v1429 = vld [vmem:[%s689 + $0x171] sm:$0xff]
      %1430 = vst.msk [vmem:[#allocation3 + $0x8] sm:$0xff] %vm680, %v1398
      %1431 = vst.msk [vmem:[#allocation3 + $0x20] sm:$0xff] %vm680, %v1399
      %1432 = vst.msk [vmem:[#allocation3 + $0x38] sm:$0xff] %vm680, %v1400
      %1433 = vst.msk [vmem:[#allocation3 + $0x50] sm:$0xff] %vm680, %v1401
      %1434 = vst.msk [vmem:[#allocation3 + $0x68] sm:$0xff] %vm680, %v1402
      %1435 = vst.msk [vmem:[#allocation3 + $0x80] sm:$0xff] %vm680, %v1403
      %1436 = vst.msk [vmem:[#allocation3 + $0x98] sm:$0xff] %vm680, %v1404
      %1437 = vst.msk [vmem:[#allocation3 + $0xb0] sm:$0xff] %vm680, %v1405
      %1438 = vst.msk [vmem:[#allocation3 + $0xc8] sm:$0xff] %vm680, %v1406
      %1439 = vst.msk [vmem:[#allocation3 + $0xe0] sm:$0xff] %vm680, %v1407
      %1440 = vst.msk [vmem:[#allocation3 + $0xf8] sm:$0xff] %vm680, %v1408
      %1441 = vst.msk [vmem:[#allocation3 + $0x110] sm:$0xff] %vm680, %v1409
      %1442 = vst.msk [vmem:[#allocation3 + $0x128] sm:$0xff] %vm680, %v1410
      %1443 = vst.msk [vmem:[#allocation3 + $0x140] sm:$0xff] %vm680, %v1411
      %1444 = vst.msk [vmem:[#allocation3 + $0x158] sm:$0xff] %vm680, %v1412
      %1445 = vst.msk [vmem:[#allocation3 + $0x170] sm:$0xff] %vm680, %v1413
      %1446 = vst.msk [vmem:[#allocation3 + $0x188] sm:$0xff] %vm680, %v1414
      %1447 = vst.msk [vmem:[#allocation3 + $0x1a0] sm:$0xff] %vm680, %v1415
      %1448 = vst.msk [vmem:[#allocation3 + $0x1b8] sm:$0xff] %vm680, %v1416
      %1449 = vst.msk [vmem:[#allocation3 + $0x1d0] sm:$0xff] %vm680, %v1417
      %1450 = vst.msk [vmem:[#allocation3 + $0x1e8] sm:$0xff] %vm680, %v1418
      %1451 = vst.msk [vmem:[#allocation3 + $0x200] sm:$0xff] %vm680, %v1419
      %1452 = vst.msk [vmem:[#allocation3 + $0x218] sm:$0xff] %vm680, %v1420
      %1453 = vst.msk [vmem:[#allocation3 + $0x230] sm:$0xff] %vm680, %v1421
      %1454 = vst.msk [vmem:[#allocation3 + $0x248] sm:$0xff] %vm680, %v1422
      %1455 = vst.msk [vmem:[#allocation3 + $0x260] sm:$0xff] %vm680, %v1423
      %1456 = vst.msk [vmem:[#allocation3 + $0x278] sm:$0xff] %vm680, %v1424
      %1457 = vst.msk [vmem:[#allocation3 + $0x290] sm:$0xff] %vm680, %v1425
      %1458 = vst.msk [vmem:[#allocation3 + $0x2a8] sm:$0xff] %vm680, %v1426
      %1459 = vst.msk [vmem:[#allocation3 + $0x2c0] sm:$0xff] %vm680, %v1427
      %1460 = vst.msk [vmem:[#allocation3 + $0x2d8] sm:$0xff] %vm680, %v1428
      %1461 = vst.msk [vmem:[#allocation3 + $0x2f0] sm:$0xff] %vm680, %v1429
      %v1462 = vld [vmem:[%s689 + $0x2] sm:$0xff]
      %v1463 = vld [vmem:[%s689 + $0xa] sm:$0xff]
      %v1464 = vld [vmem:[%s689 + $0x1a] sm:$0xff]
      %v1465 = vld [vmem:[%s689 + $0x22] sm:$0xff]
      %v1466 = vld [vmem:[%s689 + $0x32] sm:$0xff]
      %v1467 = vld [vmem:[%s689 + $0x3a] sm:$0xff]
      %v1468 = vld [vmem:[%s689 + $0x4a] sm:$0xff]
      %v1469 = vld [vmem:[%s689 + $0x52] sm:$0xff]
      %v1470 = vld [vmem:[%s689 + $0x62] sm:$0xff]
      %v1471 = vld [vmem:[%s689 + $0x6a] sm:$0xff]
      %v1472 = vld [vmem:[%s689 + $0x7a] sm:$0xff]
      %v1473 = vld [vmem:[%s689 + $0x82] sm:$0xff]
      %v1474 = vld [vmem:[%s689 + $0x92] sm:$0xff]
      %v1475 = vld [vmem:[%s689 + $0x9a] sm:$0xff]
      %v1476 = vld [vmem:[%s689 + $0xaa] sm:$0xff]
      %v1477 = vld [vmem:[%s689 + $0xb2] sm:$0xff]
      %v1478 = vld [vmem:[%s689 + $0xc2] sm:$0xff]
      %v1479 = vld [vmem:[%s689 + $0xca] sm:$0xff]
      %v1480 = vld [vmem:[%s689 + $0xda] sm:$0xff]
      %v1481 = vld [vmem:[%s689 + $0xe2] sm:$0xff]
      %v1482 = vld [vmem:[%s689 + $0xf2] sm:$0xff]
      %v1483 = vld [vmem:[%s689 + $0xfa] sm:$0xff]
      %v1484 = vld [vmem:[%s689 + $0x10a] sm:$0xff]
      %v1485 = vld [vmem:[%s689 + $0x112] sm:$0xff]
      %v1486 = vld [vmem:[%s689 + $0x122] sm:$0xff]
      %v1487 = vld [vmem:[%s689 + $0x12a] sm:$0xff]
      %v1488 = vld [vmem:[%s689 + $0x13a] sm:$0xff]
      %v1489 = vld [vmem:[%s689 + $0x142] sm:$0xff]
      %v1490 = vld [vmem:[%s689 + $0x152] sm:$0xff]
      %v1491 = vld [vmem:[%s689 + $0x15a] sm:$0xff]
      %v1492 = vld [vmem:[%s689 + $0x16a] sm:$0xff]
      %v1493 = vld [vmem:[%s689 + $0x172] sm:$0xff]
      %1526 = vrot.lane.b32.xlu0 %v1462, 32
      %v1527 = vpop.permute.xlu0 %1526
      %1528 = vrot.lane.b32.xlu0 %v1463, 32
      %v1529 = vpop.permute.xlu0 %1528
      %1530 = vrot.lane.b32.xlu0 %v1464, 32
      %v1531 = vpop.permute.xlu0 %1530
      %1532 = vrot.lane.b32.xlu0 %v1465, 32
      %v1533 = vpop.permute.xlu0 %1532
      %1534 = vrot.lane.b32.xlu0 %v1466, 32
      %v1535 = vpop.permute.xlu0 %1534
      %1536 = vrot.lane.b32.xlu0 %v1467, 32
      %v1537 = vpop.permute.xlu0 %1536
      %1538 = vrot.lane.b32.xlu0 %v1468, 32
      %v1539 = vpop.permute.xlu0 %1538
      %1540 = vrot.lane.b32.xlu0 %v1469, 32
      %v1541 = vpop.permute.xlu0 %1540
      %1542 = vrot.lane.b32.xlu0 %v1470, 32
      %v1543 = vpop.permute.xlu0 %1542
      %1544 = vrot.lane.b32.xlu0 %v1471, 32
      %v1545 = vpop.permute.xlu0 %1544
      %1546 = vrot.lane.b32.xlu0 %v1472, 32
      %v1547 = vpop.permute.xlu0 %1546
      %1548 = vrot.lane.b32.xlu0 %v1473, 32
      %v1549 = vpop.permute.xlu0 %1548
      %1550 = vrot.lane.b32.xlu0 %v1474, 32
      %v1551 = vpop.permute.xlu0 %1550
      %1552 = vrot.lane.b32.xlu0 %v1475, 32
      %v1553 = vpop.permute.xlu0 %1552
      %1554 = vrot.lane.b32.xlu0 %v1476, 32
      %v1555 = vpop.permute.xlu0 %1554
      %1556 = vrot.lane.b32.xlu0 %v1477, 32
      %v1557 = vpop.permute.xlu0 %1556
      %1558 = vrot.lane.b32.xlu0 %v1478, 32
      %v1559 = vpop.permute.xlu0 %1558
      %1560 = vrot.lane.b32.xlu0 %v1479, 32
      %v1561 = vpop.permute.xlu0 %1560
      %1562 = vrot.lane.b32.xlu0 %v1480, 32
      %v1563 = vpop.permute.xlu0 %1562
      %1564 = vrot.lane.b32.xlu0 %v1481, 32
      %v1565 = vpop.permute.xlu0 %1564
      %1566 = vrot.lane.b32.xlu0 %v1482, 32
      %v1567 = vpop.permute.xlu0 %1566
      %1568 = vrot.lane.b32.xlu0 %v1483, 32
      %v1569 = vpop.permute.xlu0 %1568
      %1570 = vrot.lane.b32.xlu0 %v1484, 32
      %v1571 = vpop.permute.xlu0 %1570
      %1572 = vrot.lane.b32.xlu0 %v1485, 32
      %v1573 = vpop.permute.xlu0 %1572
      %1574 = vrot.lane.b32.xlu0 %v1486, 32
      %v1575 = vpop.permute.xlu0 %1574
      %1576 = vrot.lane.b32.xlu0 %v1487, 32
      %v1577 = vpop.permute.xlu0 %1576
      %1578 = vrot.lane.b32.xlu0 %v1488, 32
      %v1579 = vpop.permute.xlu0 %1578
      %1580 = vrot.lane.b32.xlu0 %v1489, 32
      %v1581 = vpop.permute.xlu0 %1580
      %1582 = vrot.lane.b32.xlu0 %v1490, 32
      %v1583 = vpop.permute.xlu0 %1582
      %1584 = vrot.lane.b32.xlu0 %v1491, 32
      %v1585 = vpop.permute.xlu0 %1584
      %1586 = vrot.lane.b32.xlu0 %v1492, 32
      %v1587 = vpop.permute.xlu0 %1586
      %1588 = vrot.lane.b32.xlu0 %v1493, 32
      %v1589 = vpop.permute.xlu0 %1588
      %1622 = vst.msk [vmem:[#allocation3 + $0x8] sm:$0xff] %vm979, %v1527
      %1623 = vst.msk [vmem:[#allocation3 + $0x20] sm:$0xff] %vm979, %v1529
      %1624 = vst.msk [vmem:[#allocation3 + $0x38] sm:$0xff] %vm979, %v1531
      %1625 = vst.msk [vmem:[#allocation3 + $0x50] sm:$0xff] %vm979, %v1533
      %1626 = vst.msk [vmem:[#allocation3 + $0x68] sm:$0xff] %vm979, %v1535
      %1627 = vst.msk [vmem:[#allocation3 + $0x80] sm:$0xff] %vm979, %v1537
      %1628 = vst.msk [vmem:[#allocation3 + $0x98] sm:$0xff] %vm979, %v1539
      %1629 = vst.msk [vmem:[#allocation3 + $0xb0] sm:$0xff] %vm979, %v1541
      %1630 = vst.msk [vmem:[#allocation3 + $0xc8] sm:$0xff] %vm979, %v1543
      %1631 = vst.msk [vmem:[#allocation3 + $0xe0] sm:$0xff] %vm979, %v1545
      %1632 = vst.msk [vmem:[#allocation3 + $0xf8] sm:$0xff] %vm979, %v1547
      %1633 = vst.msk [vmem:[#allocation3 + $0x110] sm:$0xff] %vm979, %v1549
      %1634 = vst.msk [vmem:[#allocation3 + $0x128] sm:$0xff] %vm979, %v1551
      %1635 = vst.msk [vmem:[#allocation3 + $0x140] sm:$0xff] %vm979, %v1553
      %1636 = vst.msk [vmem:[#allocation3 + $0x158] sm:$0xff] %vm979, %v1555
      %1637 = vst.msk [vmem:[#allocation3 + $0x170] sm:$0xff] %vm979, %v1557
      %1638 = vst.msk [vmem:[#allocation3 + $0x188] sm:$0xff] %vm979, %v1559
      %1639 = vst.msk [vmem:[#allocation3 + $0x1a0] sm:$0xff] %vm979, %v1561
      %1640 = vst.msk [vmem:[#allocation3 + $0x1b8] sm:$0xff] %vm979, %v1563
      %1641 = vst.msk [vmem:[#allocation3 + $0x1d0] sm:$0xff] %vm979, %v1565
      %1642 = vst.msk [vmem:[#allocation3 + $0x1e8] sm:$0xff] %vm979, %v1567
      %1643 = vst.msk [vmem:[#allocation3 + $0x200] sm:$0xff] %vm979, %v1569
      %1644 = vst.msk [vmem:[#allocation3 + $0x218] sm:$0xff] %vm979, %v1571
      %1645 = vst.msk [vmem:[#allocation3 + $0x230] sm:$0xff] %vm979, %v1573
      %1646 = vst.msk [vmem:[#allocation3 + $0x248] sm:$0xff] %vm979, %v1575
      %1647 = vst.msk [vmem:[#allocation3 + $0x260] sm:$0xff] %vm979, %v1577
      %1648 = vst.msk [vmem:[#allocation3 + $0x278] sm:$0xff] %vm979, %v1579
      %1649 = vst.msk [vmem:[#allocation3 + $0x290] sm:$0xff] %vm979, %v1581
      %1650 = vst.msk [vmem:[#allocation3 + $0x2a8] sm:$0xff] %vm979, %v1583
      %1651 = vst.msk [vmem:[#allocation3 + $0x2c0] sm:$0xff] %vm979, %v1585
      %1652 = vst.msk [vmem:[#allocation3 + $0x2d8] sm:$0xff] %vm979, %v1587
      %1653 = vst.msk [vmem:[#allocation3 + $0x2f0] sm:$0xff] %vm979, %v1589
      %s1654 = scalar_lea.vmem [#allocation2], 48
      %v1655 = vld [vmem:[%s1654] sm:$0xff]
      %v1656 = vld [vmem:[%s1654 + $0x8] sm:$0xff]
      %v1657 = vld [vmem:[%s1654 + $0x18] sm:$0xff]
      %v1658 = vld [vmem:[%s1654 + $0x20] sm:$0xff]
      %v1659 = vld [vmem:[%s1654 + $0x30] sm:$0xff]
      %v1660 = vld [vmem:[%s1654 + $0x38] sm:$0xff]
      %v1661 = vld [vmem:[%s1654 + $0x48] sm:$0xff]
      %v1662 = vld [vmem:[%s1654 + $0x50] sm:$0xff]
      %v1663 = vld [vmem:[%s1654 + $0x60] sm:$0xff]
      %v1664 = vld [vmem:[%s1654 + $0x68] sm:$0xff]
      %v1665 = vld [vmem:[%s1654 + $0x78] sm:$0xff]
      %v1666 = vld [vmem:[%s1654 + $0x80] sm:$0xff]
      %v1667 = vld [vmem:[%s1654 + $0x90] sm:$0xff]
      %v1668 = vld [vmem:[%s1654 + $0x98] sm:$0xff]
      %v1669 = vld [vmem:[%s1654 + $0xa8] sm:$0xff]
      %v1670 = vld [vmem:[%s1654 + $0xb0] sm:$0xff]
      %v1671 = vld [vmem:[%s1654 + $0xc0] sm:$0xff]
      %v1672 = vld [vmem:[%s1654 + $0xc8] sm:$0xff]
      %v1673 = vld [vmem:[%s1654 + $0xd8] sm:$0xff]
      %v1674 = vld [vmem:[%s1654 + $0xe0] sm:$0xff]
      %v1675 = vld [vmem:[%s1654 + $0xf0] sm:$0xff]
      %v1676 = vld [vmem:[%s1654 + $0xf8] sm:$0xff]
      %v1677 = vld [vmem:[%s1654 + $0x108] sm:$0xff]
      %v1678 = vld [vmem:[%s1654 + $0x110] sm:$0xff]
      %v1679 = vld [vmem:[%s1654 + $0x120] sm:$0xff]
      %v1680 = vld [vmem:[%s1654 + $0x128] sm:$0xff]
      %v1681 = vld [vmem:[%s1654 + $0x138] sm:$0xff]
      %v1682 = vld [vmem:[%s1654 + $0x140] sm:$0xff]
      %v1683 = vld [vmem:[%s1654 + $0x150] sm:$0xff]
      %v1684 = vld [vmem:[%s1654 + $0x158] sm:$0xff]
      %v1685 = vld [vmem:[%s1654 + $0x168] sm:$0xff]
      %v1686 = vld [vmem:[%s1654 + $0x170] sm:$0xff]
      %1719 = vrot.lane.b32.xlu0 %v1655, 64
      %v1720 = vpop.permute.xlu0 %1719
      %1721 = vrot.lane.b32.xlu0 %v1656, 64
      %v1722 = vpop.permute.xlu0 %1721
      %1723 = vrot.lane.b32.xlu0 %v1657, 64
      %v1724 = vpop.permute.xlu0 %1723
      %1725 = vrot.lane.b32.xlu0 %v1658, 64
      %v1726 = vpop.permute.xlu0 %1725
      %1727 = vrot.lane.b32.xlu0 %v1659, 64
      %v1728 = vpop.permute.xlu0 %1727
      %1729 = vrot.lane.b32.xlu0 %v1660, 64
      %v1730 = vpop.permute.xlu0 %1729
      %1731 = vrot.lane.b32.xlu0 %v1661, 64
      %v1732 = vpop.permute.xlu0 %1731
      %1733 = vrot.lane.b32.xlu0 %v1662, 64
      %v1734 = vpop.permute.xlu0 %1733
      %1735 = vrot.lane.b32.xlu0 %v1663, 64
      %v1736 = vpop.permute.xlu0 %1735
      %1737 = vrot.lane.b32.xlu0 %v1664, 64
      %v1738 = vpop.permute.xlu0 %1737
      %1739 = vrot.lane.b32.xlu0 %v1665, 64
      %v1740 = vpop.permute.xlu0 %1739
      %1741 = vrot.lane.b32.xlu0 %v1666, 64
      %v1742 = vpop.permute.xlu0 %1741
      %1743 = vrot.lane.b32.xlu0 %v1667, 64
      %v1744 = vpop.permute.xlu0 %1743
      %1745 = vrot.lane.b32.xlu0 %v1668, 64
      %v1746 = vpop.permute.xlu0 %1745
      %1747 = vrot.lane.b32.xlu0 %v1669, 64
      %v1748 = vpop.permute.xlu0 %1747
      %1749 = vrot.lane.b32.xlu0 %v1670, 64
      %v1750 = vpop.permute.xlu0 %1749
      %1751 = vrot.lane.b32.xlu0 %v1671, 64
      %v1752 = vpop.permute.xlu0 %1751
      %1753 = vrot.lane.b32.xlu0 %v1672, 64
      %v1754 = vpop.permute.xlu0 %1753
      %1755 = vrot.lane.b32.xlu0 %v1673, 64
      %v1756 = vpop.permute.xlu0 %1755
      %1757 = vrot.lane.b32.xlu0 %v1674, 64
      %v1758 = vpop.permute.xlu0 %1757
      %1759 = vrot.lane.b32.xlu0 %v1675, 64
      %v1760 = vpop.permute.xlu0 %1759
      %1761 = vrot.lane.b32.xlu0 %v1676, 64
      %v1762 = vpop.permute.xlu0 %1761
      %1763 = vrot.lane.b32.xlu0 %v1677, 64
      %v1764 = vpop.permute.xlu0 %1763
      %1765 = vrot.lane.b32.xlu0 %v1678, 64
      %v1766 = vpop.permute.xlu0 %1765
      %1767 = vrot.lane.b32.xlu0 %v1679, 64
      %v1768 = vpop.permute.xlu0 %1767
      %1769 = vrot.lane.b32.xlu0 %v1680, 64
      %v1770 = vpop.permute.xlu0 %1769
      %1771 = vrot.lane.b32.xlu0 %v1681, 64
      %v1772 = vpop.permute.xlu0 %1771
      %1773 = vrot.lane.b32.xlu0 %v1682, 64
      %v1774 = vpop.permute.xlu0 %1773
      %1775 = vrot.lane.b32.xlu0 %v1683, 64
      %v1776 = vpop.permute.xlu0 %1775
      %1777 = vrot.lane.b32.xlu0 %v1684, 64
      %v1778 = vpop.permute.xlu0 %1777
      %1779 = vrot.lane.b32.xlu0 %v1685, 64
      %v1780 = vpop.permute.xlu0 %1779
      %1781 = vrot.lane.b32.xlu0 %v1686, 64
      %v1782 = vpop.permute.xlu0 %1781
      %1815 = vst.msk [vmem:[#allocation3 + $0x8] sm:$0xff] %vm1172, %v1720
      %1816 = vst.msk [vmem:[#allocation3 + $0x20] sm:$0xff] %vm1172, %v1722
      %1817 = vst.msk [vmem:[#allocation3 + $0x38] sm:$0xff] %vm1172, %v1724
      %1818 = vst.msk [vmem:[#allocation3 + $0x50] sm:$0xff] %vm1172, %v1726
      %1819 = vst.msk [vmem:[#allocation3 + $0x68] sm:$0xff] %vm1172, %v1728
      %1820 = vst.msk [vmem:[#allocation3 + $0x80] sm:$0xff] %vm1172, %v1730
      %1821 = vst.msk [vmem:[#allocation3 + $0x98] sm:$0xff] %vm1172, %v1732
      %1822 = vst.msk [vmem:[#allocation3 + $0xb0] sm:$0xff] %vm1172, %v1734
      %1823 = vst.msk [vmem:[#allocation3 + $0xc8] sm:$0xff] %vm1172, %v1736
      %1824 = vst.msk [vmem:[#allocation3 + $0xe0] sm:$0xff] %vm1172, %v1738
      %1825 = vst.msk [vmem:[#allocation3 + $0xf8] sm:$0xff] %vm1172, %v1740
      %1826 = vst.msk [vmem:[#allocation3 + $0x110] sm:$0xff] %vm1172, %v1742
      %1827 = vst.msk [vmem:[#allocation3 + $0x128] sm:$0xff] %vm1172, %v1744
      %1828 = vst.msk [vmem:[#allocation3 + $0x140] sm:$0xff] %vm1172, %v1746
      %1829 = vst.msk [vmem:[#allocation3 + $0x158] sm:$0xff] %vm1172, %v1748
      %1830 = vst.msk [vmem:[#allocation3 + $0x170] sm:$0xff] %vm1172, %v1750
      %1831 = vst.msk [vmem:[#allocation3 + $0x188] sm:$0xff] %vm1172, %v1752
      %1832 = vst.msk [vmem:[#allocation3 + $0x1a0] sm:$0xff] %vm1172, %v1754
      %1833 = vst.msk [vmem:[#allocation3 + $0x1b8] sm:$0xff] %vm1172, %v1756
      %1834 = vst.msk [vmem:[#allocation3 + $0x1d0] sm:$0xff] %vm1172, %v1758
      %1835 = vst.msk [vmem:[#allocation3 + $0x1e8] sm:$0xff] %vm1172, %v1760
      %1836 = vst.msk [vmem:[#allocation3 + $0x200] sm:$0xff] %vm1172, %v1762
      %1837 = vst.msk [vmem:[#allocation3 + $0x218] sm:$0xff] %vm1172, %v1764
      %1838 = vst.msk [vmem:[#allocation3 + $0x230] sm:$0xff] %vm1172, %v1766
      %1839 = vst.msk [vmem:[#allocation3 + $0x248] sm:$0xff] %vm1172, %v1768
      %1840 = vst.msk [vmem:[#allocation3 + $0x260] sm:$0xff] %vm1172, %v1770
      %1841 = vst.msk [vmem:[#allocation3 + $0x278] sm:$0xff] %vm1172, %v1772
      %1842 = vst.msk [vmem:[#allocation3 + $0x290] sm:$0xff] %vm1172, %v1774
      %1843 = vst.msk [vmem:[#allocation3 + $0x2a8] sm:$0xff] %vm1172, %v1776
      %1844 = vst.msk [vmem:[#allocation3 + $0x2c0] sm:$0xff] %vm1172, %v1778
      %1845 = vst.msk [vmem:[#allocation3 + $0x2d8] sm:$0xff] %vm1172, %v1780
      %1846 = vst.msk [vmem:[#allocation3 + $0x2f0] sm:$0xff] %vm1172, %v1782
      %v1847 = vld [vmem:[%s1654 + $0x1] sm:$0xff]
      %v1848 = vld [vmem:[%s1654 + $0x9] sm:$0xff]
      %v1849 = vld [vmem:[%s1654 + $0x19] sm:$0xff]
      %v1850 = vld [vmem:[%s1654 + $0x21] sm:$0xff]
      %v1851 = vld [vmem:[%s1654 + $0x31] sm:$0xff]
      %v1852 = vld [vmem:[%s1654 + $0x39] sm:$0xff]
      %v1853 = vld [vmem:[%s1654 + $0x49] sm:$0xff]
      %v1854 = vld [vmem:[%s1654 + $0x51] sm:$0xff]
      %v1855 = vld [vmem:[%s1654 + $0x61] sm:$0xff]
      %v1856 = vld [vmem:[%s1654 + $0x69] sm:$0xff]
      %v1857 = vld [vmem:[%s1654 + $0x79] sm:$0xff]
      %v1858 = vld [vmem:[%s1654 + $0x81] sm:$0xff]
      %v1859 = vld [vmem:[%s1654 + $0x91] sm:$0xff]
      %v1860 = vld [vmem:[%s1654 + $0x99] sm:$0xff]
      %v1861 = vld [vmem:[%s1654 + $0xa9] sm:$0xff]
      %v1862 = vld [vmem:[%s1654 + $0xb1] sm:$0xff]
      %v1863 = vld [vmem:[%s1654 + $0xc1] sm:$0xff]
      %v1864 = vld [vmem:[%s1654 + $0xc9] sm:$0xff]
      %v1865 = vld [vmem:[%s1654 + $0xd9] sm:$0xff]
      %v1866 = vld [vmem:[%s1654 + $0xe1] sm:$0xff]
      %v1867 = vld [vmem:[%s1654 + $0xf1] sm:$0xff]
      %v1868 = vld [vmem:[%s1654 + $0xf9] sm:$0xff]
      %v1869 = vld [vmem:[%s1654 + $0x109] sm:$0xff]
      %v1870 = vld [vmem:[%s1654 + $0x111] sm:$0xff]
      %v1871 = vld [vmem:[%s1654 + $0x121] sm:$0xff]
      %v1872 = vld [vmem:[%s1654 + $0x129] sm:$0xff]
      %v1873 = vld [vmem:[%s1654 + $0x139] sm:$0xff]
      %v1874 = vld [vmem:[%s1654 + $0x141] sm:$0xff]
      %v1875 = vld [vmem:[%s1654 + $0x151] sm:$0xff]
      %v1876 = vld [vmem:[%s1654 + $0x159] sm:$0xff]
      %v1877 = vld [vmem:[%s1654 + $0x169] sm:$0xff]
      %v1878 = vld [vmem:[%s1654 + $0x171] sm:$0xff]
      %1911 = vrot.lane.b32.xlu0 %v1847, 96
      %v1912 = vpop.permute.xlu0 %1911
      %1913 = vrot.lane.b32.xlu0 %v1848, 96
      %v1914 = vpop.permute.xlu0 %1913
      %1915 = vrot.lane.b32.xlu0 %v1849, 96
      %v1916 = vpop.permute.xlu0 %1915
      %1917 = vrot.lane.b32.xlu0 %v1850, 96
      %v1918 = vpop.permute.xlu0 %1917
      %1919 = vrot.lane.b32.xlu0 %v1851, 96
      %v1920 = vpop.permute.xlu0 %1919
      %1921 = vrot.lane.b32.xlu0 %v1852, 96
      %v1922 = vpop.permute.xlu0 %1921
      %1923 = vrot.lane.b32.xlu0 %v1853, 96
      %v1924 = vpop.permute.xlu0 %1923
      %1925 = vrot.lane.b32.xlu0 %v1854, 96
      %v1926 = vpop.permute.xlu0 %1925
      %1927 = vrot.lane.b32.xlu0 %v1855, 96
      %v1928 = vpop.permute.xlu0 %1927
      %1929 = vrot.lane.b32.xlu0 %v1856, 96
      %v1930 = vpop.permute.xlu0 %1929
      %1931 = vrot.lane.b32.xlu0 %v1857, 96
      %v1932 = vpop.permute.xlu0 %1931
      %1933 = vrot.lane.b32.xlu0 %v1858, 96
      %v1934 = vpop.permute.xlu0 %1933
      %1935 = vrot.lane.b32.xlu0 %v1859, 96
      %v1936 = vpop.permute.xlu0 %1935
      %1937 = vrot.lane.b32.xlu0 %v1860, 96
      %v1938 = vpop.permute.xlu0 %1937
      %1939 = vrot.lane.b32.xlu0 %v1861, 96
      %v1940 = vpop.permute.xlu0 %1939
      %1941 = vrot.lane.b32.xlu0 %v1862, 96
      %v1942 = vpop.permute.xlu0 %1941
      %1943 = vrot.lane.b32.xlu0 %v1863, 96
      %v1944 = vpop.permute.xlu0 %1943
      %1945 = vrot.lane.b32.xlu0 %v1864, 96
      %v1946 = vpop.permute.xlu0 %1945
      %1947 = vrot.lane.b32.xlu0 %v1865, 96
      %v1948 = vpop.permute.xlu0 %1947
      %1949 = vrot.lane.b32.xlu0 %v1866, 96
      %v1950 = vpop.permute.xlu0 %1949
      %1951 = vrot.lane.b32.xlu0 %v1867, 96
      %v1952 = vpop.permute.xlu0 %1951
      %1953 = vrot.lane.b32.xlu0 %v1868, 96
      %v1954 = vpop.permute.xlu0 %1953
      %1955 = vrot.lane.b32.xlu0 %v1869, 96
      %v1956 = vpop.permute.xlu0 %1955
      %1957 = vrot.lane.b32.xlu0 %v1870, 96
      %v1958 = vpop.permute.xlu0 %1957
      %1959 = vrot.lane.b32.xlu0 %v1871, 96
      %v1960 = vpop.permute.xlu0 %1959
      %1961 = vrot.lane.b32.xlu0 %v1872, 96
      %v1962 = vpop.permute.xlu0 %1961
      %1963 = vrot.lane.b32.xlu0 %v1873, 96
      %v1964 = vpop.permute.xlu0 %1963
      %1965 = vrot.lane.b32.xlu0 %v1874, 96
      %v1966 = vpop.permute.xlu0 %1965
      %1967 = vrot.lane.b32.xlu0 %v1875, 96
      %v1968 = vpop.permute.xlu0 %1967
      %1969 = vrot.lane.b32.xlu0 %v1876, 96
      %v1970 = vpop.permute.xlu0 %1969
      %1971 = vrot.lane.b32.xlu0 %v1877, 96
      %v1972 = vpop.permute.xlu0 %1971
      %1973 = vrot.lane.b32.xlu0 %v1878, 96
      %v1974 = vpop.permute.xlu0 %1973
      %2007 = vst.msk [vmem:[#allocation3 + $0x8] sm:$0xff] %vm1365, %v1912
      %2008 = vst.msk [vmem:[#allocation3 + $0x20] sm:$0xff] %vm1365, %v1914
      %2009 = vst.msk [vmem:[#allocation3 + $0x38] sm:$0xff] %vm1365, %v1916
      %2010 = vst.msk [vmem:[#allocation3 + $0x50] sm:$0xff] %vm1365, %v1918
      %2011 = vst.msk [vmem:[#allocation3 + $0x68] sm:$0xff] %vm1365, %v1920
      %2012 = vst.msk [vmem:[#allocation3 + $0x80] sm:$0xff] %vm1365, %v1922
      %2013 = vst.msk [vmem:[#allocation3 + $0x98] sm:$0xff] %vm1365, %v1924
      %2014 = vst.msk [vmem:[#allocation3 + $0xb0] sm:$0xff] %vm1365, %v1926
      %2015 = vst.msk [vmem:[#allocation3 + $0xc8] sm:$0xff] %vm1365, %v1928
      %2016 = vst.msk [vmem:[#allocation3 + $0xe0] sm:$0xff] %vm1365, %v1930
      %2017 = vst.msk [vmem:[#allocation3 + $0xf8] sm:$0xff] %vm1365, %v1932
      %2018 = vst.msk [vmem:[#allocation3 + $0x110] sm:$0xff] %vm1365, %v1934
      %2019 = vst.msk [vmem:[#allocation3 + $0x128] sm:$0xff] %vm1365, %v1936
      %2020 = vst.msk [vmem:[#allocation3 + $0x140] sm:$0xff] %vm1365, %v1938
      %2021 = vst.msk [vmem:[#allocation3 + $0x158] sm:$0xff] %vm1365, %v1940
      %2022 = vst.msk [vmem:[#allocation3 + $0x170] sm:$0xff] %vm1365, %v1942
      %2023 = vst.msk [vmem:[#allocation3 + $0x188] sm:$0xff] %vm1365, %v1944
      %2024 = vst.msk [vmem:[#allocation3 + $0x1a0] sm:$0xff] %vm1365, %v1946
      %2025 = vst.msk [vmem:[#allocation3 + $0x1b8] sm:$0xff] %vm1365, %v1948
      %2026 = vst.msk [vmem:[#allocation3 + $0x1d0] sm:$0xff] %vm1365, %v1950
      %2027 = vst.msk [vmem:[#allocation3 + $0x1e8] sm:$0xff] %vm1365, %v1952
      %2028 = vst.msk [vmem:[#allocation3 + $0x200] sm:$0xff] %vm1365, %v1954
      %2029 = vst.msk [vmem:[#allocation3 + $0x218] sm:$0xff] %vm1365, %v1956
      %2030 = vst.msk [vmem:[#allocation3 + $0x230] sm:$0xff] %vm1365, %v1958
      %2031 = vst.msk [vmem:[#allocation3 + $0x248] sm:$0xff] %vm1365, %v1960
      %2032 = vst.msk [vmem:[#allocation3 + $0x260] sm:$0xff] %vm1365, %v1962
      %2033 = vst.msk [vmem:[#allocation3 + $0x278] sm:$0xff] %vm1365, %v1964
      %2034 = vst.msk [vmem:[#allocation3 + $0x290] sm:$0xff] %vm1365, %v1966
      %2035 = vst.msk [vmem:[#allocation3 + $0x2a8] sm:$0xff] %vm1365, %v1968
      %2036 = vst.msk [vmem:[#allocation3 + $0x2c0] sm:$0xff] %vm1365, %v1970
      %2037 = vst.msk [vmem:[#allocation3 + $0x2d8] sm:$0xff] %vm1365, %v1972
      %2038 = vst.msk [vmem:[#allocation3 + $0x2f0] sm:$0xff] %vm1365, %v1974
      %v2039 = vld [vmem:[%s1654 + $0x2] sm:$0xff]
      %v2040 = vld [vmem:[%s1654 + $0xa] sm:$0xff]
      %v2041 = vld [vmem:[%s1654 + $0x1a] sm:$0xff]
      %v2042 = vld [vmem:[%s1654 + $0x22] sm:$0xff]
      %v2043 = vld [vmem:[%s1654 + $0x32] sm:$0xff]
      %v2044 = vld [vmem:[%s1654 + $0x3a] sm:$0xff]
      %v2045 = vld [vmem:[%s1654 + $0x4a] sm:$0xff]
      %v2046 = vld [vmem:[%s1654 + $0x52] sm:$0xff]
      %v2047 = vld [vmem:[%s1654 + $0x62] sm:$0xff]
      %v2048 = vld [vmem:[%s1654 + $0x6a] sm:$0xff]
      %v2049 = vld [vmem:[%s1654 + $0x7a] sm:$0xff]
      %v2050 = vld [vmem:[%s1654 + $0x82] sm:$0xff]
      %v2051 = vld [vmem:[%s1654 + $0x92] sm:$0xff]
      %v2052 = vld [vmem:[%s1654 + $0x9a] sm:$0xff]
      %v2053 = vld [vmem:[%s1654 + $0xaa] sm:$0xff]
      %v2054 = vld [vmem:[%s1654 + $0xb2] sm:$0xff]
      %v2055 = vld [vmem:[%s1654 + $0xc2] sm:$0xff]
      %v2056 = vld [vmem:[%s1654 + $0xca] sm:$0xff]
      %v2057 = vld [vmem:[%s1654 + $0xda] sm:$0xff]
      %v2058 = vld [vmem:[%s1654 + $0xe2] sm:$0xff]
      %v2059 = vld [vmem:[%s1654 + $0xf2] sm:$0xff]
      %v2060 = vld [vmem:[%s1654 + $0xfa] sm:$0xff]
      %v2061 = vld [vmem:[%s1654 + $0x10a] sm:$0xff]
      %v2062 = vld [vmem:[%s1654 + $0x112] sm:$0xff]
      %v2063 = vld [vmem:[%s1654 + $0x122] sm:$0xff]
      %v2064 = vld [vmem:[%s1654 + $0x12a] sm:$0xff]
      %v2065 = vld [vmem:[%s1654 + $0x13a] sm:$0xff]
      %v2066 = vld [vmem:[%s1654 + $0x142] sm:$0xff]
      %v2067 = vld [vmem:[%s1654 + $0x152] sm:$0xff]
      %v2068 = vld [vmem:[%s1654 + $0x15a] sm:$0xff]
      %v2069 = vld [vmem:[%s1654 + $0x16a] sm:$0xff]
      %v2070 = vld [vmem:[%s1654 + $0x172] sm:$0xff]
      %2071 = vst.msk [vmem:[#allocation3 + $0x10] sm:$0xff] %vm680, %v2039
      %2072 = vst.msk [vmem:[#allocation3 + $0x28] sm:$0xff] %vm680, %v2040
      %2073 = vst.msk [vmem:[#allocation3 + $0x40] sm:$0xff] %vm680, %v2041
      %2074 = vst.msk [vmem:[#allocation3 + $0x58] sm:$0xff] %vm680, %v2042
      %2075 = vst.msk [vmem:[#allocation3 + $0x70] sm:$0xff] %vm680, %v2043
      %2076 = vst.msk [vmem:[#allocation3 + $0x88] sm:$0xff] %vm680, %v2044
      %2077 = vst.msk [vmem:[#allocation3 + $0xa0] sm:$0xff] %vm680, %v2045
      %2078 = vst.msk [vmem:[#allocation3 + $0xb8] sm:$0xff] %vm680, %v2046
      %2079 = vst.msk [vmem:[#allocation3 + $0xd0] sm:$0xff] %vm680, %v2047
      %2080 = vst.msk [vmem:[#allocation3 + $0xe8] sm:$0xff] %vm680, %v2048
      %2081 = vst.msk [vmem:[#allocation3 + $0x100] sm:$0xff] %vm680, %v2049
      %2082 = vst.msk [vmem:[#allocation3 + $0x118] sm:$0xff] %vm680, %v2050
      %2083 = vst.msk [vmem:[#allocation3 + $0x130] sm:$0xff] %vm680, %v2051
      %2084 = vst.msk [vmem:[#allocation3 + $0x148] sm:$0xff] %vm680, %v2052
      %2085 = vst.msk [vmem:[#allocation3 + $0x160] sm:$0xff] %vm680, %v2053
      %2086 = vst.msk [vmem:[#allocation3 + $0x178] sm:$0xff] %vm680, %v2054
      %2087 = vst.msk [vmem:[#allocation3 + $0x190] sm:$0xff] %vm680, %v2055
      %2088 = vst.msk [vmem:[#allocation3 + $0x1a8] sm:$0xff] %vm680, %v2056
      %2089 = vst.msk [vmem:[#allocation3 + $0x1c0] sm:$0xff] %vm680, %v2057
      %2090 = vst.msk [vmem:[#allocation3 + $0x1d8] sm:$0xff] %vm680, %v2058
      %2091 = vst.msk [vmem:[#allocation3 + $0x1f0] sm:$0xff] %vm680, %v2059
      %2092 = vst.msk [vmem:[#allocation3 + $0x208] sm:$0xff] %vm680, %v2060
      %2093 = vst.msk [vmem:[#allocation3 + $0x220] sm:$0xff] %vm680, %v2061
      %2094 = vst.msk [vmem:[#allocation3 + $0x238] sm:$0xff] %vm680, %v2062
      %2095 = vst.msk [vmem:[#allocation3 + $0x250] sm:$0xff] %vm680, %v2063
      %2096 = vst.msk [vmem:[#allocation3 + $0x268] sm:$0xff] %vm680, %v2064
      %2097 = vst.msk [vmem:[#allocation3 + $0x280] sm:$0xff] %vm680, %v2065
      %2098 = vst.msk [vmem:[#allocation3 + $0x298] sm:$0xff] %vm680, %v2066
      %2099 = vst.msk [vmem:[#allocation3 + $0x2b0] sm:$0xff] %vm680, %v2067
      %2100 = vst.msk [vmem:[#allocation3 + $0x2c8] sm:$0xff] %vm680, %v2068
      %2101 = vst.msk [vmem:[#allocation3 + $0x2e0] sm:$0xff] %vm680, %v2069
      %2102 = vst.msk [vmem:[#allocation3 + $0x2f8] sm:$0xff] %vm680, %v2070
      %v2103 = vld [vmem:[#allocation3] sm:$0xff]
      %v2104 = vld [vmem:[#allocation3 + $0x8] sm:$0xff]
      %v2105 = vld [vmem:[#allocation3 + $0x10] sm:$0xff]
      %v2106 = vld [vmem:[#allocation3 + $0x18] sm:$0xff]
      %v2107 = vld [vmem:[#allocation3 + $0x20] sm:$0xff]
      %v2108 = vld [vmem:[#allocation3 + $0x28] sm:$0xff]
      %v2109 = vld [vmem:[#allocation3 + $0x30] sm:$0xff]
      %v2110 = vld [vmem:[#allocation3 + $0x38] sm:$0xff]
      %v2111 = vld [vmem:[#allocation3 + $0x40] sm:$0xff]
      %v2112 = vld [vmem:[#allocation3 + $0x48] sm:$0xff]
      %v2113 = vld [vmem:[#allocation3 + $0x50] sm:$0xff]
      %v2114 = vld [vmem:[#allocation3 + $0x58] sm:$0xff]
      %v2115 = vld [vmem:[#allocation3 + $0x60] sm:$0xff]
      %v2116 = vld [vmem:[#allocation3 + $0x68] sm:$0xff]
      %v2117 = vld [vmem:[#allocation3 + $0x70] sm:$0xff]
      %v2118 = vld [vmem:[#allocation3 + $0x78] sm:$0xff]
      %v2119 = vld [vmem:[#allocation3 + $0x80] sm:$0xff]
      %v2120 = vld [vmem:[#allocation3 + $0x88] sm:$0xff]
      %v2121 = vld [vmem:[#allocation3 + $0x90] sm:$0xff]
      %v2122 = vld [vmem:[#allocation3 + $0x98] sm:$0xff]
      %v2123 = vld [vmem:[#allocation3 + $0xa0] sm:$0xff]
      %v2124 = vld [vmem:[#allocation3 + $0xa8] sm:$0xff]
      %v2125 = vld [vmem:[#allocation3 + $0xb0] sm:$0xff]
      %v2126 = vld [vmem:[#allocation3 + $0xb8] sm:$0xff]
      %v2127 = vld [vmem:[#allocation3 + $0xc0] sm:$0xff]
      %v2128 = vld [vmem:[#allocation3 + $0xc8] sm:$0xff]
      %v2129 = vld [vmem:[#allocation3 + $0xd0] sm:$0xff]
      %v2130 = vld [vmem:[#allocation3 + $0xd8] sm:$0xff]
      %v2131 = vld [vmem:[#allocation3 + $0xe0] sm:$0xff]
      %v2132 = vld [vmem:[#allocation3 + $0xe8] sm:$0xff]
      %v2133 = vld [vmem:[#allocation3 + $0xf0] sm:$0xff]
      %v2134 = vld [vmem:[#allocation3 + $0xf8] sm:$0xff]
      %v2135 = vld [vmem:[#allocation3 + $0x100] sm:$0xff]
      %v2136 = vld [vmem:[#allocation3 + $0x108] sm:$0xff]
      %v2137 = vld [vmem:[#allocation3 + $0x110] sm:$0xff]
      %v2138 = vld [vmem:[#allocation3 + $0x118] sm:$0xff]
      %v2139 = vld [vmem:[#allocation3 + $0x120] sm:$0xff]
      %v2140 = vld [vmem:[#allocation3 + $0x128] sm:$0xff]
      %v2141 = vld [vmem:[#allocation3 + $0x130] sm:$0xff]
      %v2142 = vld [vmem:[#allocation3 + $0x138] sm:$0xff]
      %v2143 = vld [vmem:[#allocation3 + $0x140] sm:$0xff]
      %v2144 = vld [vmem:[#allocation3 + $0x148] sm:$0xff]
      %v2145 = vld [vmem:[#allocation3 + $0x150] sm:$0xff]
      %v2146 = vld [vmem:[#allocation3 + $0x158] sm:$0xff]
      %v2147 = vld [vmem:[#allocation3 + $0x160] sm:$0xff]
      %v2148 = vld [vmem:[#allocation3 + $0x168] sm:$0xff]
      %v2149 = vld [vmem:[#allocation3 + $0x170] sm:$0xff]
      %v2150 = vld [vmem:[#allocation3 + $0x178] sm:$0xff]
      %v2151 = vld [vmem:[#allocation3 + $0x180] sm:$0xff]
      %v2152 = vld [vmem:[#allocation3 + $0x188] sm:$0xff]
      %v2153 = vld [vmem:[#allocation3 + $0x190] sm:$0xff]
      %v2154 = vld [vmem:[#allocation3 + $0x198] sm:$0xff]
      %v2155 = vld [vmem:[#allocation3 + $0x1a0] sm:$0xff]
      %v2156 = vld [vmem:[#allocation3 + $0x1a8] sm:$0xff]
      %v2157 = vld [vmem:[#allocation3 + $0x1b0] sm:$0xff]
      %v2158 = vld [vmem:[#allocation3 + $0x1b8] sm:$0xff]
      %v2159 = vld [vmem:[#allocation3 + $0x1c0] sm:$0xff]
      %v2160 = vld [vmem:[#allocation3 + $0x1c8] sm:$0xff]
      %v2161 = vld [vmem:[#allocation3 + $0x1d0] sm:$0xff]
      %v2162 = vld [vmem:[#allocation3 + $0x1d8] sm:$0xff]
      %v2163 = vld [vmem:[#allocation3 + $0x1e0] sm:$0xff]
      %v2164 = vld [vmem:[#allocation3 + $0x1e8] sm:$0xff]
      %v2165 = vld [vmem:[#allocation3 + $0x1f0] sm:$0xff]
      %v2166 = vld [vmem:[#allocation3 + $0x1f8] sm:$0xff]
      %v2167 = vld [vmem:[#allocation3 + $0x200] sm:$0xff]
      %v2168 = vld [vmem:[#allocation3 + $0x208] sm:$0xff]
      %v2169 = vld [vmem:[#allocation3 + $0x210] sm:$0xff]
      %v2170 = vld [vmem:[#allocation3 + $0x218] sm:$0xff]
      %v2171 = vld [vmem:[#allocation3 + $0x220] sm:$0xff]
      %v2172 = vld [vmem:[#allocation3 + $0x228] sm:$0xff]
      %v2173 = vld [vmem:[#allocation3 + $0x230] sm:$0xff]
      %v2174 = vld [vmem:[#allocation3 + $0x238] sm:$0xff]
      %v2175 = vld [vmem:[#allocation3 + $0x240] sm:$0xff]
      %v2176 = vld [vmem:[#allocation3 + $0x248] sm:$0xff]
      %v2177 = vld [vmem:[#allocation3 + $0x250] sm:$0xff]
      %v2178 = vld [vmem:[#allocation3 + $0x258] sm:$0xff]
      %v2179 = vld [vmem:[#allocation3 + $0x260] sm:$0xff]
      %v2180 = vld [vmem:[#allocation3 + $0x268] sm:$0xff]
      %v2181 = vld [vmem:[#allocation3 + $0x270] sm:$0xff]
      %v2182 = vld [vmem:[#allocation3 + $0x278] sm:$0xff]
      %v2183 = vld [vmem:[#allocation3 + $0x280] sm:$0xff]
      %v2184 = vld [vmem:[#allocation3 + $0x288] sm:$0xff]
      %v2185 = vld [vmem:[#allocation3 + $0x290] sm:$0xff]
      %v2186 = vld [vmem:[#allocation3 + $0x298] sm:$0xff]
      %v2187 = vld [vmem:[#allocation3 + $0x2a0] sm:$0xff]
      %v2188 = vld [vmem:[#allocation3 + $0x2a8] sm:$0xff]
      %v2189 = vld [vmem:[#allocation3 + $0x2b0] sm:$0xff]
      %v2190 = vld [vmem:[#allocation3 + $0x2b8] sm:$0xff]
      %v2191 = vld [vmem:[#allocation3 + $0x2c0] sm:$0xff]
      %v2192 = vld [vmem:[#allocation3 + $0x2c8] sm:$0xff]
      %v2193 = vld [vmem:[#allocation3 + $0x2d0] sm:$0xff]
      %v2194 = vld [vmem:[#allocation3 + $0x2d8] sm:$0xff]
      %v2195 = vld [vmem:[#allocation3 + $0x2e0] sm:$0xff]
      %v2196 = vld [vmem:[#allocation3 + $0x2e8] sm:$0xff]
      %v2197 = vld [vmem:[#allocation3 + $0x2f0] sm:$0xff]
      %v2198 = vld [vmem:[#allocation3 + $0x2f8] sm:$0xff]
      %v2199 = vld [vmem:[%s2] sm:$0xff]
      %v2200 = vld [vmem:[%s2 + $0x8] sm:$0xff]
      %v2201 = vld [vmem:[%s2 + $0x10] sm:$0xff]
      %v2202 = vld [vmem:[%s2 + $0x18] sm:$0xff]
      %v2203 = vld [vmem:[%s2 + $0x20] sm:$0xff]
      %v2204 = vld [vmem:[%s2 + $0x28] sm:$0xff]
      %v2205 = vld [vmem:[%s2 + $0x30] sm:$0xff]
      %v2206 = vld [vmem:[%s2 + $0x38] sm:$0xff]
      %v2207 = vld [vmem:[%s2 + $0x40] sm:$0xff]
      %v2208 = vld [vmem:[%s2 + $0x48] sm:$0xff]
      %v2209 = vld [vmem:[%s2 + $0x50] sm:$0xff]
      %v2210 = vld [vmem:[%s2 + $0x58] sm:$0xff]
      %v2211 = vld [vmem:[%s2 + $0x60] sm:$0xff]
      %v2212 = vld [vmem:[%s2 + $0x68] sm:$0xff]
      %v2213 = vld [vmem:[%s2 + $0x70] sm:$0xff]
      %v2214 = vld [vmem:[%s2 + $0x78] sm:$0xff]
      %v2215 = vld [vmem:[%s2 + $0x80] sm:$0xff]
      %v2216 = vld [vmem:[%s2 + $0x88] sm:$0xff]
      %v2217 = vld [vmem:[%s2 + $0x90] sm:$0xff]
      %v2218 = vld [vmem:[%s2 + $0x98] sm:$0xff]
      %v2219 = vld [vmem:[%s2 + $0xa0] sm:$0xff]
      %v2220 = vld [vmem:[%s2 + $0xa8] sm:$0xff]
      %v2221 = vld [vmem:[%s2 + $0xb0] sm:$0xff]
      %v2222 = vld [vmem:[%s2 + $0xb8] sm:$0xff]
      %v2223 = vld [vmem:[%s2 + $0xc0] sm:$0xff]
      %v2224 = vld [vmem:[%s2 + $0xc8] sm:$0xff]
      %v2225 = vld [vmem:[%s2 + $0xd0] sm:$0xff]
      %v2226 = vld [vmem:[%s2 + $0xd8] sm:$0xff]
      %v2227 = vld [vmem:[%s2 + $0xe0] sm:$0xff]
      %v2228 = vld [vmem:[%s2 + $0xe8] sm:$0xff]
      %v2229 = vld [vmem:[%s2 + $0xf0] sm:$0xff]
      %v2230 = vld [vmem:[%s2 + $0xf8] sm:$0xff]
      %v2231 = vld [vmem:[%s2 + $0x100] sm:$0xff]
      %v2232 = vld [vmem:[%s2 + $0x108] sm:$0xff]
      %v2233 = vld [vmem:[%s2 + $0x110] sm:$0xff]
      %v2234 = vld [vmem:[%s2 + $0x118] sm:$0xff]
      %v2235 = vld [vmem:[%s5] sm:$0x1]
      %v2237 = vlaneseq
      %v2238 = vshrl.u32 %v2237, 7
      %v2239 = vsub.s32 0, %v2238
      %v2240 = vrot.slane %v2235, %v2239
      %v2243 = vsel %vm680, %v2105, 0
      %v2246 = vsel %vm680, %v2108, 0
      %v2249 = vsel %vm680, %v2111, 0
      %v2252 = vsel %vm680, %v2114, 0
      %v2255 = vsel %vm680, %v2117, 0
      %v2258 = vsel %vm680, %v2120, 0
      %v2261 = vsel %vm680, %v2123, 0
      %v2264 = vsel %vm680, %v2126, 0
      %v2267 = vsel %vm680, %v2129, 0
      %v2270 = vsel %vm680, %v2132, 0
      %v2273 = vsel %vm680, %v2135, 0
      %v2276 = vsel %vm680, %v2138, 0
      %v2279 = vsel %vm680, %v2141, 0
      %v2282 = vsel %vm680, %v2144, 0
      %v2285 = vsel %vm680, %v2147, 0
      %v2288 = vsel %vm680, %v2150, 0
      %v2291 = vsel %vm680, %v2153, 0
      %v2294 = vsel %vm680, %v2156, 0
      %v2297 = vsel %vm680, %v2159, 0
      %v2300 = vsel %vm680, %v2162, 0
      %v2303 = vsel %vm680, %v2165, 0
      %v2306 = vsel %vm680, %v2168, 0
      %v2309 = vsel %vm680, %v2171, 0
      %v2312 = vsel %vm680, %v2174, 0
      %v2315 = vsel %vm680, %v2177, 0
      %v2318 = vsel %vm680, %v2180, 0
      %v2321 = vsel %vm680, %v2183, 0
      %v2324 = vsel %vm680, %v2186, 0
      %v2327 = vsel %vm680, %v2189, 0
      %v2330 = vsel %vm680, %v2192, 0
      %v2333 = vsel %vm680, %v2195, 0
      %v2336 = vsel %vm680, %v2198, 0
      %2338 = vmatprep.subr.mxu0 0.0
      %2339 = vmatpush1.msra.mxu0 %v2214
      %2340 = vmatprep.subr.mxu0 0.0
      %2341 = vmatpush1.msra.mxu0 %v2213
      %2342 = vmatprep.subr.mxu0 0.0
      %2343 = vmatpush1.msra.mxu0 %v2212
      %2344 = vmatprep.subr.mxu0 0.0
      %2345 = vmatpush1.msra.mxu0 %v2211
      %2346 = vmatprep.subr.mxu0 0.0
      %2347 = vmatpush1.msra.mxu0 %v2210
      %2348 = vmatprep.subr.mxu0 0.0
      %2349 = vmatpush1.msra.mxu0 %v2209
      %2350 = vmatprep.subr.mxu0 0.0
      %2351 = vmatpush1.msra.mxu0 %v2208
      %2352 = vmatprep.subr.mxu0 0.0
      %2353 = vmatpush1.msra.mxu0 %v2207
      %2354 = vmatprep.subr.mxu0 0.0
      %2355 = vmatpush1.msra.mxu0 %v2206
      %2356 = vmatprep.subr.mxu0 0.0
      %2357 = vmatpush1.msra.mxu0 %v2205
      %2358 = vmatprep.subr.mxu0 0.0
      %2359 = vmatpush1.msra.mxu0 %v2204
      %2360 = vmatprep.subr.mxu0 0.0
      %2361 = vmatpush1.msra.mxu0 %v2203
      %2362 = vmatprep.subr.mxu0 0.0
      %2363 = vmatpush1.msra.mxu0 %v2202
      %2364 = vmatprep.subr.mxu0 0.0
      %2365 = vmatpush1.msra.mxu0 %v2201
      %2366 = vmatprep.subr.mxu0 0.0
      %2367 = vmatpush1.msra.mxu0 %v2200
      %2368 = vmatprep.subr.mxu0 0.0
      %2369 = vmatpush1.msra.mxu0 %v2199
      %2370 = vmatprep.subr.mxu0 0.0
      %2371 = vmatpush2.msra.mxu0 %v2230
      %2372 = vmatprep.subr.mxu0 0.0
      %2373 = vmatpush2.msra.mxu0 %v2229
      %2374 = vmatprep.subr.mxu0 0.0
      %2375 = vmatpush2.msra.mxu0 %v2228
      %2376 = vmatprep.subr.mxu0 0.0
      %2377 = vmatpush2.msra.mxu0 %v2227
      %2378 = vmatprep.subr.mxu0 0.0
      %2379 = vmatpush2.msra.mxu0 %v2226
      %2380 = vmatprep.subr.mxu0 0.0
      %2381 = vmatpush2.msra.mxu0 %v2225
      %2382 = vmatprep.subr.mxu0 0.0
      %2383 = vmatpush2.msra.mxu0 %v2224
      %2384 = vmatprep.subr.mxu0 0.0
      %2385 = vmatpush2.msra.mxu0 %v2223
      %2386 = vmatprep.subr.mxu0 0.0
      %2387 = vmatpush2.msra.mxu0 %v2222
      %2388 = vmatprep.subr.mxu0 0.0
      %2389 = vmatpush2.msra.mxu0 %v2221
      %2390 = vmatprep.subr.mxu0 0.0
      %2391 = vmatpush2.msra.mxu0 %v2220
      %2392 = vmatprep.subr.mxu0 0.0
      %2393 = vmatpush2.msra.mxu0 %v2219
      %2394 = vmatprep.subr.mxu0 0.0
      %2395 = vmatpush2.msra.mxu0 %v2218
      %2396 = vmatprep.subr.mxu0 0.0
      %2397 = vmatpush2.msra.mxu0 %v2217
      %2398 = vmatprep.subr.mxu0 0.0
      %2399 = vmatpush2.msra.mxu0 %v2216
      %2400 = vmatprep.subr.mxu0 0.0
      %2401 = vmatpush2.msra.mxu0 %v2215
      %2402 = vmatprep.mubr.f32.mxu0 %v2104
      %2403 = vmatmul.mubr.f32.gmra.mxu0 %v2103
      %v2404 = vpop.f32.mrf.mxu0
      %v2405 = vadd.f32 %v2240, %v2404
      %v2406 = vpop.f32.mrf.mxu0
      %2407 = vmatprep.mubr.f32.mxu0 %v2107
      %2408 = vmatmul.mubr.f32.gmra.mxu0 %v2106
      %v2409 = vpop.f32.mrf.mxu0
      %v2410 = vadd.f32 %v2240, %v2409
      %v2411 = vpop.f32.mrf.mxu0
      %2412 = vmatprep.mubr.f32.mxu0 %v2110
      %2413 = vmatmul.mubr.f32.gmra.mxu0 %v2109
      %v2414 = vpop.f32.mrf.mxu0
      %v2415 = vadd.f32 %v2240, %v2414
      %v2416 = vpop.f32.mrf.mxu0
      %2417 = vmatprep.mubr.f32.mxu0 %v2113
      %2418 = vmatmul.mubr.f32.gmra.mxu0 %v2112
      %v2419 = vpop.f32.mrf.mxu0
      %v2420 = vadd.f32 %v2240, %v2419
      %v2421 = vpop.f32.mrf.mxu0
      %2422 = vmatprep.mubr.f32.mxu0 %v2116
      %2423 = vmatmul.mubr.f32.gmra.mxu0 %v2115
      %v2424 = vpop.f32.mrf.mxu0
      %v2425 = vadd.f32 %v2240, %v2424
      %v2426 = vpop.f32.mrf.mxu0
      %2427 = vmatprep.mubr.f32.mxu0 %v2119
      %2428 = vmatmul.mubr.f32.gmra.mxu0 %v2118
      %v2429 = vpop.f32.mrf.mxu0
      %v2430 = vadd.f32 %v2240, %v2429
      %v2431 = vpop.f32.mrf.mxu0
      %2432 = vmatprep.mubr.f32.mxu0 %v2122
      %2433 = vmatmul.mubr.f32.gmra.mxu0 %v2121
      %v2434 = vpop.f32.mrf.mxu0
      %v2435 = vadd.f32 %v2240, %v2434
      %v2436 = vpop.f32.mrf.mxu0
      %2437 = vmatprep.mubr.f32.mxu0 %v2125
      %2438 = vmatmul.mubr.f32.gmra.mxu0 %v2124
      %v2439 = vpop.f32.mrf.mxu0
      %v2440 = vadd.f32 %v2240, %v2439
      %v2441 = vpop.f32.mrf.mxu0
      %2442 = vmatprep.mubr.f32.mxu0 %v2128
      %2443 = vmatmul.mubr.f32.gmra.mxu0 %v2127
      %v2444 = vpop.f32.mrf.mxu0
      %v2445 = vadd.f32 %v2240, %v2444
      %v2446 = vpop.f32.mrf.mxu0
      %2447 = vmatprep.mubr.f32.mxu0 %v2131
      %2448 = vmatmul.mubr.f32.gmra.mxu0 %v2130
      %v2449 = vpop.f32.mrf.mxu0
      %v2450 = vadd.f32 %v2240, %v2449
      %v2451 = vpop.f32.mrf.mxu0
      %2452 = vmatprep.mubr.f32.mxu0 %v2134
      %2453 = vmatmul.mubr.f32.gmra.mxu0 %v2133
      %v2454 = vpop.f32.mrf.mxu0
      %v2455 = vadd.f32 %v2240, %v2454
      %v2456 = vpop.f32.mrf.mxu0
      %2457 = vmatprep.mubr.f32.mxu0 %v2137
      %2458 = vmatmul.mubr.f32.gmra.mxu0 %v2136
      %v2459 = vpop.f32.mrf.mxu0
      %v2460 = vadd.f32 %v2240, %v2459
      %v2461 = vpop.f32.mrf.mxu0
      %2462 = vmatprep.mubr.f32.mxu0 %v2140
      %2463 = vmatmul.mubr.f32.gmra.mxu0 %v2139
      %v2464 = vpop.f32.mrf.mxu0
      %v2465 = vadd.f32 %v2240, %v2464
      %v2466 = vpop.f32.mrf.mxu0
      %2467 = vmatprep.mubr.f32.mxu0 %v2143
      %2468 = vmatmul.mubr.f32.gmra.mxu0 %v2142
      %v2469 = vpop.f32.mrf.mxu0
      %v2470 = vadd.f32 %v2240, %v2469
      %v2471 = vpop.f32.mrf.mxu0
      %2472 = vmatprep.mubr.f32.mxu0 %v2146
      %2473 = vmatmul.mubr.f32.gmra.mxu0 %v2145
      %v2474 = vpop.f32.mrf.mxu0
      %v2475 = vadd.f32 %v2240, %v2474
      %v2476 = vpop.f32.mrf.mxu0
      %2477 = vmatprep.mubr.f32.mxu0 %v2149
      %2478 = vmatmul.mubr.f32.gmra.mxu0 %v2148
      %v2479 = vpop.f32.mrf.mxu0
      %v2480 = vadd.f32 %v2240, %v2479
      %v2481 = vpop.f32.mrf.mxu0
      %2482 = vmatprep.mubr.f32.mxu0 %v2152
      %2483 = vmatmul.mubr.f32.gmra.mxu0 %v2151
      %v2484 = vpop.f32.mrf.mxu0
      %v2485 = vadd.f32 %v2240, %v2484
      %v2486 = vpop.f32.mrf.mxu0
      %2487 = vmatprep.mubr.f32.mxu0 %v2155
      %2488 = vmatmul.mubr.f32.gmra.mxu0 %v2154
      %v2489 = vpop.f32.mrf.mxu0
      %v2490 = vadd.f32 %v2240, %v2489
      %v2491 = vpop.f32.mrf.mxu0
      %2492 = vmatprep.mubr.f32.mxu0 %v2158
      %2493 = vmatmul.mubr.f32.gmra.mxu0 %v2157
      %v2494 = vpop.f32.mrf.mxu0
      %v2495 = vadd.f32 %v2240, %v2494
      %v2496 = vpop.f32.mrf.mxu0
      %2497 = vmatprep.mubr.f32.mxu0 %v2161
      %2498 = vmatmul.mubr.f32.gmra.mxu0 %v2160
      %v2499 = vpop.f32.mrf.mxu0
      %v2500 = vadd.f32 %v2240, %v2499
      %v2501 = vpop.f32.mrf.mxu0
      %2502 = vmatprep.mubr.f32.mxu0 %v2164
      %2503 = vmatmul.mubr.f32.gmra.mxu0 %v2163
      %v2504 = vpop.f32.mrf.mxu0
      %v2505 = vadd.f32 %v2240, %v2504
      %v2506 = vpop.f32.mrf.mxu0
      %2507 = vmatprep.mubr.f32.mxu0 %v2167
      %2508 = vmatmul.mubr.f32.gmra.mxu0 %v2166
      %v2509 = vpop.f32.mrf.mxu0
      %v2510 = vadd.f32 %v2240, %v2509
      %v2511 = vpop.f32.mrf.mxu0
      %2512 = vmatprep.mubr.f32.mxu0 %v2170
      %2513 = vmatmul.mubr.f32.gmra.mxu0 %v2169
      %v2514 = vpop.f32.mrf.mxu0
      %v2515 = vadd.f32 %v2240, %v2514
      %v2516 = vpop.f32.mrf.mxu0
      %2517 = vmatprep.mubr.f32.mxu0 %v2173
      %2518 = vmatmul.mubr.f32.gmra.mxu0 %v2172
      %v2519 = vpop.f32.mrf.mxu0
      %v2520 = vadd.f32 %v2240, %v2519
      %v2521 = vpop.f32.mrf.mxu0
      %2522 = vmatprep.mubr.f32.mxu0 %v2176
      %2523 = vmatmul.mubr.f32.gmra.mxu0 %v2175
      %v2524 = vpop.f32.mrf.mxu0
      %v2525 = vadd.f32 %v2240, %v2524
      %v2526 = vpop.f32.mrf.mxu0
      %2527 = vmatprep.mubr.f32.mxu0 %v2179
      %2528 = vmatmul.mubr.f32.gmra.mxu0 %v2178
      %v2529 = vpop.f32.mrf.mxu0
      %v2530 = vadd.f32 %v2240, %v2529
      %v2531 = vpop.f32.mrf.mxu0
      %2532 = vmatprep.mubr.f32.mxu0 %v2182
      %2533 = vmatmul.mubr.f32.gmra.mxu0 %v2181
      %v2534 = vpop.f32.mrf.mxu0
      %v2535 = vadd.f32 %v2240, %v2534
      %v2536 = vpop.f32.mrf.mxu0
      %2537 = vmatprep.mubr.f32.mxu0 %v2185
      %2538 = vmatmul.mubr.f32.gmra.mxu0 %v2184
      %v2539 = vpop.f32.mrf.mxu0
      %v2540 = vadd.f32 %v2240, %v2539
      %v2541 = vpop.f32.mrf.mxu0
      %2542 = vmatprep.mubr.f32.mxu0 %v2188
      %2543 = vmatmul.mubr.f32.gmra.mxu0 %v2187
      %v2544 = vpop.f32.mrf.mxu0
      %v2545 = vadd.f32 %v2240, %v2544
      %v2546 = vpop.f32.mrf.mxu0
      %2547 = vmatprep.mubr.f32.mxu0 %v2191
      %2548 = vmatmul.mubr.f32.gmra.mxu0 %v2190
      %v2549 = vpop.f32.mrf.mxu0
      %v2550 = vadd.f32 %v2240, %v2549
      %v2551 = vpop.f32.mrf.mxu0
      %2552 = vmatprep.mubr.f32.mxu0 %v2194
      %2553 = vmatmul.mubr.f32.gmra.mxu0 %v2193
      %v2554 = vpop.f32.mrf.mxu0
      %v2555 = vadd.f32 %v2240, %v2554
      %v2556 = vpop.f32.mrf.mxu0
      %2557 = vmatprep.mubr.f32.mxu0 %v2197
      %2558 = vmatmul.mubr.f32.gmra.mxu0 %v2196
      %v2559 = vpop.f32.mrf.mxu0
      %v2560 = vadd.f32 %v2240, %v2559
      %v2561 = vpop.f32.mrf.mxu0
      %2562 = vdwg.mxu0
      %2563 = vmatprep.subr.mxu0 0.0
      %2564 = vmatpush1.msra.mxu0 0.0
      %2565 = vmatprep.subr.mxu0 0.0
      %2566 = vmatpush1.msra.mxu0 0.0
      %2567 = vmatprep.subr.mxu0 0.0
      %2568 = vmatpush1.msra.mxu0 0.0
      %2569 = vmatprep.subr.mxu0 0.0
      %2570 = vmatpush1.msra.mxu0 0.0
      %2571 = vmatprep.subr.mxu0 0.0
      %2572 = vmatpush1.msra.mxu0 0.0
      %2573 = vmatprep.subr.mxu0 0.0
      %2574 = vmatpush1.msra.mxu0 0.0
      %2575 = vmatprep.subr.mxu0 0.0
      %2576 = vmatpush1.msra.mxu0 0.0
      %2577 = vmatprep.subr.mxu0 0.0
      %2578 = vmatpush1.msra.mxu0 0.0
      %2579 = vmatprep.subr.mxu0 0.0
      %2580 = vmatpush1.msra.mxu0 0.0
      %2581 = vmatprep.subr.mxu0 0.0
      %2582 = vmatpush1.msra.mxu0 0.0
      %2583 = vmatprep.subr.mxu0 0.0
      %2584 = vmatpush1.msra.mxu0 0.0
      %2585 = vmatprep.subr.mxu0 0.0
      %2586 = vmatpush1.msra.mxu0 0.0
      %2587 = vmatprep.subr.mxu0 0.0
      %2588 = vmatpush1.msra.mxu0 %v2234
      %2589 = vmatprep.subr.mxu0 0.0
      %2590 = vmatpush1.msra.mxu0 %v2233
      %2591 = vmatprep.subr.mxu0 0.0
      %2592 = vmatpush1.msra.mxu0 %v2232
      %2593 = vmatprep.subr.mxu0 0.0
      %2594 = vmatpush1.msra.mxu0 %v2231
      %2595 = vmatprep.subr.mxu0 0.0
      %2596 = vmatpush2.msra.mxu0 0.0
      %2597 = vmatprep.subr.mxu0 0.0
      %2598 = vmatpush2.msra.mxu0 0.0
      %2599 = vmatprep.subr.mxu0 0.0
      %2600 = vmatpush2.msra.mxu0 0.0
      %2601 = vmatprep.subr.mxu0 0.0
      %2602 = vmatpush2.msra.mxu0 0.0
      %2603 = vmatprep.subr.mxu0 0.0
      %2604 = vmatpush2.msra.mxu0 0.0
      %2605 = vmatprep.subr.mxu0 0.0
      %2606 = vmatpush2.msra.mxu0 0.0
      %2607 = vmatprep.subr.mxu0 0.0
      %2608 = vmatpush2.msra.mxu0 0.0
      %2609 = vmatprep.subr.mxu0 0.0
      %2610 = vmatpush2.msra.mxu0 0.0
      %2611 = vmatprep.subr.mxu0 0.0
      %2612 = vmatpush2.msra.mxu0 0.0
      %2613 = vmatprep.subr.mxu0 0.0
      %2614 = vmatpush2.msra.mxu0 0.0
      %2615 = vmatprep.subr.mxu0 0.0
      %2616 = vmatpush2.msra.mxu0 0.0
      %2617 = vmatprep.subr.mxu0 0.0
      %2618 = vmatpush2.msra.mxu0 0.0
      %2619 = vmatprep.subr.mxu0 0.0
      %2620 = vmatpush2.msra.mxu0 0.0
      %2621 = vmatprep.subr.mxu0 0.0
      %2622 = vmatpush2.msra.mxu0 0.0
      %2623 = vmatprep.subr.mxu0 0.0
      %2624 = vmatpush2.msra.mxu0 0.0
      %2625 = vmatprep.subr.mxu0 0.0
      %2626 = vmatpush2.msra.mxu0 0.0
      %2627 = vmatprep.mubr.f32.mxu0 0.0
      %2628 = vmatmul.mubr.f32.gmra.mxu0 %v2243
      %v2629 = vpop.f32.mrf.mxu0
      %v2630 = vadd.f32 %v2405, %v2629
      %v2631 = vpop.f32.mrf.mxu0
      %2632 = vmatprep.mubr.f32.mxu0 0.0
      %2633 = vmatmul.mubr.f32.gmra.mxu0 %v2246
      %v2634 = vpop.f32.mrf.mxu0
      %v2635 = vadd.f32 %v2410, %v2634
      %v2636 = vpop.f32.mrf.mxu0
      %2637 = vmatprep.mubr.f32.mxu0 0.0
      %2638 = vmatmul.mubr.f32.gmra.mxu0 %v2249
      %v2639 = vpop.f32.mrf.mxu0
      %v2640 = vadd.f32 %v2415, %v2639
      %v2641 = vpop.f32.mrf.mxu0
      %2642 = vmatprep.mubr.f32.mxu0 0.0
      %2643 = vmatmul.mubr.f32.gmra.mxu0 %v2252
      %v2644 = vpop.f32.mrf.mxu0
      %v2645 = vadd.f32 %v2420, %v2644
      %v2646 = vpop.f32.mrf.mxu0
      %2647 = vmatprep.mubr.f32.mxu0 0.0
      %2648 = vmatmul.mubr.f32.gmra.mxu0 %v2255
      %v2649 = vpop.f32.mrf.mxu0
      %v2650 = vadd.f32 %v2425, %v2649
      %v2651 = vpop.f32.mrf.mxu0
      %2652 = vmatprep.mubr.f32.mxu0 0.0
      %2653 = vmatmul.mubr.f32.gmra.mxu0 %v2258
      %v2654 = vpop.f32.mrf.mxu0
      %v2655 = vadd.f32 %v2430, %v2654
      %v2656 = vpop.f32.mrf.mxu0
      %2657 = vmatprep.mubr.f32.mxu0 0.0
      %2658 = vmatmul.mubr.f32.gmra.mxu0 %v2261
      %v2659 = vpop.f32.mrf.mxu0
      %v2660 = vadd.f32 %v2435, %v2659
      %v2661 = vpop.f32.mrf.mxu0
      %2662 = vmatprep.mubr.f32.mxu0 0.0
      %2663 = vmatmul.mubr.f32.gmra.mxu0 %v2264
      %v2664 = vpop.f32.mrf.mxu0
      %v2665 = vadd.f32 %v2440, %v2664
      %v2666 = vpop.f32.mrf.mxu0
      %2667 = vmatprep.mubr.f32.mxu0 0.0
      %2668 = vmatmul.mubr.f32.gmra.mxu0 %v2267
      %v2669 = vpop.f32.mrf.mxu0
      %v2670 = vadd.f32 %v2445, %v2669
      %v2671 = vpop.f32.mrf.mxu0
      %2672 = vmatprep.mubr.f32.mxu0 0.0
      %2673 = vmatmul.mubr.f32.gmra.mxu0 %v2270
      %v2674 = vpop.f32.mrf.mxu0
      %v2675 = vadd.f32 %v2450, %v2674
      %v2676 = vpop.f32.mrf.mxu0
      %2677 = vmatprep.mubr.f32.mxu0 0.0
      %2678 = vmatmul.mubr.f32.gmra.mxu0 %v2273
      %v2679 = vpop.f32.mrf.mxu0
      %v2680 = vadd.f32 %v2455, %v2679
      %v2681 = vpop.f32.mrf.mxu0
      %2682 = vmatprep.mubr.f32.mxu0 0.0
      %2683 = vmatmul.mubr.f32.gmra.mxu0 %v2276
      %v2684 = vpop.f32.mrf.mxu0
      %v2685 = vadd.f32 %v2460, %v2684
      %v2686 = vpop.f32.mrf.mxu0
      %2687 = vmatprep.mubr.f32.mxu0 0.0
      %2688 = vmatmul.mubr.f32.gmra.mxu0 %v2279
      %v2689 = vpop.f32.mrf.mxu0
      %v2690 = vadd.f32 %v2465, %v2689
      %v2691 = vpop.f32.mrf.mxu0
      %2692 = vmatprep.mubr.f32.mxu0 0.0
      %2693 = vmatmul.mubr.f32.gmra.mxu0 %v2282
      %v2694 = vpop.f32.mrf.mxu0
      %v2695 = vadd.f32 %v2470, %v2694
      %v2696 = vpop.f32.mrf.mxu0
      %2697 = vmatprep.mubr.f32.mxu0 0.0
      %2698 = vmatmul.mubr.f32.gmra.mxu0 %v2285
      %v2699 = vpop.f32.mrf.mxu0
      %v2700 = vadd.f32 %v2475, %v2699
      %v2701 = vpop.f32.mrf.mxu0
      %2702 = vmatprep.mubr.f32.mxu0 0.0
      %2703 = vmatmul.mubr.f32.gmra.mxu0 %v2288
      %v2704 = vpop.f32.mrf.mxu0
      %v2705 = vadd.f32 %v2480, %v2704
      %v2706 = vpop.f32.mrf.mxu0
      %2707 = vmatprep.mubr.f32.mxu0 0.0
      %2708 = vmatmul.mubr.f32.gmra.mxu0 %v2291
      %v2709 = vpop.f32.mrf.mxu0
      %v2710 = vadd.f32 %v2485, %v2709
      %v2711 = vpop.f32.mrf.mxu0
      %2712 = vmatprep.mubr.f32.mxu0 0.0
      %2713 = vmatmul.mubr.f32.gmra.mxu0 %v2294
      %v2714 = vpop.f32.mrf.mxu0
      %v2715 = vadd.f32 %v2490, %v2714
      %v2716 = vpop.f32.mrf.mxu0
      %2717 = vmatprep.mubr.f32.mxu0 0.0
      %2718 = vmatmul.mubr.f32.gmra.mxu0 %v2297
      %v2719 = vpop.f32.mrf.mxu0
      %v2720 = vadd.f32 %v2495, %v2719
      %v2721 = vpop.f32.mrf.mxu0
      %2722 = vmatprep.mubr.f32.mxu0 0.0
      %2723 = vmatmul.mubr.f32.gmra.mxu0 %v2300
      %v2724 = vpop.f32.mrf.mxu0
      %v2725 = vadd.f32 %v2500, %v2724
      %v2726 = vpop.f32.mrf.mxu0
      %2727 = vmatprep.mubr.f32.mxu0 0.0
      %2728 = vmatmul.mubr.f32.gmra.mxu0 %v2303
      %v2729 = vpop.f32.mrf.mxu0
      %v2730 = vadd.f32 %v2505, %v2729
      %v2731 = vpop.f32.mrf.mxu0
      %2732 = vmatprep.mubr.f32.mxu0 0.0
      %2733 = vmatmul.mubr.f32.gmra.mxu0 %v2306
      %v2734 = vpop.f32.mrf.mxu0
      %v2735 = vadd.f32 %v2510, %v2734
      %v2736 = vpop.f32.mrf.mxu0
      %2737 = vmatprep.mubr.f32.mxu0 0.0
      %2738 = vmatmul.mubr.f32.gmra.mxu0 %v2309
      %v2739 = vpop.f32.mrf.mxu0
      %v2740 = vadd.f32 %v2515, %v2739
      %v2741 = vpop.f32.mrf.mxu0
      %2742 = vmatprep.mubr.f32.mxu0 0.0
      %2743 = vmatmul.mubr.f32.gmra.mxu0 %v2312
      %v2744 = vpop.f32.mrf.mxu0
      %v2745 = vadd.f32 %v2520, %v2744
      %v2746 = vpop.f32.mrf.mxu0
      %2747 = vmatprep.mubr.f32.mxu0 0.0
      %2748 = vmatmul.mubr.f32.gmra.mxu0 %v2315
      %v2749 = vpop.f32.mrf.mxu0
      %v2750 = vadd.f32 %v2525, %v2749
      %v2751 = vpop.f32.mrf.mxu0
      %2752 = vmatprep.mubr.f32.mxu0 0.0
      %2753 = vmatmul.mubr.f32.gmra.mxu0 %v2318
      %v2754 = vpop.f32.mrf.mxu0
      %v2755 = vadd.f32 %v2530, %v2754
      %v2756 = vpop.f32.mrf.mxu0
      %2757 = vmatprep.mubr.f32.mxu0 0.0
      %2758 = vmatmul.mubr.f32.gmra.mxu0 %v2321
      %v2759 = vpop.f32.mrf.mxu0
      %v2760 = vadd.f32 %v2535, %v2759
      %v2761 = vpop.f32.mrf.mxu0
      %2762 = vmatprep.mubr.f32.mxu0 0.0
      %2763 = vmatmul.mubr.f32.gmra.mxu0 %v2324
      %v2764 = vpop.f32.mrf.mxu0
      %v2765 = vadd.f32 %v2540, %v2764
      %v2766 = vpop.f32.mrf.mxu0
      %2767 = vmatprep.mubr.f32.mxu0 0.0
      %2768 = vmatmul.mubr.f32.gmra.mxu0 %v2327
      %v2769 = vpop.f32.mrf.mxu0
      %v2770 = vadd.f32 %v2545, %v2769
      %v2771 = vpop.f32.mrf.mxu0
      %2772 = vmatprep.mubr.f32.mxu0 0.0
      %2773 = vmatmul.mubr.f32.gmra.mxu0 %v2330
      %v2774 = vpop.f32.mrf.mxu0
      %v2775 = vadd.f32 %v2550, %v2774
      %v2776 = vpop.f32.mrf.mxu0
      %2777 = vmatprep.mubr.f32.mxu0 0.0
      %2778 = vmatmul.mubr.f32.gmra.mxu0 %v2333
      %v2779 = vpop.f32.mrf.mxu0
      %v2780 = vadd.f32 %v2555, %v2779
      %v2781 = vpop.f32.mrf.mxu0
      %2782 = vmatprep.mubr.f32.mxu0 0.0
      %2783 = vmatmul.mubr.f32.gmra.mxu0 %v2336
      %v2784 = vpop.f32.mrf.mxu0
      %v2785 = vadd.f32 %v2560, %v2784
      %v2786 = vpop.f32.mrf.mxu0
      %2787 = vdwg.mxu0
      %v2788 = vmax.f32 %v2630, 0.0
      %v2789 = vmax.f32 %v2635, 0.0
      %v2790 = vmax.f32 %v2640, 0.0
      %v2791 = vmax.f32 %v2645, 0.0
      %v2792 = vmax.f32 %v2650, 0.0
      %v2793 = vmax.f32 %v2655, 0.0
      %v2794 = vmax.f32 %v2660, 0.0
      %v2795 = vmax.f32 %v2665, 0.0
      %v2796 = vmax.f32 %v2670, 0.0
      %v2797 = vmax.f32 %v2675, 0.0
      %v2798 = vmax.f32 %v2680, 0.0
      %v2799 = vmax.f32 %v2685, 0.0
      %v2800 = vmax.f32 %v2690, 0.0
      %v2801 = vmax.f32 %v2695, 0.0
      %v2802 = vmax.f32 %v2700, 0.0
      %v2803 = vmax.f32 %v2705, 0.0
      %v2804 = vmax.f32 %v2710, 0.0
      %v2805 = vmax.f32 %v2715, 0.0
      %v2806 = vmax.f32 %v2720, 0.0
      %v2807 = vmax.f32 %v2725, 0.0
      %v2808 = vmax.f32 %v2730, 0.0
      %v2809 = vmax.f32 %v2735, 0.0
      %v2810 = vmax.f32 %v2740, 0.0
      %v2811 = vmax.f32 %v2745, 0.0
      %v2812 = vmax.f32 %v2750, 0.0
      %v2813 = vmax.f32 %v2755, 0.0
      %v2814 = vmax.f32 %v2760, 0.0
      %v2815 = vmax.f32 %v2765, 0.0
      %v2816 = vmax.f32 %v2770, 0.0
      %v2817 = vmax.f32 %v2775, 0.0
      %v2818 = vmax.f32 %v2780, 0.0
      %v2819 = vmax.f32 %v2785, 0.0
      %v2820 = vld [vmem:[%s3] sm:$0xff]
      %v2821 = vld [vmem:[%s3 + $0x8] sm:$0xff]
      %v2822 = vld [vmem:[%s3 + $0x10] sm:$0xff]
      %v2823 = vld [vmem:[%s3 + $0x18] sm:$0xff]
      %v2824 = vld [vmem:[%s6] sm:$0x1]
      %v2826 = vlaneseq
      %v2827 = vshrl.u32 %v2826, 7
      %v2828 = vsub.s32 0, %v2827
      %v2829 = vrot.slane %v2824, %v2828
      %v2832 = vsel %vm680, %v2788, 0
      %v2835 = vsel %vm680, %v2789, 0
      %v2838 = vsel %vm680, %v2790, 0
      %v2841 = vsel %vm680, %v2791, 0
      %v2844 = vsel %vm680, %v2792, 0
      %v2847 = vsel %vm680, %v2793, 0
      %v2850 = vsel %vm680, %v2794, 0
      %v2853 = vsel %vm680, %v2795, 0
      %v2856 = vsel %vm680, %v2796, 0
      %v2859 = vsel %vm680, %v2797, 0
      %v2862 = vsel %vm680, %v2798, 0
      %v2865 = vsel %vm680, %v2799, 0
      %v2868 = vsel %vm680, %v2800, 0
      %v2871 = vsel %vm680, %v2801, 0
      %v2874 = vsel %vm680, %v2802, 0
      %v2877 = vsel %vm680, %v2803, 0
      %v2880 = vsel %vm680, %v2804, 0
      %v2883 = vsel %vm680, %v2805, 0
      %v2886 = vsel %vm680, %v2806, 0
      %v2889 = vsel %vm680, %v2807, 0
      %v2892 = vsel %vm680, %v2808, 0
      %v2895 = vsel %vm680, %v2809, 0
      %v2898 = vsel %vm680, %v2810, 0
      %v2901 = vsel %vm680, %v2811, 0
      %v2904 = vsel %vm680, %v2812, 0
      %v2907 = vsel %vm680, %v2813, 0
      %v2910 = vsel %vm680, %v2814, 0
      %v2913 = vsel %vm680, %v2815, 0
      %v2916 = vsel %vm680, %v2816, 0
      %v2919 = vsel %vm680, %v2817, 0
      %v2922 = vsel %vm680, %v2818, 0
      %v2925 = vsel %vm680, %v2819, 0
      %2927 = vmatprep.subr.mxu0 0.0
      %2928 = vmatpush1.msra.mxu0 0.0
      %2929 = vmatprep.subr.mxu0 0.0
      %2930 = vmatpush1.msra.mxu0 0.0
      %2931 = vmatprep.subr.mxu0 0.0
      %2932 = vmatpush1.msra.mxu0 0.0
      %2933 = vmatprep.subr.mxu0 0.0
      %2934 = vmatpush1.msra.mxu0 0.0
      %2935 = vmatprep.subr.mxu0 0.0
      %2936 = vmatpush1.msra.mxu0 0.0
      %2937 = vmatprep.subr.mxu0 0.0
      %2938 = vmatpush1.msra.mxu0 0.0
      %2939 = vmatprep.subr.mxu0 0.0
      %2940 = vmatpush1.msra.mxu0 0.0
      %2941 = vmatprep.subr.mxu0 0.0
      %2942 = vmatpush1.msra.mxu0 0.0
      %2943 = vmatprep.subr.mxu0 0.0
      %2944 = vmatpush1.msra.mxu0 0.0
      %2945 = vmatprep.subr.mxu0 0.0
      %2946 = vmatpush1.msra.mxu0 0.0
      %2947 = vmatprep.subr.mxu0 0.0
      %2948 = vmatpush1.msra.mxu0 0.0
      %2949 = vmatprep.subr.mxu0 0.0
      %2950 = vmatpush1.msra.mxu0 0.0
      %2951 = vmatprep.subr.mxu0 0.0
      %2952 = vmatpush1.msra.mxu0 %v2823
      %2953 = vmatprep.subr.mxu0 0.0
      %2954 = vmatpush1.msra.mxu0 %v2822
      %2955 = vmatprep.subr.mxu0 0.0
      %2956 = vmatpush1.msra.mxu0 %v2821
      %2957 = vmatprep.subr.mxu0 0.0
      %2958 = vmatpush1.msra.mxu0 %v2820
      %2959 = vmatprep.subr.mxu0 0.0
      %2960 = vmatpush2.msra.mxu0 0.0
      %2961 = vmatprep.subr.mxu0 0.0
      %2962 = vmatpush2.msra.mxu0 0.0
      %2963 = vmatprep.subr.mxu0 0.0
      %2964 = vmatpush2.msra.mxu0 0.0
      %2965 = vmatprep.subr.mxu0 0.0
      %2966 = vmatpush2.msra.mxu0 0.0
      %2967 = vmatprep.subr.mxu0 0.0
      %2968 = vmatpush2.msra.mxu0 0.0
      %2969 = vmatprep.subr.mxu0 0.0
      %2970 = vmatpush2.msra.mxu0 0.0
      %2971 = vmatprep.subr.mxu0 0.0
      %2972 = vmatpush2.msra.mxu0 0.0
      %2973 = vmatprep.subr.mxu0 0.0
      %2974 = vmatpush2.msra.mxu0 0.0
      %2975 = vmatprep.subr.mxu0 0.0
      %2976 = vmatpush2.msra.mxu0 0.0
      %2977 = vmatprep.subr.mxu0 0.0
      %2978 = vmatpush2.msra.mxu0 0.0
      %2979 = vmatprep.subr.mxu0 0.0
      %2980 = vmatpush2.msra.mxu0 0.0
      %2981 = vmatprep.subr.mxu0 0.0
      %2982 = vmatpush2.msra.mxu0 0.0
      %2983 = vmatprep.subr.mxu0 0.0
      %2984 = vmatpush2.msra.mxu0 0.0
      %2985 = vmatprep.subr.mxu0 0.0
      %2986 = vmatpush2.msra.mxu0 0.0
      %2987 = vmatprep.subr.mxu0 0.0
      %2988 = vmatpush2.msra.mxu0 0.0
      %2989 = vmatprep.subr.mxu0 0.0
      %2990 = vmatpush2.msra.mxu0 0.0
      %2991 = vmatprep.mubr.f32.mxu0 0.0
      %2992 = vmatmul.mubr.f32.gmra.mxu0 %v2832
      %v2993 = vpop.f32.mrf.mxu0
      %v2994 = vadd.f32 %v2829, %v2993
      %v2995 = vpop.f32.mrf.mxu0
      %2996 = vmatprep.mubr.f32.mxu0 0.0
      %2997 = vmatmul.mubr.f32.gmra.mxu0 %v2835
      %v2998 = vpop.f32.mrf.mxu0
      %v2999 = vadd.f32 %v2829, %v2998
      %v3000 = vpop.f32.mrf.mxu0
      %3001 = vmatprep.mubr.f32.mxu0 0.0
      %3002 = vmatmul.mubr.f32.gmra.mxu0 %v2838
      %v3003 = vpop.f32.mrf.mxu0
      %v3004 = vadd.f32 %v2829, %v3003
      %v3005 = vpop.f32.mrf.mxu0
      %3006 = vmatprep.mubr.f32.mxu0 0.0
      %3007 = vmatmul.mubr.f32.gmra.mxu0 %v2841
      %v3008 = vpop.f32.mrf.mxu0
      %v3009 = vadd.f32 %v2829, %v3008
      %v3010 = vpop.f32.mrf.mxu0
      %3011 = vmatprep.mubr.f32.mxu0 0.0
      %3012 = vmatmul.mubr.f32.gmra.mxu0 %v2844
      %v3013 = vpop.f32.mrf.mxu0
      %v3014 = vadd.f32 %v2829, %v3013
      %v3015 = vpop.f32.mrf.mxu0
      %3016 = vmatprep.mubr.f32.mxu0 0.0
      %3017 = vmatmul.mubr.f32.gmra.mxu0 %v2847
      %v3018 = vpop.f32.mrf.mxu0
      %v3019 = vadd.f32 %v2829, %v3018
      %v3020 = vpop.f32.mrf.mxu0
      %3021 = vmatprep.mubr.f32.mxu0 0.0
      %3022 = vmatmul.mubr.f32.gmra.mxu0 %v2850
      %v3023 = vpop.f32.mrf.mxu0
      %v3024 = vadd.f32 %v2829, %v3023
      %v3025 = vpop.f32.mrf.mxu0
      %3026 = vmatprep.mubr.f32.mxu0 0.0
      %3027 = vmatmul.mubr.f32.gmra.mxu0 %v2853
      %v3028 = vpop.f32.mrf.mxu0
      %v3029 = vadd.f32 %v2829, %v3028
      %v3030 = vpop.f32.mrf.mxu0
      %3031 = vmatprep.mubr.f32.mxu0 0.0
      %3032 = vmatmul.mubr.f32.gmra.mxu0 %v2856
      %v3033 = vpop.f32.mrf.mxu0
      %v3034 = vadd.f32 %v2829, %v3033
      %v3035 = vpop.f32.mrf.mxu0
      %3036 = vmatprep.mubr.f32.mxu0 0.0
      %3037 = vmatmul.mubr.f32.gmra.mxu0 %v2859
      %v3038 = vpop.f32.mrf.mxu0
      %v3039 = vadd.f32 %v2829, %v3038
      %v3040 = vpop.f32.mrf.mxu0
      %3041 = vmatprep.mubr.f32.mxu0 0.0
      %3042 = vmatmul.mubr.f32.gmra.mxu0 %v2862
      %v3043 = vpop.f32.mrf.mxu0
      %v3044 = vadd.f32 %v2829, %v3043
      %v3045 = vpop.f32.mrf.mxu0
      %3046 = vmatprep.mubr.f32.mxu0 0.0
      %3047 = vmatmul.mubr.f32.gmra.mxu0 %v2865
      %v3048 = vpop.f32.mrf.mxu0
      %v3049 = vadd.f32 %v2829, %v3048
      %v3050 = vpop.f32.mrf.mxu0
      %3051 = vmatprep.mubr.f32.mxu0 0.0
      %3052 = vmatmul.mubr.f32.gmra.mxu0 %v2868
      %v3053 = vpop.f32.mrf.mxu0
      %v3054 = vadd.f32 %v2829, %v3053
      %v3055 = vpop.f32.mrf.mxu0
      %3056 = vmatprep.mubr.f32.mxu0 0.0
      %3057 = vmatmul.mubr.f32.gmra.mxu0 %v2871
      %v3058 = vpop.f32.mrf.mxu0
      %v3059 = vadd.f32 %v2829, %v3058
      %v3060 = vpop.f32.mrf.mxu0
      %3061 = vmatprep.mubr.f32.mxu0 0.0
      %3062 = vmatmul.mubr.f32.gmra.mxu0 %v2874
      %v3063 = vpop.f32.mrf.mxu0
      %v3064 = vadd.f32 %v2829, %v3063
      %v3065 = vpop.f32.mrf.mxu0
      %3066 = vmatprep.mubr.f32.mxu0 0.0
      %3067 = vmatmul.mubr.f32.gmra.mxu0 %v2877
      %v3068 = vpop.f32.mrf.mxu0
      %v3069 = vadd.f32 %v2829, %v3068
      %v3070 = vpop.f32.mrf.mxu0
      %3071 = vmatprep.mubr.f32.mxu0 0.0
      %3072 = vmatmul.mubr.f32.gmra.mxu0 %v2880
      %v3073 = vpop.f32.mrf.mxu0
      %v3074 = vadd.f32 %v2829, %v3073
      %v3075 = vpop.f32.mrf.mxu0
      %3076 = vmatprep.mubr.f32.mxu0 0.0
      %3077 = vmatmul.mubr.f32.gmra.mxu0 %v2883
      %v3078 = vpop.f32.mrf.mxu0
      %v3079 = vadd.f32 %v2829, %v3078
      %v3080 = vpop.f32.mrf.mxu0
      %3081 = vmatprep.mubr.f32.mxu0 0.0
      %3082 = vmatmul.mubr.f32.gmra.mxu0 %v2886
      %v3083 = vpop.f32.mrf.mxu0
      %v3084 = vadd.f32 %v2829, %v3083
      %v3085 = vpop.f32.mrf.mxu0
      %3086 = vmatprep.mubr.f32.mxu0 0.0
      %3087 = vmatmul.mubr.f32.gmra.mxu0 %v2889
      %v3088 = vpop.f32.mrf.mxu0
      %v3089 = vadd.f32 %v2829, %v3088
      %v3090 = vpop.f32.mrf.mxu0
      %3091 = vmatprep.mubr.f32.mxu0 0.0
      %3092 = vmatmul.mubr.f32.gmra.mxu0 %v2892
      %v3093 = vpop.f32.mrf.mxu0
      %v3094 = vadd.f32 %v2829, %v3093
      %v3095 = vpop.f32.mrf.mxu0
      %3096 = vmatprep.mubr.f32.mxu0 0.0
      %3097 = vmatmul.mubr.f32.gmra.mxu0 %v2895
      %v3098 = vpop.f32.mrf.mxu0
      %v3099 = vadd.f32 %v2829, %v3098
      %v3100 = vpop.f32.mrf.mxu0
      %3101 = vmatprep.mubr.f32.mxu0 0.0
      %3102 = vmatmul.mubr.f32.gmra.mxu0 %v2898
      %v3103 = vpop.f32.mrf.mxu0
      %v3104 = vadd.f32 %v2829, %v3103
      %v3105 = vpop.f32.mrf.mxu0
      %3106 = vmatprep.mubr.f32.mxu0 0.0
      %3107 = vmatmul.mubr.f32.gmra.mxu0 %v2901
      %v3108 = vpop.f32.mrf.mxu0
      %v3109 = vadd.f32 %v2829, %v3108
      %v3110 = vpop.f32.mrf.mxu0
      %3111 = vmatprep.mubr.f32.mxu0 0.0
      %3112 = vmatmul.mubr.f32.gmra.mxu0 %v2904
      %v3113 = vpop.f32.mrf.mxu0
      %v3114 = vadd.f32 %v2829, %v3113
      %v3115 = vpop.f32.mrf.mxu0
      %3116 = vmatprep.mubr.f32.mxu0 0.0
      %3117 = vmatmul.mubr.f32.gmra.mxu0 %v2907
      %v3118 = vpop.f32.mrf.mxu0
      %v3119 = vadd.f32 %v2829, %v3118
      %v3120 = vpop.f32.mrf.mxu0
      %3121 = vmatprep.mubr.f32.mxu0 0.0
      %3122 = vmatmul.mubr.f32.gmra.mxu0 %v2910
      %v3123 = vpop.f32.mrf.mxu0
      %v3124 = vadd.f32 %v2829, %v3123
      %v3125 = vpop.f32.mrf.mxu0
      %3126 = vmatprep.mubr.f32.mxu0 0.0
      %3127 = vmatmul.mubr.f32.gmra.mxu0 %v2913
      %v3128 = vpop.f32.mrf.mxu0
      %v3129 = vadd.f32 %v2829, %v3128
      %v3130 = vpop.f32.mrf.mxu0
      %3131 = vmatprep.mubr.f32.mxu0 0.0
      %3132 = vmatmul.mubr.f32.gmra.mxu0 %v2916
      %v3133 = vpop.f32.mrf.mxu0
      %v3134 = vadd.f32 %v2829, %v3133
      %v3135 = vpop.f32.mrf.mxu0
      %3136 = vmatprep.mubr.f32.mxu0 0.0
      %3137 = vmatmul.mubr.f32.gmra.mxu0 %v2919
      %v3138 = vpop.f32.mrf.mxu0
      %v3139 = vadd.f32 %v2829, %v3138
      %v3140 = vpop.f32.mrf.mxu0
      %3141 = vmatprep.mubr.f32.mxu0 0.0
      %3142 = vmatmul.mubr.f32.gmra.mxu0 %v2922
      %v3143 = vpop.f32.mrf.mxu0
      %v3144 = vadd.f32 %v2829, %v3143
      %v3145 = vpop.f32.mrf.mxu0
      %3146 = vmatprep.mubr.f32.mxu0 0.0
      %3147 = vmatmul.mubr.f32.gmra.mxu0 %v2925
      %v3148 = vpop.f32.mrf.mxu0
      %v3149 = vadd.f32 %v2829, %v3148
      %v3150 = vpop.f32.mrf.mxu0
      %3151 = vdwg.mxu0
      %v3152 = vadd.f32 %v2994, %v279
      %v3153 = vadd.f32 %v2999, %v280
      %v3154 = vadd.f32 %v3004, %v281
      %v3155 = vadd.f32 %v3009, %v282
      %v3156 = vadd.f32 %v3014, %v283
      %v3157 = vadd.f32 %v3019, %v284
      %v3158 = vadd.f32 %v3024, %v285
      %v3159 = vadd.f32 %v3029, %v286
      %v3160 = vadd.f32 %v3034, %v287
      %v3161 = vadd.f32 %v3039, %v288
      %v3162 = vadd.f32 %v3044, %v289
      %v3163 = vadd.f32 %v3049, %v290
      %v3164 = vadd.f32 %v3054, %v291
      %v3165 = vadd.f32 %v3059, %v292
      %v3166 = vadd.f32 %v3064, %v293
      %v3167 = vadd.f32 %v3069, %v294
      %v3168 = vadd.f32 %v3074, %v295
      %v3169 = vadd.f32 %v3079, %v296
      %v3170 = vadd.f32 %v3084, %v297
      %v3171 = vadd.f32 %v3089, %v298
      %v3172 = vadd.f32 %v3094, %v299
      %v3173 = vadd.f32 %v3099, %v300
      %v3174 = vadd.f32 %v3104, %v301
      %v3175 = vadd.f32 %v3109, %v302
      %v3176 = vadd.f32 %v3114, %v303
      %v3177 = vadd.f32 %v3119, %v304
      %v3178 = vadd.f32 %v3124, %v305
      %v3179 = vadd.f32 %v3129, %v306
      %v3180 = vadd.f32 %v3134, %v307
      %v3181 = vadd.f32 %v3139, %v308
      %v3182 = vadd.f32 %v3144, %v309
      %v3183 = vadd.f32 %v3149, %v310
      %v3184 = vmax.f32 %v3152, 0.0
      %v3185 = vmax.f32 %v3153, 0.0
      %v3186 = vmax.f32 %v3154, 0.0
      %v3187 = vmax.f32 %v3155, 0.0
      %v3188 = vmax.f32 %v3156, 0.0
      %v3189 = vmax.f32 %v3157, 0.0
      %v3190 = vmax.f32 %v3158, 0.0
      %v3191 = vmax.f32 %v3159, 0.0
      %v3192 = vmax.f32 %v3160, 0.0
      %v3193 = vmax.f32 %v3161, 0.0
      %v3194 = vmax.f32 %v3162, 0.0
      %v3195 = vmax.f32 %v3163, 0.0
      %v3196 = vmax.f32 %v3164, 0.0
      %v3197 = vmax.f32 %v3165, 0.0
      %v3198 = vmax.f32 %v3166, 0.0
      %v3199 = vmax.f32 %v3167, 0.0
      %v3200 = vmax.f32 %v3168, 0.0
      %v3201 = vmax.f32 %v3169, 0.0
      %v3202 = vmax.f32 %v3170, 0.0
      %v3203 = vmax.f32 %v3171, 0.0
      %v3204 = vmax.f32 %v3172, 0.0
      %v3205 = vmax.f32 %v3173, 0.0
      %v3206 = vmax.f32 %v3174, 0.0
      %v3207 = vmax.f32 %v3175, 0.0
      %v3208 = vmax.f32 %v3176, 0.0
      %v3209 = vmax.f32 %v3177, 0.0
      %v3210 = vmax.f32 %v3178, 0.0
      %v3211 = vmax.f32 %v3179, 0.0
      %v3212 = vmax.f32 %v3180, 0.0
      %v3213 = vmax.f32 %v3181, 0.0
      %v3214 = vmax.f32 %v3182, 0.0
      %v3215 = vmax.f32 %v3183, 0.0
      %3216 = vst.msk [vmem:[%s278] sm:$0xff] %vm326, %v3184
      %3217 = vst.msk [vmem:[%s278 + $0x8] sm:$0xff] %vm326, %v3185
      %3218 = vst.msk [vmem:[%s278 + $0x10] sm:$0xff] %vm326, %v3186
      %3219 = vst.msk [vmem:[%s278 + $0x18] sm:$0xff] %vm326, %v3187
      %3220 = vst.msk [vmem:[%s278 + $0x20] sm:$0xff] %vm326, %v3188
      %3221 = vst.msk [vmem:[%s278 + $0x28] sm:$0xff] %vm326, %v3189
      %3222 = vst.msk [vmem:[%s278 + $0x30] sm:$0xff] %vm326, %v3190
      %3223 = vst.msk [vmem:[%s278 + $0x38] sm:$0xff] %vm326, %v3191
      %3224 = vst.msk [vmem:[%s278 + $0x40] sm:$0xff] %vm326, %v3192
      %3225 = vst.msk [vmem:[%s278 + $0x48] sm:$0xff] %vm326, %v3193
      %3226 = vst.msk [vmem:[%s278 + $0x50] sm:$0xff] %vm326, %v3194
      %3227 = vst.msk [vmem:[%s278 + $0x58] sm:$0xff] %vm326, %v3195
      %3228 = vst.msk [vmem:[%s278 + $0x60] sm:$0xff] %vm326, %v3196
      %3229 = vst.msk [vmem:[%s278 + $0x68] sm:$0xff] %vm326, %v3197
      %3230 = vst.msk [vmem:[%s278 + $0x70] sm:$0xff] %vm326, %v3198
      %3231 = vst.msk [vmem:[%s278 + $0x78] sm:$0xff] %vm326, %v3199
      %3232 = vst.msk [vmem:[%s278 + $0x80] sm:$0xff] %vm326, %v3200
      %3233 = vst.msk [vmem:[%s278 + $0x88] sm:$0xff] %vm326, %v3201
      %3234 = vst.msk [vmem:[%s278 + $0x90] sm:$0xff] %vm326, %v3202
      %3235 = vst.msk [vmem:[%s278 + $0x98] sm:$0xff] %vm326, %v3203
      %3236 = vst.msk [vmem:[%s278 + $0xa0] sm:$0xff] %vm326, %v3204
      %3237 = vst.msk [vmem:[%s278 + $0xa8] sm:$0xff] %vm326, %v3205
      %3238 = vst.msk [vmem:[%s278 + $0xb0] sm:$0xff] %vm326, %v3206
      %3239 = vst.msk [vmem:[%s278 + $0xb8] sm:$0xff] %vm326, %v3207
      %3240 = vst.msk [vmem:[%s278 + $0xc0] sm:$0xff] %vm326, %v3208
      %3241 = vst.msk [vmem:[%s278 + $0xc8] sm:$0xff] %vm326, %v3209
      %3242 = vst.msk [vmem:[%s278 + $0xd0] sm:$0xff] %vm326, %v3210
      %3243 = vst.msk [vmem:[%s278 + $0xd8] sm:$0xff] %vm326, %v3211
      %3244 = vst.msk [vmem:[%s278 + $0xe0] sm:$0xff] %vm326, %v3212
      %3245 = vst.msk [vmem:[%s278 + $0xe8] sm:$0xff] %vm326, %v3213
      %3246 = vst.msk [vmem:[%s278 + $0xf0] sm:$0xff] %vm326, %v3214
      %3247 = vst.msk [vmem:[%s278 + $0xf8] sm:$0xff] %vm326, %v3215
      %p3248 = scmp.lt.s32.totalorder %s18, 1
      %s3249 = scalar_select %p3248, %s18, 1
      %s3250 = smul.addr %s3249, 32
      %s3251 = smul.addr %s3250, 8
      %s3252 = scalar_lea.vmem %s7, %s3251
      // Predicated region
      $region49: #{tpu_custom_call.1} parent=47 // pred_check
        %p3253 = pneg %p188
      $region50: #{tpu_custom_call.1} parent=47 // pred_check_branch
        %3255 = sbr.rel (%p3253) target = $region52
      $region51: #{tpu_custom_call.1} parent=47 // pred_region
        _
      $region52: #{tpu_custom_call.1} parent=47 // pred_fallthru
        _
    $region48: #{tpu_custom_call.1} parent=5 // pred_fallthru
      _
    %p3256 = scmp.le.s32.totalorder 2, %s13
    // Predicated region
    $region53: #{tpu_custom_call.1} parent=5 // pred_check
      %p3257 = pneg %p3256
    $region54: #{tpu_custom_call.1} parent=5 // pred_check_branch
      %3259 = sbr.rel (%p3257) target = $region56
    $region55: #{tpu_custom_call.1} parent=5 // pred_region
      %s3260 = ssub.s32 %s13, 2
      // Predicated region
      $region57: #{tpu_custom_call.1} parent=55 // pred_check
        %p3261 = pneg %p194
      $region58: #{tpu_custom_call.1} parent=55 // pred_check_branch
        %3263 = sbr.rel (%p3261) target = $region60
      $region59: #{tpu_custom_call.1} parent=55 // pred_region
        %p3264 = scmp.lt.s32.totalorder %s19, 1
        %s3265 = scalar_select %p3264, %s19, 1
        %s3266 = smul.addr %s3265, 32
        %s3267 = smul.addr %s3266, 8
        %s3268 = scalar_lea.vmem %s7, %s3267
      $region60: #{tpu_custom_call.1} parent=55 // pred_fallthru
        _
    $region56: #{tpu_custom_call.1} parent=5 // pred_fallthru
      _
  $region6: #{tpu_custom_call.1} parent=0 // loop_footer
    %s17 = sadd.s32 1, %s13
  $region7: #{tpu_custom_call.1} parent=0 // loop_footer_branch
    %12 = sbr.rel target = $region3
  $region8: #{tpu_custom_call.1} parent=0 // loop_exit
    _

</llo_original>
